<compile_context>
chip_gen: v6e
topology: v6e:2x2x1
jax: 0.10.0
libtpu: 0.0.40
codegen_flags: <defaults>
</compile_context>

<pallas_src>
import jax
import jax.numpy as jnp
from jax.experimental import pallas as pl
from jax.experimental.pallas import tpu as pltpu


# ---------------------------------------------------------------------------
# Pallas kernels
# ---------------------------------------------------------------------------
def _conv_relu_pool_kernel(x00_ref, x01_ref, x10_ref, x11_ref, w_ref, b_ref,
                           o_ref):
    """out = relu(max_corner(X_corner @ W) + b): conv + bias + ReLU + 2x2 pool."""
    def mm(ref):
        return jnp.dot(ref[...], w_ref[...], preferred_element_type=jnp.float32)

    acc = jnp.maximum(jnp.maximum(mm(x00_ref), mm(x01_ref)),
                      jnp.maximum(mm(x10_ref), mm(x11_ref)))
    o_ref[...] = jnp.maximum(acc + b_ref[...], 0.0)


def _fc_head_kernel(x_ref, w4_ref, b4_ref, w5_ref, b5_ref, o_ref):
    """Fused fc4 + fc5 (no activation between them, matching the torch module)."""
    h = jnp.dot(x_ref[...], w4_ref[...],
                preferred_element_type=jnp.float32) + b4_ref[...]
    o_ref[...] = jnp.dot(h, w5_ref[...],
                         preferred_element_type=jnp.float32) + b5_ref[...]


# ---------------------------------------------------------------------------
# Wrappers
# ---------------------------------------------------------------------------
def _round_up(x, m):
    return ((x + m - 1) // m) * m


def _corner_patches(x, k, s, a, c):
    """im2col restricted to conv-output positions (2i+a, 2j+c).

    x: (N, H, W, Cin)  ->  (N*PH*PW, k*k*Cin), feature order (kh, kw, cin),
    rows in (n, ph, pw) raster order (same order for every corner).
    """
    n, h, w, cin = x.shape
    oh = (h - k) // s + 1
    ow = (w - k) // s + 1
    ph, pw = oh // 2, ow // 2
    cols = []
    for di in range(k):
        for dj in range(k):
            r0 = a * s + di
            c0 = c * s + dj
            cols.append(x[:, r0:r0 + 2 * s * (ph - 1) + 1:2 * s,
                          c0:c0 + 2 * s * (pw - 1) + 1:2 * s, :])
    patches = jnp.concatenate(cols, axis=-1)            # (N, PH, PW, k*k*Cin)
    return patches.reshape(n * ph * pw, k * k * cin)


def conv2d_relu_pool(x, w, b, *, stride):
    """x: (N,H,W,Cin) f32, w: (KH,KW,Cin,Cout) -> maxpool2(relu(conv(x)+b))."""
    kh, kw, cin, cout = w.shape
    n, h, wd, _ = x.shape
    oh = (h - kh) // stride + 1
    ow = (wd - kw) // stride + 1
    assert oh % 2 == 0 and ow % 2 == 0, "2x2 max-pool needs an even conv output"
    ph, pw = oh // 2, ow // 2
    m = n * ph * pw
    k_feat = kh * kw * cin

    # Big layer (conv1): bf16 MXU feed + 4-step pipelined/megacore grid.
    # Tiny layers: f32, single full-array block (no dead-row padding).
    if m >= 512:
        in_dtype = jnp.bfloat16
        mp = _round_up(m, 512)
        tm = mp // 4
    else:
        in_dtype = jnp.float32
        mp = _round_up(m, 8)
        tm = mp

    xb = x.astype(in_dtype)
    corners = [_corner_patches(xb, kh, stride, a, c)
               for a in (0, 1) for c in (0, 1)]
    if mp != m:  # tiny, fused into the patch-building producer
        corners = [jnp.pad(cnr, ((0, mp - m), (0, 0))) for cnr in corners]

    wmat = w.reshape(k_feat, cout).astype(in_dtype)     # rows = (kh, kw, cin)
    grid = (mp // tm,)

    out = pl.pallas_call(
        _conv_relu_pool_kernel,
        out_shape=jax.ShapeDtypeStruct((mp, cout), jnp.float32),
        grid=grid,
        in_specs=[pl.BlockSpec((tm, k_feat), lambda i: (i, 0)) for _ in range(4)]
        + [pl.BlockSpec((k_feat, cout), lambda i: (0, 0)),
           pl.BlockSpec((1, cout), lambda i: (0, 0))],
        out_specs=pl.BlockSpec((tm, cout), lambda i: (i, 0)),
        compiler_params=pltpu.CompilerParams(
            dimension_semantics=("parallel",)),
    )(*corners, wmat, b.reshape(1, cout))
    return out[:m].reshape(n, ph, pw, cout)


def fc_head(xf, w4, b4, w5, b5):
    """Fused (xf @ w4 + b4) @ w5 + b5; M padded only to 8 (not 128)."""
    m, _ = xf.shape
    nout = w5.shape[1]
    mp = _round_up(m, 8)
    xp = jnp.pad(xf, ((0, mp - m), (0, 0))) if mp != m else xf
    out = pl.pallas_call(
        _fc_head_kernel,
        out_shape=jax.ShapeDtypeStruct((mp, nout), jnp.float32),
        in_specs=[pl.BlockSpec(memory_space=pltpu.MemorySpace.VMEM)] * 5,
        out_specs=pl.BlockSpec(memory_space=pltpu.MemorySpace.VMEM),
    )(xp, w4, b4.reshape(1, -1), w5, b5.reshape(1, -1))
    return out[:m]


# ---------------------------------------------------------------------------
# Model: parameters + forward
# ---------------------------------------------------------------------------
def init_params(key, in_channels, num_action):
    ks = jax.random.split(key, 10)

    def u(k, shape, fan_in):
        bound = 1.0 / float(fan_in) ** 0.5
        return jax.random.uniform(k, shape, jnp.float32, -bound, bound)

    return {
        "w1": u(ks[0], (8, 8, in_channels, 32), 8 * 8 * in_channels),
        "b1": u(ks[1], (32,), 8 * 8 * in_channels),
        "w2": u(ks[2], (4, 4, 32, 64), 4 * 4 * 32),
        "b2": u(ks[3], (64,), 4 * 4 * 32),
        "w3": u(ks[4], (2, 2, 64, 128), 2 * 2 * 64),
        "b3": u(ks[5], (128,), 2 * 2 * 64),
        # fc4 weight rows ordered like torch's NCHW flatten: (c, h, w)
        "w4": u(ks[6], (2 * 2 * 128, 256), 2 * 2 * 128),
        "b4": u(ks[7], (256,), 2 * 2 * 128),
        "w5": u(ks[8], (256, num_action), 256),
        "b5": u(ks[9], (num_action,), 256),
    }


def cnn_forward(params, x_nchw):
    # NCHW (torch convention) -> NHWC for the kernels.
    x = jnp.transpose(x_nchw, (0, 2, 3, 1)).astype(jnp.float32)
    x = conv2d_relu_pool(x, params["w1"], params["b1"], stride=4)  # (N,22,22,32)
    x = conv2d_relu_pool(x, params["w2"], params["b2"], stride=2)  # (N, 5, 5,64)
    x = conv2d_relu_pool(x, params["w3"], params["b3"], stride=1)  # (N, 2, 2,128)
    n = x.shape[0]
    # Flatten in (c, h, w) order, exactly like torch's x.view(N, -1) on NCHW.
    xf = jnp.transpose(x, (0, 3, 1, 2)).reshape(n, -1)
    return fc_head(xf, params["w4"], params["b4"], params["w5"], params["b5"])


if __name__ == "__main__":
    key = jax.random.PRNGKey(0)
    k_in, k_par = jax.random.split(key)

    in_channels, num_action = 4, 6
    # 180x180 is the smallest spatial size consistent with fc4's 512 inputs.
    x = jax.random.normal(k_in, (2, in_channels, 180, 180), jnp.float32)
    params = init_params(k_par, in_channels, num_action)

    out = jax.jit(cnn_forward)(params, x)
    jax.block_until_ready(out)
    assert out.shape == (2, num_action)
    assert bool(jnp.all(jnp.isfinite(out)))
    print("KERNEL_OK")
</pallas_src>

<mosaic_0001>
module attributes {stable_mosaic.version = 11 : i64} {
  func.func @_conv_relu_pool_kernel(%arg0: i32, %arg1: memref<256x256xbf16, #tpu.memory_space<vmem>>, %arg2: memref<256x256xbf16, #tpu.memory_space<vmem>>, %arg3: memref<256x256xbf16, #tpu.memory_space<vmem>>, %arg4: memref<256x256xbf16, #tpu.memory_space<vmem>>, %arg5: memref<256x32xbf16, #tpu.memory_space<vmem>>, %arg6: memref<1x32xf32, #tpu.memory_space<vmem>>, %arg7: memref<256x32xf32, #tpu.memory_space<vmem>>) attributes {dimension_semantics = [#tpu.dimension_semantics<parallel>], iteration_bounds = array<i64: 4>, scalar_prefetch = 0 : i64, scratch_operands = 0 : i64, tpu.core_type = #tpu.core_type<tc>, window_params = [{transform_indices = @transform_0, window_bounds = array<i64: 256, 256>}, {transform_indices = @transform_1, window_bounds = array<i64: 256, 256>}, {transform_indices = @transform_2, window_bounds = array<i64: 256, 256>}, {transform_indices = @transform_3, window_bounds = array<i64: 256, 256>}, {pipeline_mode = #tpu.pipeline_mode<synchronous>, transform_indices = @transform_4, window_bounds = array<i64: 256, 32>}, {pipeline_mode = #tpu.pipeline_mode<synchronous>, transform_indices = @transform_5, window_bounds = array<i64: 1, 32>}, {transform_indices = @transform_6, window_bounds = array<i64: 256, 32>}]} {
    %c0 = arith.constant 0 : index
    %c0_0 = arith.constant 0 : index
    %0 = vector.load %arg1[%c0, %c0_0] : memref<256x256xbf16, #tpu.memory_space<vmem>>, vector<256x256xbf16>
    %c0_1 = arith.constant 0 : index
    %c0_2 = arith.constant 0 : index
    %1 = vector.load %arg5[%c0_1, %c0_2] : memref<256x32xbf16, #tpu.memory_space<vmem>>, vector<256x32xbf16>
    %cst = arith.constant dense<0.000000e+00> : vector<256x32xf32>
    %2 = tpu.matmul %0, %1, %cst {dimension_numbers = #tpu.dot_dimension_numbers<[1], [0], [0], [1], [0, 0, 1, 1], [], []>} : vector<256x256xbf16>, vector<256x32xbf16>, vector<256x32xf32> -> vector<256x32xf32>
    %c0_3 = arith.constant 0 : index
    %c0_4 = arith.constant 0 : index
    %3 = vector.load %arg2[%c0_3, %c0_4] : memref<256x256xbf16, #tpu.memory_space<vmem>>, vector<256x256xbf16>
    %c0_5 = arith.constant 0 : index
    %c0_6 = arith.constant 0 : index
    %4 = vector.load %arg5[%c0_5, %c0_6] : memref<256x32xbf16, #tpu.memory_space<vmem>>, vector<256x32xbf16>
    %cst_7 = arith.constant dense<0.000000e+00> : vector<256x32xf32>
    %5 = tpu.matmul %3, %4, %cst_7 {dimension_numbers = #tpu.dot_dimension_numbers<[1], [0], [0], [1], [0, 0, 1, 1], [], []>} : vector<256x256xbf16>, vector<256x32xbf16>, vector<256x32xf32> -> vector<256x32xf32>
    %6 = arith.maximumf %2, %5 : vector<256x32xf32>
    %c0_8 = arith.constant 0 : index
    %c0_9 = arith.constant 0 : index
    %7 = vector.load %arg3[%c0_8, %c0_9] : memref<256x256xbf16, #tpu.memory_space<vmem>>, vector<256x256xbf16>
    %c0_10 = arith.constant 0 : index
    %c0_11 = arith.constant 0 : index
    %8 = vector.load %arg5[%c0_10, %c0_11] : memref<256x32xbf16, #tpu.memory_space<vmem>>, vector<256x32xbf16>
    %cst_12 = arith.constant dense<0.000000e+00> : vector<256x32xf32>
    %9 = tpu.matmul %7, %8, %cst_12 {dimension_numbers = #tpu.dot_dimension_numbers<[1], [0], [0], [1], [0, 0, 1, 1], [], []>} : vector<256x256xbf16>, vector<256x32xbf16>, vector<256x32xf32> -> vector<256x32xf32>
    %c0_13 = arith.constant 0 : index
    %c0_14 = arith.constant 0 : index
    %10 = vector.load %arg4[%c0_13, %c0_14] : memref<256x256xbf16, #tpu.memory_space<vmem>>, vector<256x256xbf16>
    %c0_15 = arith.constant 0 : index
    %c0_16 = arith.constant 0 : index
    %11 = vector.load %arg5[%c0_15, %c0_16] : memref<256x32xbf16, #tpu.memory_space<vmem>>, vector<256x32xbf16>
    %cst_17 = arith.constant dense<0.000000e+00> : vector<256x32xf32>
    %12 = tpu.matmul %10, %11, %cst_17 {dimension_numbers = #tpu.dot_dimension_numbers<[1], [0], [0], [1], [0, 0, 1, 1], [], []>} : vector<256x256xbf16>, vector<256x32xbf16>, vector<256x32xf32> -> vector<256x32xf32>
    %13 = arith.maximumf %9, %12 : vector<256x32xf32>
    %14 = arith.maximumf %6, %13 : vector<256x32xf32>
    %c0_18 = arith.constant 0 : index
    %c0_19 = arith.constant 0 : index
    %15 = vector.load %arg6[%c0_18, %c0_19] : memref<1x32xf32, #tpu.memory_space<vmem>>, vector<1x32xf32>
    %16 = vector.broadcast %15 : vector<1x32xf32> to vector<256x32xf32>
    %17 = arith.addf %14, %16 : vector<256x32xf32>
    %cst_20 = arith.constant 0.000000e+00 : f32
    %18 = vector.broadcast %cst_20 : f32 to vector<256x32xf32>
    %19 = arith.maximumf %17, %18 : vector<256x32xf32>
    %c0_21 = arith.constant 0 : index
    %c0_22 = arith.constant 0 : index
    %20 = vector.load %arg7[%c0_21, %c0_22] : memref<256x32xf32, #tpu.memory_space<vmem>>, vector<256x32xf32>
    tpu.vector_store %arg7[%c0_21, %c0_22], %19 {strides = array<i32>} : memref<256x32xf32, #tpu.memory_space<vmem>>, vector<256x32xf32>,
    return
  }
  func.func @transform_0(%arg0: i32) -> (i32, i32) {
    %c0_i32 = arith.constant 0 : i32
    %c0_i32_0 = arith.constant 0 : i32
    return %arg0, %c0_i32 : i32, i32
  }
  func.func @transform_1(%arg0: i32) -> (i32, i32) {
    %c0_i32 = arith.constant 0 : i32
    %c0_i32_0 = arith.constant 0 : i32
    return %arg0, %c0_i32 : i32, i32
  }
  func.func @transform_2(%arg0: i32) -> (i32, i32) {
    %c0_i32 = arith.constant 0 : i32
    %c0_i32_0 = arith.constant 0 : i32
    return %arg0, %c0_i32 : i32, i32
  }
  func.func @transform_3(%arg0: i32) -> (i32, i32) {
    %c0_i32 = arith.constant 0 : i32
    %c0_i32_0 = arith.constant 0 : i32
    return %arg0, %c0_i32 : i32, i32
  }
  func.func @transform_4(%arg0: i32) -> (i32, i32) {
    %c0_i32 = arith.constant 0 : i32
    %c0_i32_0 = arith.constant 0 : i32
    %c0_i32_1 = arith.constant 0 : i32
    return %c0_i32, %c0_i32_0 : i32, i32
  }
  func.func @transform_5(%arg0: i32) -> (i32, i32) {
    %c0_i32 = arith.constant 0 : i32
    %c0_i32_0 = arith.constant 0 : i32
    %c0_i32_1 = arith.constant 0 : i32
    return %c0_i32, %c0_i32_0 : i32, i32
  }
  func.func @transform_6(%arg0: i32) -> (i32, i32) {
    %c0_i32 = arith.constant 0 : i32
    %c0_i32_0 = arith.constant 0 : i32
    return %arg0, %c0_i32 : i32, i32
  }
}

module attributes {stable_mosaic.version = 11 : i64} {
  func.func @_conv_relu_pool_kernel(%arg0: i32, %arg1: memref<56x512xf32, #tpu.memory_space<vmem>>, %arg2: memref<56x512xf32, #tpu.memory_space<vmem>>, %arg3: memref<56x512xf32, #tpu.memory_space<vmem>>, %arg4: memref<56x512xf32, #tpu.memory_space<vmem>>, %arg5: memref<512x64xf32, #tpu.memory_space<vmem>>, %arg6: memref<1x64xf32, #tpu.memory_space<vmem>>, %arg7: memref<56x64xf32, #tpu.memory_space<vmem>>) attributes {dimension_semantics = [#tpu.dimension_semantics<parallel>], iteration_bounds = array<i64: 1>, scalar_prefetch = 0 : i64, scratch_operands = 0 : i64, tpu.core_type = #tpu.core_type<tc>, window_params = [{transform_indices = @transform_0, window_bounds = array<i64: 56, 512>}, {transform_indices = @transform_1, window_bounds = array<i64: 56, 512>}, {transform_indices = @transform_2, window_bounds = array<i64: 56, 512>}, {transform_indices = @transform_3, window_bounds = array<i64: 56, 512>}, {pipeline_mode = #tpu.pipeline_mode<synchronous>, transform_indices = @transform_4, window_bounds = array<i64: 512, 64>}, {pipeline_mode = #tpu.pipeline_mode<synchronous>, transform_indices = @transform_5, window_bounds = array<i64: 1, 64>}, {transform_indices = @transform_6, window_bounds = array<i64: 56, 64>}]} {
    %c0 = arith.constant 0 : index
    %c0_0 = arith.constant 0 : index
    %0 = vector.load %arg1[%c0, %c0_0] : memref<56x512xf32, #tpu.memory_space<vmem>>, vector<56x512xf32>
    %c0_1 = arith.constant 0 : index
    %c0_2 = arith.constant 0 : index
    %1 = vector.load %arg5[%c0_1, %c0_2] : memref<512x64xf32, #tpu.memory_space<vmem>>, vector<512x64xf32>
    %cst = arith.constant dense<0.000000e+00> : vector<56x64xf32>
    %2 = tpu.matmul %0, %1, %cst {dimension_numbers = #tpu.dot_dimension_numbers<[1], [0], [0], [1], [0, 0, 1, 1], [], []>} : vector<56x512xf32>, vector<512x64xf32>, vector<56x64xf32> -> vector<56x64xf32>
    %c0_3 = arith.constant 0 : index
    %c0_4 = arith.constant 0 : index
    %3 = vector.load %arg2[%c0_3, %c0_4] : memref<56x512xf32, #tpu.memory_space<vmem>>, vector<56x512xf32>
    %c0_5 = arith.constant 0 : index
    %c0_6 = arith.constant 0 : index
    %4 = vector.load %arg5[%c0_5, %c0_6] : memref<512x64xf32, #tpu.memory_space<vmem>>, vector<512x64xf32>
    %cst_7 = arith.constant dense<0.000000e+00> : vector<56x64xf32>
    %5 = tpu.matmul %3, %4, %cst_7 {dimension_numbers = #tpu.dot_dimension_numbers<[1], [0], [0], [1], [0, 0, 1, 1], [], []>} : vector<56x512xf32>, vector<512x64xf32>, vector<56x64xf32> -> vector<56x64xf32>
    %6 = arith.maximumf %2, %5 : vector<56x64xf32>
    %c0_8 = arith.constant 0 : index
    %c0_9 = arith.constant 0 : index
    %7 = vector.load %arg3[%c0_8, %c0_9] : memref<56x512xf32, #tpu.memory_space<vmem>>, vector<56x512xf32>
    %c0_10 = arith.constant 0 : index
    %c0_11 = arith.constant 0 : index
    %8 = vector.load %arg5[%c0_10, %c0_11] : memref<512x64xf32, #tpu.memory_space<vmem>>, vector<512x64xf32>
    %cst_12 = arith.constant dense<0.000000e+00> : vector<56x64xf32>
    %9 = tpu.matmul %7, %8, %cst_12 {dimension_numbers = #tpu.dot_dimension_numbers<[1], [0], [0], [1], [0, 0, 1, 1], [], []>} : vector<56x512xf32>, vector<512x64xf32>, vector<56x64xf32> -> vector<56x64xf32>
    %c0_13 = arith.constant 0 : index
    %c0_14 = arith.constant 0 : index
    %10 = vector.load %arg4[%c0_13, %c0_14] : memref<56x512xf32, #tpu.memory_space<vmem>>, vector<56x512xf32>
    %c0_15 = arith.constant 0 : index
    %c0_16 = arith.constant 0 : index
    %11 = vector.load %arg5[%c0_15, %c0_16] : memref<512x64xf32, #tpu.memory_space<vmem>>, vector<512x64xf32>
    %cst_17 = arith.constant dense<0.000000e+00> : vector<56x64xf32>
    %12 = tpu.matmul %10, %11, %cst_17 {dimension_numbers = #tpu.dot_dimension_numbers<[1], [0], [0], [1], [0, 0, 1, 1], [], []>} : vector<56x512xf32>, vector<512x64xf32>, vector<56x64xf32> -> vector<56x64xf32>
    %13 = arith.maximumf %9, %12 : vector<56x64xf32>
    %14 = arith.maximumf %6, %13 : vector<56x64xf32>
    %c0_18 = arith.constant 0 : index
    %c0_19 = arith.constant 0 : index
    %15 = vector.load %arg6[%c0_18, %c0_19] : memref<1x64xf32, #tpu.memory_space<vmem>>, vector<1x64xf32>
    %16 = vector.broadcast %15 : vector<1x64xf32> to vector<56x64xf32>
    %17 = arith.addf %14, %16 : vector<56x64xf32>
    %cst_20 = arith.constant 0.000000e+00 : f32
    %18 = vector.broadcast %cst_20 : f32 to vector<56x64xf32>
    %19 = arith.maximumf %17, %18 : vector<56x64xf32>
    %c0_21 = arith.constant 0 : index
    %c0_22 = arith.constant 0 : index
    %20 = vector.load %arg7[%c0_21, %c0_22] : memref<56x64xf32, #tpu.memory_space<vmem>>, vector<56x64xf32>
    tpu.vector_store %arg7[%c0_21, %c0_22], %19 {strides = array<i32>} : memref<56x64xf32, #tpu.memory_space<vmem>>, vector<56x64xf32>,
    return
  }
  func.func @transform_0(%arg0: i32) -> (i32, i32) {
    %c0_i32 = arith.constant 0 : i32
    %c0_i32_0 = arith.constant 0 : i32
    return %arg0, %c0_i32 : i32, i32
  }
  func.func @transform_1(%arg0: i32) -> (i32, i32) {
    %c0_i32 = arith.constant 0 : i32
    %c0_i32_0 = arith.constant 0 : i32
    return %arg0, %c0_i32 : i32, i32
  }
  func.func @transform_2(%arg0: i32) -> (i32, i32) {
    %c0_i32 = arith.constant 0 : i32
    %c0_i32_0 = arith.constant 0 : i32
    return %arg0, %c0_i32 : i32, i32
  }
  func.func @transform_3(%arg0: i32) -> (i32, i32) {
    %c0_i32 = arith.constant 0 : i32
    %c0_i32_0 = arith.constant 0 : i32
    return %arg0, %c0_i32 : i32, i32
  }
  func.func @transform_4(%arg0: i32) -> (i32, i32) {
    %c0_i32 = arith.constant 0 : i32
    %c0_i32_0 = arith.constant 0 : i32
    %c0_i32_1 = arith.constant 0 : i32
    return %c0_i32, %c0_i32_0 : i32, i32
  }
  func.func @transform_5(%arg0: i32) -> (i32, i32) {
    %c0_i32 = arith.constant 0 : i32
    %c0_i32_0 = arith.constant 0 : i32
    %c0_i32_1 = arith.constant 0 : i32
    return %c0_i32, %c0_i32_0 : i32, i32
  }
  func.func @transform_6(%arg0: i32) -> (i32, i32) {
    %c0_i32 = arith.constant 0 : i32
    %c0_i32_0 = arith.constant 0 : i32
    return %arg0, %c0_i32 : i32, i32
  }
}

module attributes {stable_mosaic.version = 11 : i64} {
  func.func @_conv_relu_pool_kernel(%arg0: i32, %arg1: memref<8x256xf32, #tpu.memory_space<vmem>>, %arg2: memref<8x256xf32, #tpu.memory_space<vmem>>, %arg3: memref<8x256xf32, #tpu.memory_space<vmem>>, %arg4: memref<8x256xf32, #tpu.memory_space<vmem>>, %arg5: memref<256x128xf32, #tpu.memory_space<vmem>>, %arg6: memref<1x128xf32, #tpu.memory_space<vmem>>, %arg7: memref<8x128xf32, #tpu.memory_space<vmem>>) attributes {dimension_semantics = [#tpu.dimension_semantics<parallel>], iteration_bounds = array<i64: 1>, scalar_prefetch = 0 : i64, scratch_operands = 0 : i64, tpu.core_type = #tpu.core_type<tc>, window_params = [{transform_indices = @transform_0, window_bounds = array<i64: 8, 256>}, {transform_indices = @transform_1, window_bounds = array<i64: 8, 256>}, {transform_indices = @transform_2, window_bounds = array<i64: 8, 256>}, {transform_indices = @transform_3, window_bounds = array<i64: 8, 256>}, {pipeline_mode = #tpu.pipeline_mode<synchronous>, transform_indices = @transform_4, window_bounds = array<i64: 256, 128>}, {pipeline_mode = #tpu.pipeline_mode<synchronous>, transform_indices = @transform_5, window_bounds = array<i64: 1, 128>}, {transform_indices = @transform_6, window_bounds = array<i64: 8, 128>}]} {
    %c0 = arith.constant 0 : index
    %c0_0 = arith.constant 0 : index
    %0 = vector.load %arg1[%c0, %c0_0] : memref<8x256xf32, #tpu.memory_space<vmem>>, vector<8x256xf32>
    %c0_1 = arith.constant 0 : index
    %c0_2 = arith.constant 0 : index
    %1 = vector.load %arg5[%c0_1, %c0_2] : memref<256x128xf32, #tpu.memory_space<vmem>>, vector<256x128xf32>
    %cst = arith.constant dense<0.000000e+00> : vector<8x128xf32>
    %2 = tpu.matmul %0, %1, %cst {dimension_numbers = #tpu.dot_dimension_numbers<[1], [0], [0], [1], [0, 0, 1, 1], [], []>} : vector<8x256xf32>, vector<256x128xf32>, vector<8x128xf32> -> vector<8x128xf32>
    %c0_3 = arith.constant 0 : index
    %c0_4 = arith.constant 0 : index
    %3 = vector.load %arg2[%c0_3, %c0_4] : memref<8x256xf32, #tpu.memory_space<vmem>>, vector<8x256xf32>
    %c0_5 = arith.constant 0 : index
    %c0_6 = arith.constant 0 : index
    %4 = vector.load %arg5[%c0_5, %c0_6] : memref<256x128xf32, #tpu.memory_space<vmem>>, vector<256x128xf32>
    %cst_7 = arith.constant dense<0.000000e+00> : vector<8x128xf32>
    %5 = tpu.matmul %3, %4, %cst_7 {dimension_numbers = #tpu.dot_dimension_numbers<[1], [0], [0], [1], [0, 0, 1, 1], [], []>} : vector<8x256xf32>, vector<256x128xf32>, vector<8x128xf32> -> vector<8x128xf32>
    %6 = arith.maximumf %2, %5 : vector<8x128xf32>
    %c0_8 = arith.constant 0 : index
    %c0_9 = arith.constant 0 : index
    %7 = vector.load %arg3[%c0_8, %c0_9] : memref<8x256xf32, #tpu.memory_space<vmem>>, vector<8x256xf32>
    %c0_10 = arith.constant 0 : index
    %c0_11 = arith.constant 0 : index
    %8 = vector.load %arg5[%c0_10, %c0_11] : memref<256x128xf32, #tpu.memory_space<vmem>>, vector<256x128xf32>
    %cst_12 = arith.constant dense<0.000000e+00> : vector<8x128xf32>
    %9 = tpu.matmul %7, %8, %cst_12 {dimension_numbers = #tpu.dot_dimension_numbers<[1], [0], [0], [1], [0, 0, 1, 1], [], []>} : vector<8x256xf32>, vector<256x128xf32>, vector<8x128xf32> -> vector<8x128xf32>
    %c0_13 = arith.constant 0 : index
    %c0_14 = arith.constant 0 : index
    %10 = vector.load %arg4[%c0_13, %c0_14] : memref<8x256xf32, #tpu.memory_space<vmem>>, vector<8x256xf32>
    %c0_15 = arith.constant 0 : index
    %c0_16 = arith.constant 0 : index
    %11 = vector.load %arg5[%c0_15, %c0_16] : memref<256x128xf32, #tpu.memory_space<vmem>>, vector<256x128xf32>
    %cst_17 = arith.constant dense<0.000000e+00> : vector<8x128xf32>
    %12 = tpu.matmul %10, %11, %cst_17 {dimension_numbers = #tpu.dot_dimension_numbers<[1], [0], [0], [1], [0, 0, 1, 1], [], []>} : vector<8x256xf32>, vector<256x128xf32>, vector<8x128xf32> -> vector<8x128xf32>
    %13 = arith.maximumf %9, %12 : vector<8x128xf32>
    %14 = arith.maximumf %6, %13 : vector<8x128xf32>
    %c0_18 = arith.constant 0 : index
    %c0_19 = arith.constant 0 : index
    %15 = vector.load %arg6[%c0_18, %c0_19] : memref<1x128xf32, #tpu.memory_space<vmem>>, vector<1x128xf32>
    %16 = vector.broadcast %15 : vector<1x128xf32> to vector<8x128xf32>
    %17 = arith.addf %14, %16 : vector<8x128xf32>
    %cst_20 = arith.constant 0.000000e+00 : f32
    %18 = vector.broadcast %cst_20 : f32 to vector<8x128xf32>
    %19 = arith.maximumf %17, %18 : vector<8x128xf32>
    %c0_21 = arith.constant 0 : index
    %c0_22 = arith.constant 0 : index
    %20 = vector.load %arg7[%c0_21, %c0_22] : memref<8x128xf32, #tpu.memory_space<vmem>>, vector<8x128xf32>
    tpu.vector_store %arg7[%c0_21, %c0_22], %19 {strides = array<i32>} : memref<8x128xf32, #tpu.memory_space<vmem>>, vector<8x128xf32>,
    return
  }
  func.func @transform_0(%arg0: i32) -> (i32, i32) {
    %c0_i32 = arith.constant 0 : i32
    %c0_i32_0 = arith.constant 0 : i32
    return %arg0, %c0_i32 : i32, i32
  }
  func.func @transform_1(%arg0: i32) -> (i32, i32) {
    %c0_i32 = arith.constant 0 : i32
    %c0_i32_0 = arith.constant 0 : i32
    return %arg0, %c0_i32 : i32, i32
  }
  func.func @transform_2(%arg0: i32) -> (i32, i32) {
    %c0_i32 = arith.constant 0 : i32
    %c0_i32_0 = arith.constant 0 : i32
    return %arg0, %c0_i32 : i32, i32
  }
  func.func @transform_3(%arg0: i32) -> (i32, i32) {
    %c0_i32 = arith.constant 0 : i32
    %c0_i32_0 = arith.constant 0 : i32
    return %arg0, %c0_i32 : i32, i32
  }
  func.func @transform_4(%arg0: i32) -> (i32, i32) {
    %c0_i32 = arith.constant 0 : i32
    %c0_i32_0 = arith.constant 0 : i32
    %c0_i32_1 = arith.constant 0 : i32
    return %c0_i32, %c0_i32_0 : i32, i32
  }
  func.func @transform_5(%arg0: i32) -> (i32, i32) {
    %c0_i32 = arith.constant 0 : i32
    %c0_i32_0 = arith.constant 0 : i32
    %c0_i32_1 = arith.constant 0 : i32
    return %c0_i32, %c0_i32_0 : i32, i32
  }
  func.func @transform_6(%arg0: i32) -> (i32, i32) {
    %c0_i32 = arith.constant 0 : i32
    %c0_i32_0 = arith.constant 0 : i32
    return %arg0, %c0_i32 : i32, i32
  }
}

module attributes {stable_mosaic.version = 11 : i64} {
  func.func @_fc_head_kernel(%arg0: memref<8x512xf32, #tpu.memory_space<vmem>>, %arg1: memref<512x256xf32, #tpu.memory_space<vmem>>, %arg2: memref<1x256xf32, #tpu.memory_space<vmem>>, %arg3: memref<256x6xf32, #tpu.memory_space<vmem>>, %arg4: memref<1x6xf32, #tpu.memory_space<vmem>>, %arg5: memref<8x6xf32, #tpu.memory_space<vmem>>) attributes {dimension_semantics = [], scalar_prefetch = 0 : i64, scratch_operands = 0 : i64, tpu.core_type = #tpu.core_type<tc>} {
    %c0 = arith.constant 0 : index
    %c0_0 = arith.constant 0 : index
    %0 = vector.load %arg0[%c0, %c0_0] : memref<8x512xf32, #tpu.memory_space<vmem>>, vector<8x512xf32>
    %c0_1 = arith.constant 0 : index
    %c0_2 = arith.constant 0 : index
    %1 = vector.load %arg1[%c0_1, %c0_2] : memref<512x256xf32, #tpu.memory_space<vmem>>, vector<512x256xf32>
    %cst = arith.constant dense<0.000000e+00> : vector<8x256xf32>
    %2 = tpu.matmul %0, %1, %cst {dimension_numbers = #tpu.dot_dimension_numbers<[1], [0], [0], [1], [0, 0, 1, 1], [], []>} : vector<8x512xf32>, vector<512x256xf32>, vector<8x256xf32> -> vector<8x256xf32>
    %c0_3 = arith.constant 0 : index
    %c0_4 = arith.constant 0 : index
    %3 = vector.load %arg2[%c0_3, %c0_4] : memref<1x256xf32, #tpu.memory_space<vmem>>, vector<1x256xf32>
    %4 = vector.broadcast %3 : vector<1x256xf32> to vector<8x256xf32>
    %5 = arith.addf %2, %4 : vector<8x256xf32>
    %c0_5 = arith.constant 0 : index
    %c0_6 = arith.constant 0 : index
    %6 = vector.load %arg3[%c0_5, %c0_6] : memref<256x6xf32, #tpu.memory_space<vmem>>, vector<256x6xf32>
    %cst_7 = arith.constant dense<0.000000e+00> : vector<8x6xf32>
    %7 = tpu.matmul %5, %6, %cst_7 {dimension_numbers = #tpu.dot_dimension_numbers<[1], [0], [0], [1], [0, 0, 1, 1], [], []>} : vector<8x256xf32>, vector<256x6xf32>, vector<8x6xf32> -> vector<8x6xf32>
    %c0_8 = arith.constant 0 : index
    %c0_9 = arith.constant 0 : index
    %8 = vector.load %arg4[%c0_8, %c0_9] : memref<1x6xf32, #tpu.memory_space<vmem>>, vector<1x6xf32>
    %9 = vector.broadcast %8 : vector<1x6xf32> to vector<8x6xf32>
    %10 = arith.addf %7, %9 : vector<8x6xf32>
    %c0_10 = arith.constant 0 : index
    %c0_11 = arith.constant 0 : index
    %11 = vector.load %arg5[%c0_10, %c0_11] : memref<8x6xf32, #tpu.memory_space<vmem>>, vector<8x6xf32>
    tpu.vector_store %arg5[%c0_10, %c0_11], %10 {strides = array<i32>} : memref<8x6xf32, #tpu.memory_space<vmem>>, vector<8x6xf32>,
    return
  }
}

</mosaic_0001>

<llo_original>
// kernel: cnn_forward.4
$region0: #{cnn_forward.4}
  #allocation0 [shape = 'u32[]', space=smem, size = 0x4, offset = 0x4, fixed_abs, tag = 'smem constant byte address 0x4 - core index']
  #allocation1 [shape = 'u32[144,128]{1,0:T(1,128)}', space=vmem, size = 0x12000, scoped, tag = 'internal scratch']
  %s0 = inlined_call_operand.vmem [shape: bf16[1024,256], index: 0, kind: input, shape index: {}]
  %s1 = inlined_call_operand.vmem [shape: bf16[1024,256], index: 1, kind: input, shape index: {}]
  %s2 = inlined_call_operand.vmem [shape: bf16[1024,256], index: 2, kind: input, shape index: {}]
  %s3 = inlined_call_operand.vmem [shape: bf16[1024,256], index: 3, kind: input, shape index: {}]
  %s4 = inlined_call_operand.vmem [shape: bf16[256,32], index: 4, kind: input, shape index: {}]
  %s5 = inlined_call_operand.vmem [shape: f32[1,32], index: 5, kind: input, shape index: {}]
  %s6 = inlined_call_operand.vmem [shape: f32[1024,32], index: 6, kind: output, shape index: {}]
  %s7 = sld [smem:[#allocation0]]
  $region57: #{cnn_forward.4} parent=0
    _
  %s9 = ssub.s32 1, %s7
  %s10 = scalar_select 0, %s9, %s7
  loop: start=0, step=1, limit=6
  $region2: #{cnn_forward.4} parent=0 // loop_pre_header
    _
  $region3: #{cnn_forward.4} parent=0 // loop_header
    %s12 = sphi 0, %s16
    %p13 = scmp.ge.s32.totalorder %s12, 6
    %s22 = sphi 0, %s24
    %s25 = sphi 0, %s22
    %s26 = sphi 0, %s25
    %s42 = sphi 0, %s26
    %s48 = sphi 0, %s50
    %s51 = sphi 0, %s48
    %s52 = sphi 0, %s51
    %s68 = sphi 0, %s52
    %s74 = sphi 0, %s76
    %s77 = sphi 0, %s74
    %s78 = sphi 0, %s77
    %s94 = sphi 0, %s78
    %s100 = sphi 0, %s102
    %s103 = sphi 0, %s100
    %s104 = sphi 0, %s103
    %s120 = sphi 0, %s104
    %s124 = sphi 0, %s124
    %s126 = sphi 0, %s124
    %s127 = sphi 0, %s126
    %s141 = sphi 0, %s127
    %s145 = sphi 0, %s145
    %s147 = sphi 0, %s145
    %s148 = sphi 0, %s147
    %s162 = sphi 0, %s148
    %s168 = sphi 0, %s170
    %s171 = sphi 0, %s168
    %s172 = sphi 0, %s171
    %s188 = sphi 0, %s172
  $region4: #{cnn_forward.4} parent=0 // loop_header_branch
    %15 = sbr.rel (%p13) target = $region8
  $region5: #{cnn_forward.4} parent=0 // loop_body
    %s17 = ssub.s32 %s12, 1
    %s18 = ssub.s32 %s12, 2
    %s19 = sadd.s32 %s12, 1
    %s20 = ssub.s32 %s12, %s19
    %p21 = scmp.eq.s32.totalorder %s20, 0
    %s23 = sadd.s32 %s22, 1
    %s24 = scalar_select %p21, %s22, %s23
    %p27 = pneg %p21
    %p28 = scmp.eq.s32.totalorder %s12, 3
    %p29 = por %p27, %p28
    %p30 = scmp.ne.s32.totalorder %s22, %s25
    %p31 = scmp.eq.s32.totalorder %s12, 0
    %p32 = por %p30, %p31
    %p33 = scmp.ne.s32.totalorder %s22, %s25
    %p34 = scmp.eq.s32.totalorder %s17, 3
    %p35 = por %p33, %p34
    %p36 = scmp.ne.s32.totalorder %s25, %s26
    %p37 = scmp.eq.s32.totalorder %s17, 0
    %p38 = por %p36, %p37
    %p39 = scmp.ne.s32.totalorder %s25, %s26
    %p40 = scmp.eq.s32.totalorder %s18, 3
    %p41 = por %p39, %p40
    %p43 = scmp.ne.s32.totalorder %s26, %s42
    %p44 = scmp.eq.s32.totalorder %s18, 0
    %p45 = por %p43, %p44
    %s46 = ssub.s32 %s12, %s19
    %p47 = scmp.eq.s32.totalorder %s46, 0
    %s49 = sadd.s32 %s48, 1
    %s50 = scalar_select %p47, %s48, %s49
    %p53 = pneg %p47
    %p54 = scmp.eq.s32.totalorder %s12, 3
    %p55 = por %p53, %p54
    %p56 = scmp.ne.s32.totalorder %s48, %s51
    %p57 = scmp.eq.s32.totalorder %s12, 0
    %p58 = por %p56, %p57
    %p59 = scmp.ne.s32.totalorder %s48, %s51
    %p60 = scmp.eq.s32.totalorder %s17, 3
    %p61 = por %p59, %p60
    %p62 = scmp.ne.s32.totalorder %s51, %s52
    %p63 = scmp.eq.s32.totalorder %s17, 0
    %p64 = por %p62, %p63
    %p65 = scmp.ne.s32.totalorder %s51, %s52
    %p66 = scmp.eq.s32.totalorder %s18, 3
    %p67 = por %p65, %p66
    %p69 = scmp.ne.s32.totalorder %s52, %s68
    %p70 = scmp.eq.s32.totalorder %s18, 0
    %p71 = por %p69, %p70
    %s72 = ssub.s32 %s12, %s19
    %p73 = scmp.eq.s32.totalorder %s72, 0
    %s75 = sadd.s32 %s74, 1
    %s76 = scalar_select %p73, %s74, %s75
    %p79 = pneg %p73
    %p80 = scmp.eq.s32.totalorder %s12, 3
    %p81 = por %p79, %p80
    %p82 = scmp.ne.s32.totalorder %s74, %s77
    %p83 = scmp.eq.s32.totalorder %s12, 0
    %p84 = por %p82, %p83
    %p85 = scmp.ne.s32.totalorder %s74, %s77
    %p86 = scmp.eq.s32.totalorder %s17, 3
    %p87 = por %p85, %p86
    %p88 = scmp.ne.s32.totalorder %s77, %s78
    %p89 = scmp.eq.s32.totalorder %s17, 0
    %p90 = por %p88, %p89
    %p91 = scmp.ne.s32.totalorder %s77, %s78
    %p92 = scmp.eq.s32.totalorder %s18, 3
    %p93 = por %p91, %p92
    %p95 = scmp.ne.s32.totalorder %s78, %s94
    %p96 = scmp.eq.s32.totalorder %s18, 0
    %p97 = por %p95, %p96
    %s98 = ssub.s32 %s12, %s19
    %p99 = scmp.eq.s32.totalorder %s98, 0
    %s101 = sadd.s32 %s100, 1
    %s102 = scalar_select %p99, %s100, %s101
    %p105 = pneg %p99
    %p106 = scmp.eq.s32.totalorder %s12, 3
    %p107 = por %p105, %p106
    %p108 = scmp.ne.s32.totalorder %s100, %s103
    %p109 = scmp.eq.s32.totalorder %s12, 0
    %p110 = por %p108, %p109
    %p111 = scmp.ne.s32.totalorder %s100, %s103
    %p112 = scmp.eq.s32.totalorder %s17, 3
    %p113 = por %p111, %p112
    %p114 = scmp.ne.s32.totalorder %s103, %s104
    %p115 = scmp.eq.s32.totalorder %s17, 0
    %p116 = por %p114, %p115
    %p117 = scmp.ne.s32.totalorder %s103, %s104
    %p118 = scmp.eq.s32.totalorder %s18, 3
    %p119 = por %p117, %p118
    %p121 = scmp.ne.s32.totalorder %s104, %s120
    %p122 = scmp.eq.s32.totalorder %s18, 0
    %p123 = por %p121, %p122
    %s125 = sadd.s32 %s124, 1
    %p128 = scmp.eq.s32.totalorder %s12, 3
    %p129 = scmp.ne.s32.totalorder %s124, %s126
    %p130 = scmp.eq.s32.totalorder %s12, 0
    %p131 = por %p129, %p130
    %p132 = scmp.ne.s32.totalorder %s124, %s126
    %p133 = scmp.eq.s32.totalorder %s17, 3
    %p134 = por %p132, %p133
    %p135 = scmp.ne.s32.totalorder %s126, %s127
    %p136 = scmp.eq.s32.totalorder %s17, 0
    %p137 = por %p135, %p136
    %p138 = scmp.ne.s32.totalorder %s126, %s127
    %p139 = scmp.eq.s32.totalorder %s18, 3
    %p140 = por %p138, %p139
    %p142 = scmp.ne.s32.totalorder %s127, %s141
    %p143 = scmp.eq.s32.totalorder %s18, 0
    %p144 = por %p142, %p143
    %s146 = sadd.s32 %s145, 1
    %p149 = scmp.eq.s32.totalorder %s12, 3
    %p150 = scmp.ne.s32.totalorder %s145, %s147
    %p151 = scmp.eq.s32.totalorder %s12, 0
    %p152 = por %p150, %p151
    %p153 = scmp.ne.s32.totalorder %s145, %s147
    %p154 = scmp.eq.s32.totalorder %s17, 3
    %p155 = por %p153, %p154
    %p156 = scmp.ne.s32.totalorder %s147, %s148
    %p157 = scmp.eq.s32.totalorder %s17, 0
    %p158 = por %p156, %p157
    %p159 = scmp.ne.s32.totalorder %s147, %s148
    %p160 = scmp.eq.s32.totalorder %s18, 3
    %p161 = por %p159, %p160
    %p163 = scmp.ne.s32.totalorder %s148, %s162
    %p164 = scmp.eq.s32.totalorder %s18, 0
    %p165 = por %p163, %p164
    %s166 = ssub.s32 %s12, %s19
    %p167 = scmp.eq.s32.totalorder %s166, 0
    %s169 = sadd.s32 %s168, 1
    %s170 = scalar_select %p167, %s168, %s169
    %p173 = pneg %p167
    %p174 = scmp.eq.s32.totalorder %s12, 3
    %p175 = por %p173, %p174
    %p176 = scmp.ne.s32.totalorder %s168, %s171
    %p177 = scmp.eq.s32.totalorder %s12, 0
    %p178 = por %p176, %p177
    %p179 = scmp.ne.s32.totalorder %s168, %s171
    %p180 = scmp.eq.s32.totalorder %s17, 3
    %p181 = por %p179, %p180
    %p182 = scmp.ne.s32.totalorder %s171, %s172
    %p183 = scmp.eq.s32.totalorder %s17, 0
    %p184 = por %p182, %p183
    %p185 = scmp.ne.s32.totalorder %s171, %s172
    %p186 = scmp.eq.s32.totalorder %s18, 3
    %p187 = por %p185, %p186
    %p189 = scmp.ne.s32.totalorder %s172, %s188
    %p190 = scmp.eq.s32.totalorder %s18, 0
    %p191 = por %p189, %p190
    %p192 = scmp.le.s32.totalorder 1, %s12
    %p193 = scmp.lt.s32.totalorder %s12, 5
    %p194 = pnand %p192, %p193
    %p195 = pneg %p194
    // Predicated region
    $region9: #{cnn_forward.4} parent=5 // pred_check
      _
    $region10: #{cnn_forward.4} parent=5 // pred_check_branch
      %197 = sbr.rel (%p194) target = $region12
    $region11: #{cnn_forward.4} parent=5 // pred_region
      %s198 = ssub.s32 %s12, 1
      // Predicated region
      $region13: #{cnn_forward.4} parent=11 // pred_check
        %p199 = pneg %p137
      $region14: #{cnn_forward.4} parent=11 // pred_check_branch
        %201 = sbr.rel (%p199) target = $region16
      $region15: #{cnn_forward.4} parent=11 // pred_region
        _
      $region16: #{cnn_forward.4} parent=11 // pred_fallthru
        _
      // Predicated region
      $region17: #{cnn_forward.4} parent=11 // pred_check
        %p202 = pneg %p158
      $region18: #{cnn_forward.4} parent=11 // pred_check_branch
        %204 = sbr.rel (%p202) target = $region20
      $region19: #{cnn_forward.4} parent=11 // pred_region
        _
      $region20: #{cnn_forward.4} parent=11 // pred_fallthru
        _
    $region12: #{cnn_forward.4} parent=5 // pred_fallthru
      _
    %p205 = scmp.lt.s32.totalorder %s12, 4
    // Predicated region
    $region21: #{cnn_forward.4} parent=5 // pred_check
      %p206 = pneg %p205
    $region22: #{cnn_forward.4} parent=5 // pred_check_branch
      %208 = sbr.rel (%p206) target = $region24
    $region23: #{cnn_forward.4} parent=5 // pred_region
      // Predicated region
      $region25: #{cnn_forward.4} parent=23 // pred_check
        %p209 = pneg %p32
      $region26: #{cnn_forward.4} parent=23 // pred_check_branch
        %211 = sbr.rel (%p209) target = $region28
      $region27: #{cnn_forward.4} parent=23 // pred_region
        %s212 = smul.u32 32, %s12
        %p213 = scmp.lt.s32.totalorder %s212, 127
        %s214 = scalar_select %p213, %s212, 127
        %s215 = smul.addr %s214, 2
        %s216 = smul.addr %s215, 4
        %s217 = scalar_lea.vmem %s0, %s216
        %s218 = smul.u32 32, %s12
      $region28: #{cnn_forward.4} parent=23 // pred_fallthru
        _
      // Predicated region
      $region29: #{cnn_forward.4} parent=23 // pred_check
        %p219 = pneg %p58
      $region30: #{cnn_forward.4} parent=23 // pred_check_branch
        %221 = sbr.rel (%p219) target = $region32
      $region31: #{cnn_forward.4} parent=23 // pred_region
        %s222 = smul.u32 32, %s12
        %p223 = scmp.lt.s32.totalorder %s222, 127
        %s224 = scalar_select %p223, %s222, 127
        %s225 = smul.addr %s224, 2
        %s226 = smul.addr %s225, 4
        %s227 = scalar_lea.vmem %s1, %s226
        %s228 = smul.u32 32, %s12
      $region32: #{cnn_forward.4} parent=23 // pred_fallthru
        _
      // Predicated region
      $region33: #{cnn_forward.4} parent=23 // pred_check
        %p229 = pneg %p84
      $region34: #{cnn_forward.4} parent=23 // pred_check_branch
        %231 = sbr.rel (%p229) target = $region36
      $region35: #{cnn_forward.4} parent=23 // pred_region
        %s232 = smul.u32 32, %s12
        %p233 = scmp.lt.s32.totalorder %s232, 127
        %s234 = scalar_select %p233, %s232, 127
        %s235 = smul.addr %s234, 2
        %s236 = smul.addr %s235, 4
        %s237 = scalar_lea.vmem %s2, %s236
        %s238 = smul.u32 32, %s12
      $region36: #{cnn_forward.4} parent=23 // pred_fallthru
        _
      // Predicated region
      $region37: #{cnn_forward.4} parent=23 // pred_check
        %p239 = pneg %p110
      $region38: #{cnn_forward.4} parent=23 // pred_check_branch
        %241 = sbr.rel (%p239) target = $region40
      $region39: #{cnn_forward.4} parent=23 // pred_region
        %s242 = smul.u32 32, %s12
        %p243 = scmp.lt.s32.totalorder %s242, 127
        %s244 = scalar_select %p243, %s242, 127
        %s245 = smul.addr %s244, 2
        %s246 = smul.addr %s245, 4
        %s247 = scalar_lea.vmem %s3, %s246
        %s248 = smul.u32 32, %s12
      $region40: #{cnn_forward.4} parent=23 // pred_fallthru
        _
    $region24: #{cnn_forward.4} parent=5 // pred_fallthru
      _
    %p249 = scmp.le.s32.totalorder 1, %s12
    %p250 = scmp.lt.s32.totalorder %s12, 5
    %p251 = pnand %p249, %p250
    %p252 = pneg %p251
    // Predicated region
    $region41: #{cnn_forward.4} parent=5 // pred_check
      _
    $region42: #{cnn_forward.4} parent=5 // pred_check_branch
      %254 = sbr.rel (%p251) target = $region44
    $region43: #{cnn_forward.4} parent=5 // pred_region
      %s255 = ssub.s32 %s12, 1
      %s256 = smul.u32 32, %s17
      %p257 = scmp.lt.s32.totalorder %s256, 127
      %s258 = scalar_select %p257, %s256, 127
      %s259 = smul.addr %s258, 2
      %s260 = smul.addr %s259, 4
      %s261 = scalar_lea.vmem %s0, %s260
      %p262 = pneg %p38
      %p263 = pneg %p35
      %s264 = smul.u32 32, %s17
      %p265 = scmp.lt.s32.totalorder %s264, 127
      %s266 = scalar_select %p265, %s264, 127
      %s267 = smul.addr %s266, 2
      %s268 = smul.addr %s267, 4
      %s269 = scalar_lea.vmem %s1, %s268
      %p270 = pneg %p64
      %p271 = pneg %p61
      %s272 = smul.u32 32, %s17
      %p273 = scmp.lt.s32.totalorder %s272, 127
      %s274 = scalar_select %p273, %s272, 127
      %s275 = smul.addr %s274, 2
      %s276 = smul.addr %s275, 4
      %s277 = scalar_lea.vmem %s2, %s276
      %p278 = pneg %p90
      %p279 = pneg %p87
      %s280 = smul.u32 32, %s17
      %p281 = scmp.lt.s32.totalorder %s280, 127
      %s282 = scalar_select %p281, %s280, 127
      %s283 = smul.addr %s282, 2
      %s284 = smul.addr %s283, 4
      %s285 = scalar_lea.vmem %s3, %s284
      %p286 = pneg %p116
      %p287 = pneg %p113
      %p288 = pneg %p137
      %p289 = pneg %p134
      %p290 = pneg %p158
      %p291 = pneg %p155
      %p292 = pneg %p184
      %p293 = pneg %p181
      %s294 = smul.u32 32, %s17
      %p295 = scmp.lt.s32.totalorder %s294, 127
      %s296 = scalar_select %p295, %s294, 127
      %s297 = smul.addr %s296, 8
      %s298 = scalar_lea.vmem %s6, %s297
      %s299 = smul.u32 32, %s17
      %p300 = scmp.lt.s32.totalorder %s299, 127
      %s301 = scalar_select %p300, %s299, 127
      %s302 = smul.addr %s301, 2
      %s303 = smul.addr %s302, 4
      %s304 = scalar_lea.vmem %s0, %s303
      %s305 = smul.u32 32, %s17
      %s306 = smul.u32 32, %s17
      %p307 = scmp.lt.s32.totalorder %s306, 127
      %s308 = scalar_select %p307, %s306, 127
      %s309 = smul.addr %s308, 2
      %s310 = smul.addr %s309, 4
      %s311 = scalar_lea.vmem %s1, %s310
      %s312 = smul.u32 32, %s17
      %s313 = smul.u32 32, %s17
      %p314 = scmp.lt.s32.totalorder %s313, 127
      %s315 = scalar_select %p314, %s313, 127
      %s316 = smul.addr %s315, 2
      %s317 = smul.addr %s316, 4
      %s318 = scalar_lea.vmem %s2, %s317
      %s319 = smul.u32 32, %s17
      %s320 = smul.u32 32, %s17
      %p321 = scmp.lt.s32.totalorder %s320, 127
      %s322 = scalar_select %p321, %s320, 127
      %s323 = smul.addr %s322, 2
      %s324 = smul.addr %s323, 4
      %s325 = scalar_lea.vmem %s3, %s324
      %s326 = smul.u32 32, %s17
      %s327 = smul.u32 32, %s17
      %p328 = scmp.lt.s32.totalorder %s327, 127
      %s329 = scalar_select %p328, %s327, 127
      %s330 = smul.addr %s329, 8
      %s331 = scalar_lea.vmem %s6, %s330
      %s332 = smul.u32 32, %s17
      %v334 = vld [vmem:[%s304] sm:$0xff]
      %v335 = vld [vmem:[%s304 + $0x8] sm:$0xff]
      %v336 = vld [vmem:[%s304 + $0x10] sm:$0xff]
      %v337 = vld [vmem:[%s304 + $0x18] sm:$0xff]
      %v338 = vld [vmem:[%s304 + $0x20] sm:$0xff]
      %v339 = vld [vmem:[%s304 + $0x28] sm:$0xff]
      %v340 = vld [vmem:[%s304 + $0x30] sm:$0xff]
      %v341 = vld [vmem:[%s304 + $0x38] sm:$0xff]
      %v342 = vld [vmem:[%s304 + $0x40] sm:$0xff]
      %v343 = vld [vmem:[%s304 + $0x48] sm:$0xff]
      %v344 = vld [vmem:[%s304 + $0x50] sm:$0xff]
      %v345 = vld [vmem:[%s304 + $0x58] sm:$0xff]
      %v346 = vld [vmem:[%s304 + $0x60] sm:$0xff]
      %v347 = vld [vmem:[%s304 + $0x68] sm:$0xff]
      %v348 = vld [vmem:[%s304 + $0x70] sm:$0xff]
      %v349 = vld [vmem:[%s304 + $0x78] sm:$0xff]
      %v350 = vld [vmem:[%s304 + $0x80] sm:$0xff]
      %v351 = vld [vmem:[%s304 + $0x88] sm:$0xff]
      %v352 = vld [vmem:[%s304 + $0x90] sm:$0xff]
      %v353 = vld [vmem:[%s304 + $0x98] sm:$0xff]
      %v354 = vld [vmem:[%s304 + $0xa0] sm:$0xff]
      %v355 = vld [vmem:[%s304 + $0xa8] sm:$0xff]
      %v356 = vld [vmem:[%s304 + $0xb0] sm:$0xff]
      %v357 = vld [vmem:[%s304 + $0xb8] sm:$0xff]
      %v358 = vld [vmem:[%s304 + $0xc0] sm:$0xff]
      %v359 = vld [vmem:[%s304 + $0xc8] sm:$0xff]
      %v360 = vld [vmem:[%s304 + $0xd0] sm:$0xff]
      %v361 = vld [vmem:[%s304 + $0xd8] sm:$0xff]
      %v362 = vld [vmem:[%s304 + $0xe0] sm:$0xff]
      %v363 = vld [vmem:[%s304 + $0xe8] sm:$0xff]
      %v364 = vld [vmem:[%s304 + $0xf0] sm:$0xff]
      %v365 = vld [vmem:[%s304 + $0xf8] sm:$0xff]
      %v366 = vld [vmem:[%s4] sm:$0xf]
      %v367 = vld [vmem:[%s4 + $0x4] sm:$0xf]
      %v368 = vld [vmem:[%s4 + $0x8] sm:$0xf]
      %v369 = vld [vmem:[%s4 + $0xc] sm:$0xf]
      %v370 = vld [vmem:[%s4 + $0x10] sm:$0xf]
      %v371 = vld [vmem:[%s4 + $0x14] sm:$0xf]
      %v372 = vld [vmem:[%s4 + $0x18] sm:$0xf]
      %v373 = vld [vmem:[%s4 + $0x1c] sm:$0xf]
      %v374 = vld [vmem:[%s4 + $0x20] sm:$0xf]
      %v375 = vld [vmem:[%s4 + $0x24] sm:$0xf]
      %v376 = vld [vmem:[%s4 + $0x28] sm:$0xf]
      %v377 = vld [vmem:[%s4 + $0x2c] sm:$0xf]
      %v378 = vld [vmem:[%s4 + $0x30] sm:$0xf]
      %v379 = vld [vmem:[%s4 + $0x34] sm:$0xf]
      %v380 = vld [vmem:[%s4 + $0x38] sm:$0xf]
      %v381 = vld [vmem:[%s4 + $0x3c] sm:$0xf]
      %v382 = vld [vmem:[%s4 + $0x40] sm:$0xf]
      %v383 = vld [vmem:[%s4 + $0x44] sm:$0xf]
      %v384 = vld [vmem:[%s4 + $0x48] sm:$0xf]
      %v385 = vld [vmem:[%s4 + $0x4c] sm:$0xf]
      %v386 = vld [vmem:[%s4 + $0x50] sm:$0xf]
      %v387 = vld [vmem:[%s4 + $0x54] sm:$0xf]
      %v388 = vld [vmem:[%s4 + $0x58] sm:$0xf]
      %v389 = vld [vmem:[%s4 + $0x5c] sm:$0xf]
      %v390 = vld [vmem:[%s4 + $0x60] sm:$0xf]
      %v391 = vld [vmem:[%s4 + $0x64] sm:$0xf]
      %v392 = vld [vmem:[%s4 + $0x68] sm:$0xf]
      %v393 = vld [vmem:[%s4 + $0x6c] sm:$0xf]
      %v394 = vld [vmem:[%s4 + $0x70] sm:$0xf]
      %v395 = vld [vmem:[%s4 + $0x74] sm:$0xf]
      %v396 = vld [vmem:[%s4 + $0x78] sm:$0xf]
      %v397 = vld [vmem:[%s4 + $0x7c] sm:$0xf]
      %v430 = vunpack.c.l.b16 %v334
      %v431 = vunpack.c.h.b16 %v334
      %v432 = vunpack.c.l.b16 %v335
      %v433 = vunpack.c.h.b16 %v335
      %v434 = vunpack.c.l.b16 %v336
      %v435 = vunpack.c.h.b16 %v336
      %v436 = vunpack.c.l.b16 %v337
      %v437 = vunpack.c.h.b16 %v337
      %v438 = vunpack.c.l.b16 %v338
      %v439 = vunpack.c.h.b16 %v338
      %v440 = vunpack.c.l.b16 %v339
      %v441 = vunpack.c.h.b16 %v339
      %v442 = vunpack.c.l.b16 %v340
      %v443 = vunpack.c.h.b16 %v340
      %v444 = vunpack.c.l.b16 %v341
      %v445 = vunpack.c.h.b16 %v341
      %v446 = vunpack.c.l.b16 %v342
      %v447 = vunpack.c.h.b16 %v342
      %v448 = vunpack.c.l.b16 %v343
      %v449 = vunpack.c.h.b16 %v343
      %v450 = vunpack.c.l.b16 %v344
      %v451 = vunpack.c.h.b16 %v344
      %v452 = vunpack.c.l.b16 %v345
      %v453 = vunpack.c.h.b16 %v345
      %v454 = vunpack.c.l.b16 %v346
      %v455 = vunpack.c.h.b16 %v346
      %v456 = vunpack.c.l.b16 %v347
      %v457 = vunpack.c.h.b16 %v347
      %v458 = vunpack.c.l.b16 %v348
      %v459 = vunpack.c.h.b16 %v348
      %v460 = vunpack.c.l.b16 %v349
      %v461 = vunpack.c.h.b16 %v349
      %v462 = vunpack.c.l.b16 %v350
      %v463 = vunpack.c.h.b16 %v350
      %v464 = vunpack.c.l.b16 %v351
      %v465 = vunpack.c.h.b16 %v351
      %v466 = vunpack.c.l.b16 %v352
      %v467 = vunpack.c.h.b16 %v352
      %v468 = vunpack.c.l.b16 %v353
      %v469 = vunpack.c.h.b16 %v353
      %v470 = vunpack.c.l.b16 %v354
      %v471 = vunpack.c.h.b16 %v354
      %v472 = vunpack.c.l.b16 %v355
      %v473 = vunpack.c.h.b16 %v355
      %v474 = vunpack.c.l.b16 %v356
      %v475 = vunpack.c.h.b16 %v356
      %v476 = vunpack.c.l.b16 %v357
      %v477 = vunpack.c.h.b16 %v357
      %v478 = vunpack.c.l.b16 %v358
      %v479 = vunpack.c.h.b16 %v358
      %v480 = vunpack.c.l.b16 %v359
      %v481 = vunpack.c.h.b16 %v359
      %v482 = vunpack.c.l.b16 %v360
      %v483 = vunpack.c.h.b16 %v360
      %v484 = vunpack.c.l.b16 %v361
      %v485 = vunpack.c.h.b16 %v361
      %v486 = vunpack.c.l.b16 %v362
      %v487 = vunpack.c.h.b16 %v362
      %v488 = vunpack.c.l.b16 %v363
      %v489 = vunpack.c.h.b16 %v363
      %v490 = vunpack.c.l.b16 %v364
      %v491 = vunpack.c.h.b16 %v364
      %v492 = vunpack.c.l.b16 %v365
      %v493 = vunpack.c.h.b16 %v365
      %v494 = vpack.c.b16 %v432, %v430
      %v495 = vpack.c.b16 %v433, %v431
      %v496 = vpack.c.b16 %v436, %v434
      %v497 = vpack.c.b16 %v437, %v435
      %v498 = vpack.c.b16 %v440, %v438
      %v499 = vpack.c.b16 %v441, %v439
      %v500 = vpack.c.b16 %v444, %v442
      %v501 = vpack.c.b16 %v445, %v443
      %v502 = vpack.c.b16 %v448, %v446
      %v503 = vpack.c.b16 %v449, %v447
      %v504 = vpack.c.b16 %v452, %v450
      %v505 = vpack.c.b16 %v453, %v451
      %v506 = vpack.c.b16 %v456, %v454
      %v507 = vpack.c.b16 %v457, %v455
      %v508 = vpack.c.b16 %v460, %v458
      %v509 = vpack.c.b16 %v461, %v459
      %v510 = vpack.c.b16 %v464, %v462
      %v511 = vpack.c.b16 %v465, %v463
      %v512 = vpack.c.b16 %v468, %v466
      %v513 = vpack.c.b16 %v469, %v467
      %v514 = vpack.c.b16 %v472, %v470
      %v515 = vpack.c.b16 %v473, %v471
      %v516 = vpack.c.b16 %v476, %v474
      %v517 = vpack.c.b16 %v477, %v475
      %v518 = vpack.c.b16 %v480, %v478
      %v519 = vpack.c.b16 %v481, %v479
      %v520 = vpack.c.b16 %v484, %v482
      %v521 = vpack.c.b16 %v485, %v483
      %v522 = vpack.c.b16 %v488, %v486
      %v523 = vpack.c.b16 %v489, %v487
      %v524 = vpack.c.b16 %v492, %v490
      %v525 = vpack.c.b16 %v493, %v491
      %v590 = vunpack.c.l.b16 %v366
      %v591 = vunpack.c.l.b16 %v367
      %v592 = vunpack.c.l.b16 %v368
      %v593 = vunpack.c.l.b16 %v369
      %v594 = vunpack.c.l.b16 %v370
      %v595 = vunpack.c.l.b16 %v371
      %v596 = vunpack.c.l.b16 %v372
      %v597 = vunpack.c.l.b16 %v373
      %v598 = vunpack.c.l.b16 %v374
      %v599 = vunpack.c.l.b16 %v375
      %v600 = vunpack.c.l.b16 %v376
      %v601 = vunpack.c.l.b16 %v377
      %v602 = vunpack.c.l.b16 %v378
      %v603 = vunpack.c.l.b16 %v379
      %v604 = vunpack.c.l.b16 %v380
      %v605 = vunpack.c.l.b16 %v381
      %v606 = vunpack.c.l.b16 %v382
      %v607 = vunpack.c.l.b16 %v383
      %v608 = vunpack.c.l.b16 %v384
      %v609 = vunpack.c.l.b16 %v385
      %v610 = vunpack.c.l.b16 %v386
      %v611 = vunpack.c.l.b16 %v387
      %v612 = vunpack.c.l.b16 %v388
      %v613 = vunpack.c.l.b16 %v389
      %v614 = vunpack.c.l.b16 %v390
      %v615 = vunpack.c.l.b16 %v391
      %v616 = vunpack.c.l.b16 %v392
      %v617 = vunpack.c.l.b16 %v393
      %v618 = vunpack.c.l.b16 %v394
      %v619 = vunpack.c.l.b16 %v395
      %v620 = vunpack.c.l.b16 %v396
      %v621 = vunpack.c.l.b16 %v397
      %v622 = vpack.c.b16 %v591, %v590
      %v623 = vpack.c.b16 %v593, %v592
      %v624 = vpack.c.b16 %v595, %v594
      %v625 = vpack.c.b16 %v597, %v596
      %v626 = vpack.c.b16 %v599, %v598
      %v627 = vpack.c.b16 %v601, %v600
      %v628 = vpack.c.b16 %v603, %v602
      %v629 = vpack.c.b16 %v605, %v604
      %v630 = vpack.c.b16 %v607, %v606
      %v631 = vpack.c.b16 %v609, %v608
      %v632 = vpack.c.b16 %v611, %v610
      %v633 = vpack.c.b16 %v613, %v612
      %v634 = vpack.c.b16 %v615, %v614
      %v635 = vpack.c.b16 %v617, %v616
      %v636 = vpack.c.b16 %v619, %v618
      %v637 = vpack.c.b16 %v621, %v620
      %654 = vmatprep.subr.bf16.mxu0 0
      %655 = vmatpush1.bf16.msra.mxu0 %v629
      %656 = vmatprep.subr.bf16.mxu0 0
      %657 = vmatpush1.bf16.msra.mxu0 %v628
      %658 = vmatprep.subr.bf16.mxu0 0
      %659 = vmatpush1.bf16.msra.mxu0 %v627
      %660 = vmatprep.subr.bf16.mxu0 0
      %661 = vmatpush1.bf16.msra.mxu0 %v626
      %662 = vmatprep.subr.bf16.mxu0 0
      %663 = vmatpush1.bf16.msra.mxu0 %v625
      %664 = vmatprep.subr.bf16.mxu0 0
      %665 = vmatpush1.bf16.msra.mxu0 %v624
      %666 = vmatprep.subr.bf16.mxu0 0
      %667 = vmatpush1.bf16.msra.mxu0 %v623
      %668 = vmatprep.subr.bf16.mxu0 0
      %669 = vmatpush1.bf16.msra.mxu0 %v622
      %670 = vmatprep.subr.bf16.mxu0 0
      %671 = vmatpush2.bf16.msra.mxu0 %v637
      %672 = vmatprep.subr.bf16.mxu0 0
      %673 = vmatpush2.bf16.msra.mxu0 %v636
      %674 = vmatprep.subr.bf16.mxu0 0
      %675 = vmatpush2.bf16.msra.mxu0 %v635
      %676 = vmatprep.subr.bf16.mxu0 0
      %677 = vmatpush2.bf16.msra.mxu0 %v634
      %678 = vmatprep.subr.bf16.mxu0 0
      %679 = vmatpush2.bf16.msra.mxu0 %v633
      %680 = vmatprep.subr.bf16.mxu0 0
      %681 = vmatpush2.bf16.msra.mxu0 %v632
      %682 = vmatprep.subr.bf16.mxu0 0
      %683 = vmatpush2.bf16.msra.mxu0 %v631
      %684 = vmatprep.subr.bf16.mxu0 0
      %685 = vmatpush2.bf16.msra.mxu0 %v630
      %686 = vmatprep.mubr.bf16.mxu0 %v495
      %687 = vmatmul.mubr.bf16.gmra.mxu0 %v494
      %v688 = vpop.f32.mrf.mxu0
      %v689 = vadd.f32 0.0, %v688
      %v690 = vpop.f32.mrf.mxu0
      %v691 = vpop.f32.mrf.mxu0
      %v692 = vadd.f32 0.0, %v691
      %v693 = vpop.f32.mrf.mxu0
      %694 = vmatprep.mubr.bf16.mxu0 %v497
      %695 = vmatmul.mubr.bf16.gmra.mxu0 %v496
      %v696 = vpop.f32.mrf.mxu0
      %v697 = vadd.f32 0.0, %v696
      %v698 = vpop.f32.mrf.mxu0
      %v699 = vpop.f32.mrf.mxu0
      %v700 = vadd.f32 0.0, %v699
      %v701 = vpop.f32.mrf.mxu0
      %702 = vmatprep.mubr.bf16.mxu0 %v499
      %703 = vmatmul.mubr.bf16.gmra.mxu0 %v498
      %v704 = vpop.f32.mrf.mxu0
      %v705 = vadd.f32 0.0, %v704
      %v706 = vpop.f32.mrf.mxu0
      %v707 = vpop.f32.mrf.mxu0
      %v708 = vadd.f32 0.0, %v707
      %v709 = vpop.f32.mrf.mxu0
      %710 = vmatprep.mubr.bf16.mxu0 %v501
      %711 = vmatmul.mubr.bf16.gmra.mxu0 %v500
      %v712 = vpop.f32.mrf.mxu0
      %v713 = vadd.f32 0.0, %v712
      %v714 = vpop.f32.mrf.mxu0
      %v715 = vpop.f32.mrf.mxu0
      %v716 = vadd.f32 0.0, %v715
      %v717 = vpop.f32.mrf.mxu0
      %718 = vmatprep.mubr.bf16.mxu0 %v503
      %719 = vmatmul.mubr.bf16.gmra.mxu0 %v502
      %v720 = vpop.f32.mrf.mxu0
      %v721 = vadd.f32 0.0, %v720
      %v722 = vpop.f32.mrf.mxu0
      %v723 = vpop.f32.mrf.mxu0
      %v724 = vadd.f32 0.0, %v723
      %v725 = vpop.f32.mrf.mxu0
      %726 = vmatprep.mubr.bf16.mxu0 %v505
      %727 = vmatmul.mubr.bf16.gmra.mxu0 %v504
      %v728 = vpop.f32.mrf.mxu0
      %v729 = vadd.f32 0.0, %v728
      %v730 = vpop.f32.mrf.mxu0
      %v731 = vpop.f32.mrf.mxu0
      %v732 = vadd.f32 0.0, %v731
      %v733 = vpop.f32.mrf.mxu0
      %734 = vmatprep.mubr.bf16.mxu0 %v507
      %735 = vmatmul.mubr.bf16.gmra.mxu0 %v506
      %v736 = vpop.f32.mrf.mxu0
      %v737 = vadd.f32 0.0, %v736
      %v738 = vpop.f32.mrf.mxu0
      %v739 = vpop.f32.mrf.mxu0
      %v740 = vadd.f32 0.0, %v739
      %v741 = vpop.f32.mrf.mxu0
      %742 = vmatprep.mubr.bf16.mxu0 %v509
      %743 = vmatmul.mubr.bf16.gmra.mxu0 %v508
      %v744 = vpop.f32.mrf.mxu0
      %v745 = vadd.f32 0.0, %v744
      %v746 = vpop.f32.mrf.mxu0
      %v747 = vpop.f32.mrf.mxu0
      %v748 = vadd.f32 0.0, %v747
      %v749 = vpop.f32.mrf.mxu0
      %750 = vmatprep.mubr.bf16.mxu0 %v511
      %751 = vmatmul.mubr.bf16.gmra.mxu0 %v510
      %v752 = vpop.f32.mrf.mxu0
      %v753 = vadd.f32 0.0, %v752
      %v754 = vpop.f32.mrf.mxu0
      %v755 = vpop.f32.mrf.mxu0
      %v756 = vadd.f32 0.0, %v755
      %v757 = vpop.f32.mrf.mxu0
      %758 = vmatprep.mubr.bf16.mxu0 %v513
      %759 = vmatmul.mubr.bf16.gmra.mxu0 %v512
      %v760 = vpop.f32.mrf.mxu0
      %v761 = vadd.f32 0.0, %v760
      %v762 = vpop.f32.mrf.mxu0
      %v763 = vpop.f32.mrf.mxu0
      %v764 = vadd.f32 0.0, %v763
      %v765 = vpop.f32.mrf.mxu0
      %766 = vmatprep.mubr.bf16.mxu0 %v515
      %767 = vmatmul.mubr.bf16.gmra.mxu0 %v514
      %v768 = vpop.f32.mrf.mxu0
      %v769 = vadd.f32 0.0, %v768
      %v770 = vpop.f32.mrf.mxu0
      %v771 = vpop.f32.mrf.mxu0
      %v772 = vadd.f32 0.0, %v771
      %v773 = vpop.f32.mrf.mxu0
      %774 = vmatprep.mubr.bf16.mxu0 %v517
      %775 = vmatmul.mubr.bf16.gmra.mxu0 %v516
      %v776 = vpop.f32.mrf.mxu0
      %v777 = vadd.f32 0.0, %v776
      %v778 = vpop.f32.mrf.mxu0
      %v779 = vpop.f32.mrf.mxu0
      %v780 = vadd.f32 0.0, %v779
      %v781 = vpop.f32.mrf.mxu0
      %782 = vmatprep.mubr.bf16.mxu0 %v519
      %783 = vmatmul.mubr.bf16.gmra.mxu0 %v518
      %v784 = vpop.f32.mrf.mxu0
      %v785 = vadd.f32 0.0, %v784
      %v786 = vpop.f32.mrf.mxu0
      %v787 = vpop.f32.mrf.mxu0
      %v788 = vadd.f32 0.0, %v787
      %v789 = vpop.f32.mrf.mxu0
      %790 = vmatprep.mubr.bf16.mxu0 %v521
      %791 = vmatmul.mubr.bf16.gmra.mxu0 %v520
      %v792 = vpop.f32.mrf.mxu0
      %v793 = vadd.f32 0.0, %v792
      %v794 = vpop.f32.mrf.mxu0
      %v795 = vpop.f32.mrf.mxu0
      %v796 = vadd.f32 0.0, %v795
      %v797 = vpop.f32.mrf.mxu0
      %798 = vmatprep.mubr.bf16.mxu0 %v523
      %799 = vmatmul.mubr.bf16.gmra.mxu0 %v522
      %v800 = vpop.f32.mrf.mxu0
      %v801 = vadd.f32 0.0, %v800
      %v802 = vpop.f32.mrf.mxu0
      %v803 = vpop.f32.mrf.mxu0
      %v804 = vadd.f32 0.0, %v803
      %v805 = vpop.f32.mrf.mxu0
      %806 = vmatprep.mubr.bf16.mxu0 %v525
      %807 = vmatmul.mubr.bf16.gmra.mxu0 %v524
      %v808 = vpop.f32.mrf.mxu0
      %v809 = vadd.f32 0.0, %v808
      %v810 = vpop.f32.mrf.mxu0
      %v811 = vpop.f32.mrf.mxu0
      %v812 = vadd.f32 0.0, %v811
      %v813 = vpop.f32.mrf.mxu0
      %814 = vdwg.mxu0
      %v815 = vld [vmem:[%s311] sm:$0xff]
      %v816 = vld [vmem:[%s311 + $0x8] sm:$0xff]
      %v817 = vld [vmem:[%s311 + $0x10] sm:$0xff]
      %v818 = vld [vmem:[%s311 + $0x18] sm:$0xff]
      %v819 = vld [vmem:[%s311 + $0x20] sm:$0xff]
      %v820 = vld [vmem:[%s311 + $0x28] sm:$0xff]
      %v821 = vld [vmem:[%s311 + $0x30] sm:$0xff]
      %v822 = vld [vmem:[%s311 + $0x38] sm:$0xff]
      %v823 = vld [vmem:[%s311 + $0x40] sm:$0xff]
      %v824 = vld [vmem:[%s311 + $0x48] sm:$0xff]
      %v825 = vld [vmem:[%s311 + $0x50] sm:$0xff]
      %v826 = vld [vmem:[%s311 + $0x58] sm:$0xff]
      %v827 = vld [vmem:[%s311 + $0x60] sm:$0xff]
      %v828 = vld [vmem:[%s311 + $0x68] sm:$0xff]
      %v829 = vld [vmem:[%s311 + $0x70] sm:$0xff]
      %v830 = vld [vmem:[%s311 + $0x78] sm:$0xff]
      %v831 = vld [vmem:[%s311 + $0x80] sm:$0xff]
      %v832 = vld [vmem:[%s311 + $0x88] sm:$0xff]
      %v833 = vld [vmem:[%s311 + $0x90] sm:$0xff]
      %v834 = vld [vmem:[%s311 + $0x98] sm:$0xff]
      %v835 = vld [vmem:[%s311 + $0xa0] sm:$0xff]
      %v836 = vld [vmem:[%s311 + $0xa8] sm:$0xff]
      %v837 = vld [vmem:[%s311 + $0xb0] sm:$0xff]
      %v838 = vld [vmem:[%s311 + $0xb8] sm:$0xff]
      %v839 = vld [vmem:[%s311 + $0xc0] sm:$0xff]
      %v840 = vld [vmem:[%s311 + $0xc8] sm:$0xff]
      %v841 = vld [vmem:[%s311 + $0xd0] sm:$0xff]
      %v842 = vld [vmem:[%s311 + $0xd8] sm:$0xff]
      %v843 = vld [vmem:[%s311 + $0xe0] sm:$0xff]
      %v844 = vld [vmem:[%s311 + $0xe8] sm:$0xff]
      %v845 = vld [vmem:[%s311 + $0xf0] sm:$0xff]
      %v846 = vld [vmem:[%s311 + $0xf8] sm:$0xff]
      %v879 = vunpack.c.l.b16 %v815
      %v880 = vunpack.c.h.b16 %v815
      %v881 = vunpack.c.l.b16 %v816
      %v882 = vunpack.c.h.b16 %v816
      %v883 = vunpack.c.l.b16 %v817
      %v884 = vunpack.c.h.b16 %v817
      %v885 = vunpack.c.l.b16 %v818
      %v886 = vunpack.c.h.b16 %v818
      %v887 = vunpack.c.l.b16 %v819
      %v888 = vunpack.c.h.b16 %v819
      %v889 = vunpack.c.l.b16 %v820
      %v890 = vunpack.c.h.b16 %v820
      %v891 = vunpack.c.l.b16 %v821
      %v892 = vunpack.c.h.b16 %v821
      %v893 = vunpack.c.l.b16 %v822
      %v894 = vunpack.c.h.b16 %v822
      %v895 = vunpack.c.l.b16 %v823
      %v896 = vunpack.c.h.b16 %v823
      %v897 = vunpack.c.l.b16 %v824
      %v898 = vunpack.c.h.b16 %v824
      %v899 = vunpack.c.l.b16 %v825
      %v900 = vunpack.c.h.b16 %v825
      %v901 = vunpack.c.l.b16 %v826
      %v902 = vunpack.c.h.b16 %v826
      %v903 = vunpack.c.l.b16 %v827
      %v904 = vunpack.c.h.b16 %v827
      %v905 = vunpack.c.l.b16 %v828
      %v906 = vunpack.c.h.b16 %v828
      %v907 = vunpack.c.l.b16 %v829
      %v908 = vunpack.c.h.b16 %v829
      %v909 = vunpack.c.l.b16 %v830
      %v910 = vunpack.c.h.b16 %v830
      %v911 = vunpack.c.l.b16 %v831
      %v912 = vunpack.c.h.b16 %v831
      %v913 = vunpack.c.l.b16 %v832
      %v914 = vunpack.c.h.b16 %v832
      %v915 = vunpack.c.l.b16 %v833
      %v916 = vunpack.c.h.b16 %v833
      %v917 = vunpack.c.l.b16 %v834
      %v918 = vunpack.c.h.b16 %v834
      %v919 = vunpack.c.l.b16 %v835
      %v920 = vunpack.c.h.b16 %v835
      %v921 = vunpack.c.l.b16 %v836
      %v922 = vunpack.c.h.b16 %v836
      %v923 = vunpack.c.l.b16 %v837
      %v924 = vunpack.c.h.b16 %v837
      %v925 = vunpack.c.l.b16 %v838
      %v926 = vunpack.c.h.b16 %v838
      %v927 = vunpack.c.l.b16 %v839
      %v928 = vunpack.c.h.b16 %v839
      %v929 = vunpack.c.l.b16 %v840
      %v930 = vunpack.c.h.b16 %v840
      %v931 = vunpack.c.l.b16 %v841
      %v932 = vunpack.c.h.b16 %v841
      %v933 = vunpack.c.l.b16 %v842
      %v934 = vunpack.c.h.b16 %v842
      %v935 = vunpack.c.l.b16 %v843
      %v936 = vunpack.c.h.b16 %v843
      %v937 = vunpack.c.l.b16 %v844
      %v938 = vunpack.c.h.b16 %v844
      %v939 = vunpack.c.l.b16 %v845
      %v940 = vunpack.c.h.b16 %v845
      %v941 = vunpack.c.l.b16 %v846
      %v942 = vunpack.c.h.b16 %v846
      %v943 = vpack.c.b16 %v881, %v879
      %v944 = vpack.c.b16 %v882, %v880
      %v945 = vpack.c.b16 %v885, %v883
      %v946 = vpack.c.b16 %v886, %v884
      %v947 = vpack.c.b16 %v889, %v887
      %v948 = vpack.c.b16 %v890, %v888
      %v949 = vpack.c.b16 %v893, %v891
      %v950 = vpack.c.b16 %v894, %v892
      %v951 = vpack.c.b16 %v897, %v895
      %v952 = vpack.c.b16 %v898, %v896
      %v953 = vpack.c.b16 %v901, %v899
      %v954 = vpack.c.b16 %v902, %v900
      %v955 = vpack.c.b16 %v905, %v903
      %v956 = vpack.c.b16 %v906, %v904
      %v957 = vpack.c.b16 %v909, %v907
      %v958 = vpack.c.b16 %v910, %v908
      %v959 = vpack.c.b16 %v913, %v911
      %v960 = vpack.c.b16 %v914, %v912
      %v961 = vpack.c.b16 %v917, %v915
      %v962 = vpack.c.b16 %v918, %v916
      %v963 = vpack.c.b16 %v921, %v919
      %v964 = vpack.c.b16 %v922, %v920
      %v965 = vpack.c.b16 %v925, %v923
      %v966 = vpack.c.b16 %v926, %v924
      %v967 = vpack.c.b16 %v929, %v927
      %v968 = vpack.c.b16 %v930, %v928
      %v969 = vpack.c.b16 %v933, %v931
      %v970 = vpack.c.b16 %v934, %v932
      %v971 = vpack.c.b16 %v937, %v935
      %v972 = vpack.c.b16 %v938, %v936
      %v973 = vpack.c.b16 %v941, %v939
      %v974 = vpack.c.b16 %v942, %v940
      %1007 = vmatprep.subr.bf16.mxu0 0
      %1008 = vmatpush1.bf16.msra.mxu0 %v629
      %1009 = vmatprep.subr.bf16.mxu0 0
      %1010 = vmatpush1.bf16.msra.mxu0 %v628
      %1011 = vmatprep.subr.bf16.mxu0 0
      %1012 = vmatpush1.bf16.msra.mxu0 %v627
      %1013 = vmatprep.subr.bf16.mxu0 0
      %1014 = vmatpush1.bf16.msra.mxu0 %v626
      %1015 = vmatprep.subr.bf16.mxu0 0
      %1016 = vmatpush1.bf16.msra.mxu0 %v625
      %1017 = vmatprep.subr.bf16.mxu0 0
      %1018 = vmatpush1.bf16.msra.mxu0 %v624
      %1019 = vmatprep.subr.bf16.mxu0 0
      %1020 = vmatpush1.bf16.msra.mxu0 %v623
      %1021 = vmatprep.subr.bf16.mxu0 0
      %1022 = vmatpush1.bf16.msra.mxu0 %v622
      %1023 = vmatprep.subr.bf16.mxu0 0
      %1024 = vmatpush2.bf16.msra.mxu0 %v637
      %1025 = vmatprep.subr.bf16.mxu0 0
      %1026 = vmatpush2.bf16.msra.mxu0 %v636
      %1027 = vmatprep.subr.bf16.mxu0 0
      %1028 = vmatpush2.bf16.msra.mxu0 %v635
      %1029 = vmatprep.subr.bf16.mxu0 0
      %1030 = vmatpush2.bf16.msra.mxu0 %v634
      %1031 = vmatprep.subr.bf16.mxu0 0
      %1032 = vmatpush2.bf16.msra.mxu0 %v633
      %1033 = vmatprep.subr.bf16.mxu0 0
      %1034 = vmatpush2.bf16.msra.mxu0 %v632
      %1035 = vmatprep.subr.bf16.mxu0 0
      %1036 = vmatpush2.bf16.msra.mxu0 %v631
      %1037 = vmatprep.subr.bf16.mxu0 0
      %1038 = vmatpush2.bf16.msra.mxu0 %v630
      %1039 = vmatprep.mubr.bf16.mxu0 %v944
      %1040 = vmatmul.mubr.bf16.gmra.mxu0 %v943
      %v1041 = vpop.f32.mrf.mxu0
      %v1042 = vadd.f32 0.0, %v1041
      %v1043 = vpop.f32.mrf.mxu0
      %v1044 = vpop.f32.mrf.mxu0
      %v1045 = vadd.f32 0.0, %v1044
      %v1046 = vpop.f32.mrf.mxu0
      %1047 = vmatprep.mubr.bf16.mxu0 %v946
      %1048 = vmatmul.mubr.bf16.gmra.mxu0 %v945
      %v1049 = vpop.f32.mrf.mxu0
      %v1050 = vadd.f32 0.0, %v1049
      %v1051 = vpop.f32.mrf.mxu0
      %v1052 = vpop.f32.mrf.mxu0
      %v1053 = vadd.f32 0.0, %v1052
      %v1054 = vpop.f32.mrf.mxu0
      %1055 = vmatprep.mubr.bf16.mxu0 %v948
      %1056 = vmatmul.mubr.bf16.gmra.mxu0 %v947
      %v1057 = vpop.f32.mrf.mxu0
      %v1058 = vadd.f32 0.0, %v1057
      %v1059 = vpop.f32.mrf.mxu0
      %v1060 = vpop.f32.mrf.mxu0
      %v1061 = vadd.f32 0.0, %v1060
      %v1062 = vpop.f32.mrf.mxu0
      %1063 = vmatprep.mubr.bf16.mxu0 %v950
      %1064 = vmatmul.mubr.bf16.gmra.mxu0 %v949
      %v1065 = vpop.f32.mrf.mxu0
      %v1066 = vadd.f32 0.0, %v1065
      %v1067 = vpop.f32.mrf.mxu0
      %v1068 = vpop.f32.mrf.mxu0
      %v1069 = vadd.f32 0.0, %v1068
      %v1070 = vpop.f32.mrf.mxu0
      %1071 = vmatprep.mubr.bf16.mxu0 %v952
      %1072 = vmatmul.mubr.bf16.gmra.mxu0 %v951
      %v1073 = vpop.f32.mrf.mxu0
      %v1074 = vadd.f32 0.0, %v1073
      %v1075 = vpop.f32.mrf.mxu0
      %v1076 = vpop.f32.mrf.mxu0
      %v1077 = vadd.f32 0.0, %v1076
      %v1078 = vpop.f32.mrf.mxu0
      %1079 = vmatprep.mubr.bf16.mxu0 %v954
      %1080 = vmatmul.mubr.bf16.gmra.mxu0 %v953
      %v1081 = vpop.f32.mrf.mxu0
      %v1082 = vadd.f32 0.0, %v1081
      %v1083 = vpop.f32.mrf.mxu0
      %v1084 = vpop.f32.mrf.mxu0
      %v1085 = vadd.f32 0.0, %v1084
      %v1086 = vpop.f32.mrf.mxu0
      %1087 = vmatprep.mubr.bf16.mxu0 %v956
      %1088 = vmatmul.mubr.bf16.gmra.mxu0 %v955
      %v1089 = vpop.f32.mrf.mxu0
      %v1090 = vadd.f32 0.0, %v1089
      %v1091 = vpop.f32.mrf.mxu0
      %v1092 = vpop.f32.mrf.mxu0
      %v1093 = vadd.f32 0.0, %v1092
      %v1094 = vpop.f32.mrf.mxu0
      %1095 = vmatprep.mubr.bf16.mxu0 %v958
      %1096 = vmatmul.mubr.bf16.gmra.mxu0 %v957
      %v1097 = vpop.f32.mrf.mxu0
      %v1098 = vadd.f32 0.0, %v1097
      %v1099 = vpop.f32.mrf.mxu0
      %v1100 = vpop.f32.mrf.mxu0
      %v1101 = vadd.f32 0.0, %v1100
      %v1102 = vpop.f32.mrf.mxu0
      %1103 = vmatprep.mubr.bf16.mxu0 %v960
      %1104 = vmatmul.mubr.bf16.gmra.mxu0 %v959
      %v1105 = vpop.f32.mrf.mxu0
      %v1106 = vadd.f32 0.0, %v1105
      %v1107 = vpop.f32.mrf.mxu0
      %v1108 = vpop.f32.mrf.mxu0
      %v1109 = vadd.f32 0.0, %v1108
      %v1110 = vpop.f32.mrf.mxu0
      %1111 = vmatprep.mubr.bf16.mxu0 %v962
      %1112 = vmatmul.mubr.bf16.gmra.mxu0 %v961
      %v1113 = vpop.f32.mrf.mxu0
      %v1114 = vadd.f32 0.0, %v1113
      %v1115 = vpop.f32.mrf.mxu0
      %v1116 = vpop.f32.mrf.mxu0
      %v1117 = vadd.f32 0.0, %v1116
      %v1118 = vpop.f32.mrf.mxu0
      %1119 = vmatprep.mubr.bf16.mxu0 %v964
      %1120 = vmatmul.mubr.bf16.gmra.mxu0 %v963
      %v1121 = vpop.f32.mrf.mxu0
      %v1122 = vadd.f32 0.0, %v1121
      %v1123 = vpop.f32.mrf.mxu0
      %v1124 = vpop.f32.mrf.mxu0
      %v1125 = vadd.f32 0.0, %v1124
      %v1126 = vpop.f32.mrf.mxu0
      %1127 = vmatprep.mubr.bf16.mxu0 %v966
      %1128 = vmatmul.mubr.bf16.gmra.mxu0 %v965
      %v1129 = vpop.f32.mrf.mxu0
      %v1130 = vadd.f32 0.0, %v1129
      %v1131 = vpop.f32.mrf.mxu0
      %v1132 = vpop.f32.mrf.mxu0
      %v1133 = vadd.f32 0.0, %v1132
      %v1134 = vpop.f32.mrf.mxu0
      %1135 = vmatprep.mubr.bf16.mxu0 %v968
      %1136 = vmatmul.mubr.bf16.gmra.mxu0 %v967
      %v1137 = vpop.f32.mrf.mxu0
      %v1138 = vadd.f32 0.0, %v1137
      %v1139 = vpop.f32.mrf.mxu0
      %v1140 = vpop.f32.mrf.mxu0
      %v1141 = vadd.f32 0.0, %v1140
      %v1142 = vpop.f32.mrf.mxu0
      %1143 = vmatprep.mubr.bf16.mxu0 %v970
      %1144 = vmatmul.mubr.bf16.gmra.mxu0 %v969
      %v1145 = vpop.f32.mrf.mxu0
      %v1146 = vadd.f32 0.0, %v1145
      %v1147 = vpop.f32.mrf.mxu0
      %v1148 = vpop.f32.mrf.mxu0
      %v1149 = vadd.f32 0.0, %v1148
      %v1150 = vpop.f32.mrf.mxu0
      %1151 = vmatprep.mubr.bf16.mxu0 %v972
      %1152 = vmatmul.mubr.bf16.gmra.mxu0 %v971
      %v1153 = vpop.f32.mrf.mxu0
      %v1154 = vadd.f32 0.0, %v1153
      %v1155 = vpop.f32.mrf.mxu0
      %v1156 = vpop.f32.mrf.mxu0
      %v1157 = vadd.f32 0.0, %v1156
      %v1158 = vpop.f32.mrf.mxu0
      %1159 = vmatprep.mubr.bf16.mxu0 %v974
      %1160 = vmatmul.mubr.bf16.gmra.mxu0 %v973
      %v1161 = vpop.f32.mrf.mxu0
      %v1162 = vadd.f32 0.0, %v1161
      %v1163 = vpop.f32.mrf.mxu0
      %v1164 = vpop.f32.mrf.mxu0
      %v1165 = vadd.f32 0.0, %v1164
      %v1166 = vpop.f32.mrf.mxu0
      %1167 = vdwg.mxu0
      %v1168 = vmax.f32 %v689, %v1042
      %v1169 = vmax.f32 %v692, %v1045
      %v1170 = vmax.f32 %v697, %v1050
      %v1171 = vmax.f32 %v700, %v1053
      %v1172 = vmax.f32 %v705, %v1058
      %v1173 = vmax.f32 %v708, %v1061
      %v1174 = vmax.f32 %v713, %v1066
      %v1175 = vmax.f32 %v716, %v1069
      %v1176 = vmax.f32 %v721, %v1074
      %v1177 = vmax.f32 %v724, %v1077
      %v1178 = vmax.f32 %v729, %v1082
      %v1179 = vmax.f32 %v732, %v1085
      %v1180 = vmax.f32 %v737, %v1090
      %v1181 = vmax.f32 %v740, %v1093
      %v1182 = vmax.f32 %v745, %v1098
      %v1183 = vmax.f32 %v748, %v1101
      %v1184 = vmax.f32 %v753, %v1106
      %v1185 = vmax.f32 %v756, %v1109
      %v1186 = vmax.f32 %v761, %v1114
      %v1187 = vmax.f32 %v764, %v1117
      %v1188 = vmax.f32 %v769, %v1122
      %v1189 = vmax.f32 %v772, %v1125
      %v1190 = vmax.f32 %v777, %v1130
      %v1191 = vmax.f32 %v780, %v1133
      %v1192 = vmax.f32 %v785, %v1138
      %v1193 = vmax.f32 %v788, %v1141
      %v1194 = vmax.f32 %v793, %v1146
      %v1195 = vmax.f32 %v796, %v1149
      %v1196 = vmax.f32 %v801, %v1154
      %v1197 = vmax.f32 %v804, %v1157
      %v1198 = vmax.f32 %v809, %v1162
      %v1199 = vmax.f32 %v812, %v1165
      %v1200 = vld [vmem:[%s318] sm:$0xff]
      %v1201 = vld [vmem:[%s318 + $0x8] sm:$0xff]
      %v1202 = vld [vmem:[%s318 + $0x10] sm:$0xff]
      %v1203 = vld [vmem:[%s318 + $0x18] sm:$0xff]
      %v1204 = vld [vmem:[%s318 + $0x20] sm:$0xff]
      %v1205 = vld [vmem:[%s318 + $0x28] sm:$0xff]
      %v1206 = vld [vmem:[%s318 + $0x30] sm:$0xff]
      %v1207 = vld [vmem:[%s318 + $0x38] sm:$0xff]
      %v1208 = vld [vmem:[%s318 + $0x40] sm:$0xff]
      %v1209 = vld [vmem:[%s318 + $0x48] sm:$0xff]
      %v1210 = vld [vmem:[%s318 + $0x50] sm:$0xff]
      %v1211 = vld [vmem:[%s318 + $0x58] sm:$0xff]
      %v1212 = vld [vmem:[%s318 + $0x60] sm:$0xff]
      %v1213 = vld [vmem:[%s318 + $0x68] sm:$0xff]
      %v1214 = vld [vmem:[%s318 + $0x70] sm:$0xff]
      %v1215 = vld [vmem:[%s318 + $0x78] sm:$0xff]
      %v1216 = vld [vmem:[%s318 + $0x80] sm:$0xff]
      %v1217 = vld [vmem:[%s318 + $0x88] sm:$0xff]
      %v1218 = vld [vmem:[%s318 + $0x90] sm:$0xff]
      %v1219 = vld [vmem:[%s318 + $0x98] sm:$0xff]
      %v1220 = vld [vmem:[%s318 + $0xa0] sm:$0xff]
      %v1221 = vld [vmem:[%s318 + $0xa8] sm:$0xff]
      %v1222 = vld [vmem:[%s318 + $0xb0] sm:$0xff]
      %v1223 = vld [vmem:[%s318 + $0xb8] sm:$0xff]
      %v1224 = vld [vmem:[%s318 + $0xc0] sm:$0xff]
      %v1225 = vld [vmem:[%s318 + $0xc8] sm:$0xff]
      %v1226 = vld [vmem:[%s318 + $0xd0] sm:$0xff]
      %v1227 = vld [vmem:[%s318 + $0xd8] sm:$0xff]
      %v1228 = vld [vmem:[%s318 + $0xe0] sm:$0xff]
      %v1229 = vld [vmem:[%s318 + $0xe8] sm:$0xff]
      %v1230 = vld [vmem:[%s318 + $0xf0] sm:$0xff]
      %v1231 = vld [vmem:[%s318 + $0xf8] sm:$0xff]
      %v1264 = vunpack.c.l.b16 %v1200
      %v1265 = vunpack.c.h.b16 %v1200
      %v1266 = vunpack.c.l.b16 %v1201
      %v1267 = vunpack.c.h.b16 %v1201
      %v1268 = vunpack.c.l.b16 %v1202
      %v1269 = vunpack.c.h.b16 %v1202
      %v1270 = vunpack.c.l.b16 %v1203
      %v1271 = vunpack.c.h.b16 %v1203
      %v1272 = vunpack.c.l.b16 %v1204
      %v1273 = vunpack.c.h.b16 %v1204
      %v1274 = vunpack.c.l.b16 %v1205
      %v1275 = vunpack.c.h.b16 %v1205
      %v1276 = vunpack.c.l.b16 %v1206
      %v1277 = vunpack.c.h.b16 %v1206
      %v1278 = vunpack.c.l.b16 %v1207
      %v1279 = vunpack.c.h.b16 %v1207
      %v1280 = vunpack.c.l.b16 %v1208
      %v1281 = vunpack.c.h.b16 %v1208
      %v1282 = vunpack.c.l.b16 %v1209
      %v1283 = vunpack.c.h.b16 %v1209
      %v1284 = vunpack.c.l.b16 %v1210
      %v1285 = vunpack.c.h.b16 %v1210
      %v1286 = vunpack.c.l.b16 %v1211
      %v1287 = vunpack.c.h.b16 %v1211
      %v1288 = vunpack.c.l.b16 %v1212
      %v1289 = vunpack.c.h.b16 %v1212
      %v1290 = vunpack.c.l.b16 %v1213
      %v1291 = vunpack.c.h.b16 %v1213
      %v1292 = vunpack.c.l.b16 %v1214
      %v1293 = vunpack.c.h.b16 %v1214
      %v1294 = vunpack.c.l.b16 %v1215
      %v1295 = vunpack.c.h.b16 %v1215
      %v1296 = vunpack.c.l.b16 %v1216
      %v1297 = vunpack.c.h.b16 %v1216
      %v1298 = vunpack.c.l.b16 %v1217
      %v1299 = vunpack.c.h.b16 %v1217
      %v1300 = vunpack.c.l.b16 %v1218
      %v1301 = vunpack.c.h.b16 %v1218
      %v1302 = vunpack.c.l.b16 %v1219
      %v1303 = vunpack.c.h.b16 %v1219
      %v1304 = vunpack.c.l.b16 %v1220
      %v1305 = vunpack.c.h.b16 %v1220
      %v1306 = vunpack.c.l.b16 %v1221
      %v1307 = vunpack.c.h.b16 %v1221
      %v1308 = vunpack.c.l.b16 %v1222
      %v1309 = vunpack.c.h.b16 %v1222
      %v1310 = vunpack.c.l.b16 %v1223
      %v1311 = vunpack.c.h.b16 %v1223
      %v1312 = vunpack.c.l.b16 %v1224
      %v1313 = vunpack.c.h.b16 %v1224
      %v1314 = vunpack.c.l.b16 %v1225
      %v1315 = vunpack.c.h.b16 %v1225
      %v1316 = vunpack.c.l.b16 %v1226
      %v1317 = vunpack.c.h.b16 %v1226
      %v1318 = vunpack.c.l.b16 %v1227
      %v1319 = vunpack.c.h.b16 %v1227
      %v1320 = vunpack.c.l.b16 %v1228
      %v1321 = vunpack.c.h.b16 %v1228
      %v1322 = vunpack.c.l.b16 %v1229
      %v1323 = vunpack.c.h.b16 %v1229
      %v1324 = vunpack.c.l.b16 %v1230
      %v1325 = vunpack.c.h.b16 %v1230
      %v1326 = vunpack.c.l.b16 %v1231
      %v1327 = vunpack.c.h.b16 %v1231
      %v1328 = vpack.c.b16 %v1266, %v1264
      %v1329 = vpack.c.b16 %v1267, %v1265
      %v1330 = vpack.c.b16 %v1270, %v1268
      %v1331 = vpack.c.b16 %v1271, %v1269
      %v1332 = vpack.c.b16 %v1274, %v1272
      %v1333 = vpack.c.b16 %v1275, %v1273
      %v1334 = vpack.c.b16 %v1278, %v1276
      %v1335 = vpack.c.b16 %v1279, %v1277
      %v1336 = vpack.c.b16 %v1282, %v1280
      %v1337 = vpack.c.b16 %v1283, %v1281
      %v1338 = vpack.c.b16 %v1286, %v1284
      %v1339 = vpack.c.b16 %v1287, %v1285
      %v1340 = vpack.c.b16 %v1290, %v1288
      %v1341 = vpack.c.b16 %v1291, %v1289
      %v1342 = vpack.c.b16 %v1294, %v1292
      %v1343 = vpack.c.b16 %v1295, %v1293
      %v1344 = vpack.c.b16 %v1298, %v1296
      %v1345 = vpack.c.b16 %v1299, %v1297
      %v1346 = vpack.c.b16 %v1302, %v1300
      %v1347 = vpack.c.b16 %v1303, %v1301
      %v1348 = vpack.c.b16 %v1306, %v1304
      %v1349 = vpack.c.b16 %v1307, %v1305
      %v1350 = vpack.c.b16 %v1310, %v1308
      %v1351 = vpack.c.b16 %v1311, %v1309
      %v1352 = vpack.c.b16 %v1314, %v1312
      %v1353 = vpack.c.b16 %v1315, %v1313
      %v1354 = vpack.c.b16 %v1318, %v1316
      %v1355 = vpack.c.b16 %v1319, %v1317
      %v1356 = vpack.c.b16 %v1322, %v1320
      %v1357 = vpack.c.b16 %v1323, %v1321
      %v1358 = vpack.c.b16 %v1326, %v1324
      %v1359 = vpack.c.b16 %v1327, %v1325
      %1392 = vmatprep.subr.bf16.mxu0 0
      %1393 = vmatpush1.bf16.msra.mxu0 %v629
      %1394 = vmatprep.subr.bf16.mxu0 0
      %1395 = vmatpush1.bf16.msra.mxu0 %v628
      %1396 = vmatprep.subr.bf16.mxu0 0
      %1397 = vmatpush1.bf16.msra.mxu0 %v627
      %1398 = vmatprep.subr.bf16.mxu0 0
      %1399 = vmatpush1.bf16.msra.mxu0 %v626
      %1400 = vmatprep.subr.bf16.mxu0 0
      %1401 = vmatpush1.bf16.msra.mxu0 %v625
      %1402 = vmatprep.subr.bf16.mxu0 0
      %1403 = vmatpush1.bf16.msra.mxu0 %v624
      %1404 = vmatprep.subr.bf16.mxu0 0
      %1405 = vmatpush1.bf16.msra.mxu0 %v623
      %1406 = vmatprep.subr.bf16.mxu0 0
      %1407 = vmatpush1.bf16.msra.mxu0 %v622
      %1408 = vmatprep.subr.bf16.mxu0 0
      %1409 = vmatpush2.bf16.msra.mxu0 %v637
      %1410 = vmatprep.subr.bf16.mxu0 0
      %1411 = vmatpush2.bf16.msra.mxu0 %v636
      %1412 = vmatprep.subr.bf16.mxu0 0
      %1413 = vmatpush2.bf16.msra.mxu0 %v635
      %1414 = vmatprep.subr.bf16.mxu0 0
      %1415 = vmatpush2.bf16.msra.mxu0 %v634
      %1416 = vmatprep.subr.bf16.mxu0 0
      %1417 = vmatpush2.bf16.msra.mxu0 %v633
      %1418 = vmatprep.subr.bf16.mxu0 0
      %1419 = vmatpush2.bf16.msra.mxu0 %v632
      %1420 = vmatprep.subr.bf16.mxu0 0
      %1421 = vmatpush2.bf16.msra.mxu0 %v631
      %1422 = vmatprep.subr.bf16.mxu0 0
      %1423 = vmatpush2.bf16.msra.mxu0 %v630
      %1424 = vmatprep.mubr.bf16.mxu0 %v1329
      %1425 = vmatmul.mubr.bf16.gmra.mxu0 %v1328
      %v1426 = vpop.f32.mrf.mxu0
      %v1427 = vadd.f32 0.0, %v1426
      %v1428 = vpop.f32.mrf.mxu0
      %v1429 = vpop.f32.mrf.mxu0
      %v1430 = vadd.f32 0.0, %v1429
      %v1431 = vpop.f32.mrf.mxu0
      %1432 = vmatprep.mubr.bf16.mxu0 %v1331
      %1433 = vmatmul.mubr.bf16.gmra.mxu0 %v1330
      %v1434 = vpop.f32.mrf.mxu0
      %v1435 = vadd.f32 0.0, %v1434
      %v1436 = vpop.f32.mrf.mxu0
      %v1437 = vpop.f32.mrf.mxu0
      %v1438 = vadd.f32 0.0, %v1437
      %v1439 = vpop.f32.mrf.mxu0
      %1440 = vmatprep.mubr.bf16.mxu0 %v1333
      %1441 = vmatmul.mubr.bf16.gmra.mxu0 %v1332
      %v1442 = vpop.f32.mrf.mxu0
      %v1443 = vadd.f32 0.0, %v1442
      %v1444 = vpop.f32.mrf.mxu0
      %v1445 = vpop.f32.mrf.mxu0
      %v1446 = vadd.f32 0.0, %v1445
      %v1447 = vpop.f32.mrf.mxu0
      %1448 = vmatprep.mubr.bf16.mxu0 %v1335
      %1449 = vmatmul.mubr.bf16.gmra.mxu0 %v1334
      %v1450 = vpop.f32.mrf.mxu0
      %v1451 = vadd.f32 0.0, %v1450
      %v1452 = vpop.f32.mrf.mxu0
      %v1453 = vpop.f32.mrf.mxu0
      %v1454 = vadd.f32 0.0, %v1453
      %v1455 = vpop.f32.mrf.mxu0
      %1456 = vmatprep.mubr.bf16.mxu0 %v1337
      %1457 = vmatmul.mubr.bf16.gmra.mxu0 %v1336
      %v1458 = vpop.f32.mrf.mxu0
      %v1459 = vadd.f32 0.0, %v1458
      %v1460 = vpop.f32.mrf.mxu0
      %v1461 = vpop.f32.mrf.mxu0
      %v1462 = vadd.f32 0.0, %v1461
      %v1463 = vpop.f32.mrf.mxu0
      %1464 = vmatprep.mubr.bf16.mxu0 %v1339
      %1465 = vmatmul.mubr.bf16.gmra.mxu0 %v1338
      %v1466 = vpop.f32.mrf.mxu0
      %v1467 = vadd.f32 0.0, %v1466
      %v1468 = vpop.f32.mrf.mxu0
      %v1469 = vpop.f32.mrf.mxu0
      %v1470 = vadd.f32 0.0, %v1469
      %v1471 = vpop.f32.mrf.mxu0
      %1472 = vmatprep.mubr.bf16.mxu0 %v1341
      %1473 = vmatmul.mubr.bf16.gmra.mxu0 %v1340
      %v1474 = vpop.f32.mrf.mxu0
      %v1475 = vadd.f32 0.0, %v1474
      %v1476 = vpop.f32.mrf.mxu0
      %v1477 = vpop.f32.mrf.mxu0
      %v1478 = vadd.f32 0.0, %v1477
      %v1479 = vpop.f32.mrf.mxu0
      %1480 = vmatprep.mubr.bf16.mxu0 %v1343
      %1481 = vmatmul.mubr.bf16.gmra.mxu0 %v1342
      %v1482 = vpop.f32.mrf.mxu0
      %v1483 = vadd.f32 0.0, %v1482
      %v1484 = vpop.f32.mrf.mxu0
      %v1485 = vpop.f32.mrf.mxu0
      %v1486 = vadd.f32 0.0, %v1485
      %v1487 = vpop.f32.mrf.mxu0
      %1488 = vmatprep.mubr.bf16.mxu0 %v1345
      %1489 = vmatmul.mubr.bf16.gmra.mxu0 %v1344
      %v1490 = vpop.f32.mrf.mxu0
      %v1491 = vadd.f32 0.0, %v1490
      %v1492 = vpop.f32.mrf.mxu0
      %v1493 = vpop.f32.mrf.mxu0
      %v1494 = vadd.f32 0.0, %v1493
      %v1495 = vpop.f32.mrf.mxu0
      %1496 = vmatprep.mubr.bf16.mxu0 %v1347
      %1497 = vmatmul.mubr.bf16.gmra.mxu0 %v1346
      %v1498 = vpop.f32.mrf.mxu0
      %v1499 = vadd.f32 0.0, %v1498
      %v1500 = vpop.f32.mrf.mxu0
      %v1501 = vpop.f32.mrf.mxu0
      %v1502 = vadd.f32 0.0, %v1501
      %v1503 = vpop.f32.mrf.mxu0
      %1504 = vmatprep.mubr.bf16.mxu0 %v1349
      %1505 = vmatmul.mubr.bf16.gmra.mxu0 %v1348
      %v1506 = vpop.f32.mrf.mxu0
      %v1507 = vadd.f32 0.0, %v1506
      %v1508 = vpop.f32.mrf.mxu0
      %v1509 = vpop.f32.mrf.mxu0
      %v1510 = vadd.f32 0.0, %v1509
      %v1511 = vpop.f32.mrf.mxu0
      %1512 = vmatprep.mubr.bf16.mxu0 %v1351
      %1513 = vmatmul.mubr.bf16.gmra.mxu0 %v1350
      %v1514 = vpop.f32.mrf.mxu0
      %v1515 = vadd.f32 0.0, %v1514
      %v1516 = vpop.f32.mrf.mxu0
      %v1517 = vpop.f32.mrf.mxu0
      %v1518 = vadd.f32 0.0, %v1517
      %v1519 = vpop.f32.mrf.mxu0
      %1520 = vmatprep.mubr.bf16.mxu0 %v1353
      %1521 = vmatmul.mubr.bf16.gmra.mxu0 %v1352
      %v1522 = vpop.f32.mrf.mxu0
      %v1523 = vadd.f32 0.0, %v1522
      %v1524 = vpop.f32.mrf.mxu0
      %v1525 = vpop.f32.mrf.mxu0
      %v1526 = vadd.f32 0.0, %v1525
      %v1527 = vpop.f32.mrf.mxu0
      %1528 = vmatprep.mubr.bf16.mxu0 %v1355
      %1529 = vmatmul.mubr.bf16.gmra.mxu0 %v1354
      %v1530 = vpop.f32.mrf.mxu0
      %v1531 = vadd.f32 0.0, %v1530
      %v1532 = vpop.f32.mrf.mxu0
      %v1533 = vpop.f32.mrf.mxu0
      %v1534 = vadd.f32 0.0, %v1533
      %v1535 = vpop.f32.mrf.mxu0
      %1536 = vmatprep.mubr.bf16.mxu0 %v1357
      %1537 = vmatmul.mubr.bf16.gmra.mxu0 %v1356
      %v1538 = vpop.f32.mrf.mxu0
      %v1539 = vadd.f32 0.0, %v1538
      %v1540 = vpop.f32.mrf.mxu0
      %v1541 = vpop.f32.mrf.mxu0
      %v1542 = vadd.f32 0.0, %v1541
      %v1543 = vpop.f32.mrf.mxu0
      %1544 = vmatprep.mubr.bf16.mxu0 %v1359
      %1545 = vmatmul.mubr.bf16.gmra.mxu0 %v1358
      %v1546 = vpop.f32.mrf.mxu0
      %v1547 = vadd.f32 0.0, %v1546
      %v1548 = vpop.f32.mrf.mxu0
      %v1549 = vpop.f32.mrf.mxu0
      %v1550 = vadd.f32 0.0, %v1549
      %v1551 = vpop.f32.mrf.mxu0
      %1552 = vdwg.mxu0
      %v1553 = vld [vmem:[%s325] sm:$0xff]
      %v1554 = vld [vmem:[%s325 + $0x8] sm:$0xff]
      %v1555 = vld [vmem:[%s325 + $0x10] sm:$0xff]
      %v1556 = vld [vmem:[%s325 + $0x18] sm:$0xff]
      %v1557 = vld [vmem:[%s325 + $0x20] sm:$0xff]
      %v1558 = vld [vmem:[%s325 + $0x28] sm:$0xff]
      %v1559 = vld [vmem:[%s325 + $0x30] sm:$0xff]
      %v1560 = vld [vmem:[%s325 + $0x38] sm:$0xff]
      %v1561 = vld [vmem:[%s325 + $0x40] sm:$0xff]
      %v1562 = vld [vmem:[%s325 + $0x48] sm:$0xff]
      %v1563 = vld [vmem:[%s325 + $0x50] sm:$0xff]
      %v1564 = vld [vmem:[%s325 + $0x58] sm:$0xff]
      %v1565 = vld [vmem:[%s325 + $0x60] sm:$0xff]
      %v1566 = vld [vmem:[%s325 + $0x68] sm:$0xff]
      %v1567 = vld [vmem:[%s325 + $0x70] sm:$0xff]
      %v1568 = vld [vmem:[%s325 + $0x78] sm:$0xff]
      %v1569 = vld [vmem:[%s325 + $0x80] sm:$0xff]
      %v1570 = vld [vmem:[%s325 + $0x88] sm:$0xff]
      %v1571 = vld [vmem:[%s325 + $0x90] sm:$0xff]
      %v1572 = vld [vmem:[%s325 + $0x98] sm:$0xff]
      %v1573 = vld [vmem:[%s325 + $0xa0] sm:$0xff]
      %v1574 = vld [vmem:[%s325 + $0xa8] sm:$0xff]
      %v1575 = vld [vmem:[%s325 + $0xb0] sm:$0xff]
      %v1576 = vld [vmem:[%s325 + $0xb8] sm:$0xff]
      %v1577 = vld [vmem:[%s325 + $0xc0] sm:$0xff]
      %v1578 = vld [vmem:[%s325 + $0xc8] sm:$0xff]
      %v1579 = vld [vmem:[%s325 + $0xd0] sm:$0xff]
      %v1580 = vld [vmem:[%s325 + $0xd8] sm:$0xff]
      %v1581 = vld [vmem:[%s325 + $0xe0] sm:$0xff]
      %v1582 = vld [vmem:[%s325 + $0xe8] sm:$0xff]
      %v1583 = vld [vmem:[%s325 + $0xf0] sm:$0xff]
      %v1584 = vld [vmem:[%s325 + $0xf8] sm:$0xff]
      %v1617 = vunpack.c.l.b16 %v1553
      %v1618 = vunpack.c.h.b16 %v1553
      %v1619 = vunpack.c.l.b16 %v1554
      %v1620 = vunpack.c.h.b16 %v1554
      %v1621 = vunpack.c.l.b16 %v1555
      %v1622 = vunpack.c.h.b16 %v1555
      %v1623 = vunpack.c.l.b16 %v1556
      %v1624 = vunpack.c.h.b16 %v1556
      %v1625 = vunpack.c.l.b16 %v1557
      %v1626 = vunpack.c.h.b16 %v1557
      %v1627 = vunpack.c.l.b16 %v1558
      %v1628 = vunpack.c.h.b16 %v1558
      %v1629 = vunpack.c.l.b16 %v1559
      %v1630 = vunpack.c.h.b16 %v1559
      %v1631 = vunpack.c.l.b16 %v1560
      %v1632 = vunpack.c.h.b16 %v1560
      %v1633 = vunpack.c.l.b16 %v1561
      %v1634 = vunpack.c.h.b16 %v1561
      %v1635 = vunpack.c.l.b16 %v1562
      %v1636 = vunpack.c.h.b16 %v1562
      %v1637 = vunpack.c.l.b16 %v1563
      %v1638 = vunpack.c.h.b16 %v1563
      %v1639 = vunpack.c.l.b16 %v1564
      %v1640 = vunpack.c.h.b16 %v1564
      %v1641 = vunpack.c.l.b16 %v1565
      %v1642 = vunpack.c.h.b16 %v1565
      %v1643 = vunpack.c.l.b16 %v1566
      %v1644 = vunpack.c.h.b16 %v1566
      %v1645 = vunpack.c.l.b16 %v1567
      %v1646 = vunpack.c.h.b16 %v1567
      %v1647 = vunpack.c.l.b16 %v1568
      %v1648 = vunpack.c.h.b16 %v1568
      %v1649 = vunpack.c.l.b16 %v1569
      %v1650 = vunpack.c.h.b16 %v1569
      %v1651 = vunpack.c.l.b16 %v1570
      %v1652 = vunpack.c.h.b16 %v1570
      %v1653 = vunpack.c.l.b16 %v1571
      %v1654 = vunpack.c.h.b16 %v1571
      %v1655 = vunpack.c.l.b16 %v1572
      %v1656 = vunpack.c.h.b16 %v1572
      %v1657 = vunpack.c.l.b16 %v1573
      %v1658 = vunpack.c.h.b16 %v1573
      %v1659 = vunpack.c.l.b16 %v1574
      %v1660 = vunpack.c.h.b16 %v1574
      %v1661 = vunpack.c.l.b16 %v1575
      %v1662 = vunpack.c.h.b16 %v1575
      %v1663 = vunpack.c.l.b16 %v1576
      %v1664 = vunpack.c.h.b16 %v1576
      %v1665 = vunpack.c.l.b16 %v1577
      %v1666 = vunpack.c.h.b16 %v1577
      %v1667 = vunpack.c.l.b16 %v1578
      %v1668 = vunpack.c.h.b16 %v1578
      %v1669 = vunpack.c.l.b16 %v1579
      %v1670 = vunpack.c.h.b16 %v1579
      %v1671 = vunpack.c.l.b16 %v1580
      %v1672 = vunpack.c.h.b16 %v1580
      %v1673 = vunpack.c.l.b16 %v1581
      %v1674 = vunpack.c.h.b16 %v1581
      %v1675 = vunpack.c.l.b16 %v1582
      %v1676 = vunpack.c.h.b16 %v1582
      %v1677 = vunpack.c.l.b16 %v1583
      %v1678 = vunpack.c.h.b16 %v1583
      %v1679 = vunpack.c.l.b16 %v1584
      %v1680 = vunpack.c.h.b16 %v1584
      %v1681 = vpack.c.b16 %v1619, %v1617
      %v1682 = vpack.c.b16 %v1620, %v1618
      %v1683 = vpack.c.b16 %v1623, %v1621
      %v1684 = vpack.c.b16 %v1624, %v1622
      %v1685 = vpack.c.b16 %v1627, %v1625
      %v1686 = vpack.c.b16 %v1628, %v1626
      %v1687 = vpack.c.b16 %v1631, %v1629
      %v1688 = vpack.c.b16 %v1632, %v1630
      %v1689 = vpack.c.b16 %v1635, %v1633
      %v1690 = vpack.c.b16 %v1636, %v1634
      %v1691 = vpack.c.b16 %v1639, %v1637
      %v1692 = vpack.c.b16 %v1640, %v1638
      %v1693 = vpack.c.b16 %v1643, %v1641
      %v1694 = vpack.c.b16 %v1644, %v1642
      %v1695 = vpack.c.b16 %v1647, %v1645
      %v1696 = vpack.c.b16 %v1648, %v1646
      %v1697 = vpack.c.b16 %v1651, %v1649
      %v1698 = vpack.c.b16 %v1652, %v1650
      %v1699 = vpack.c.b16 %v1655, %v1653
      %v1700 = vpack.c.b16 %v1656, %v1654
      %v1701 = vpack.c.b16 %v1659, %v1657
      %v1702 = vpack.c.b16 %v1660, %v1658
      %v1703 = vpack.c.b16 %v1663, %v1661
      %v1704 = vpack.c.b16 %v1664, %v1662
      %v1705 = vpack.c.b16 %v1667, %v1665
      %v1706 = vpack.c.b16 %v1668, %v1666
      %v1707 = vpack.c.b16 %v1671, %v1669
      %v1708 = vpack.c.b16 %v1672, %v1670
      %v1709 = vpack.c.b16 %v1675, %v1673
      %v1710 = vpack.c.b16 %v1676, %v1674
      %v1711 = vpack.c.b16 %v1679, %v1677
      %v1712 = vpack.c.b16 %v1680, %v1678
      %1745 = vmatprep.subr.bf16.mxu0 0
      %1746 = vmatpush1.bf16.msra.mxu0 %v629
      %1747 = vmatprep.subr.bf16.mxu0 0
      %1748 = vmatpush1.bf16.msra.mxu0 %v628
      %1749 = vmatprep.subr.bf16.mxu0 0
      %1750 = vmatpush1.bf16.msra.mxu0 %v627
      %1751 = vmatprep.subr.bf16.mxu0 0
      %1752 = vmatpush1.bf16.msra.mxu0 %v626
      %1753 = vmatprep.subr.bf16.mxu0 0
      %1754 = vmatpush1.bf16.msra.mxu0 %v625
      %1755 = vmatprep.subr.bf16.mxu0 0
      %1756 = vmatpush1.bf16.msra.mxu0 %v624
      %1757 = vmatprep.subr.bf16.mxu0 0
      %1758 = vmatpush1.bf16.msra.mxu0 %v623
      %1759 = vmatprep.subr.bf16.mxu0 0
      %1760 = vmatpush1.bf16.msra.mxu0 %v622
      %1761 = vmatprep.subr.bf16.mxu0 0
      %1762 = vmatpush2.bf16.msra.mxu0 %v637
      %1763 = vmatprep.subr.bf16.mxu0 0
      %1764 = vmatpush2.bf16.msra.mxu0 %v636
      %1765 = vmatprep.subr.bf16.mxu0 0
      %1766 = vmatpush2.bf16.msra.mxu0 %v635
      %1767 = vmatprep.subr.bf16.mxu0 0
      %1768 = vmatpush2.bf16.msra.mxu0 %v634
      %1769 = vmatprep.subr.bf16.mxu0 0
      %1770 = vmatpush2.bf16.msra.mxu0 %v633
      %1771 = vmatprep.subr.bf16.mxu0 0
      %1772 = vmatpush2.bf16.msra.mxu0 %v632
      %1773 = vmatprep.subr.bf16.mxu0 0
      %1774 = vmatpush2.bf16.msra.mxu0 %v631
      %1775 = vmatprep.subr.bf16.mxu0 0
      %1776 = vmatpush2.bf16.msra.mxu0 %v630
      %1777 = vmatprep.mubr.bf16.mxu0 %v1682
      %1778 = vmatmul.mubr.bf16.gmra.mxu0 %v1681
      %v1779 = vpop.f32.mrf.mxu0
      %v1780 = vadd.f32 0.0, %v1779
      %v1781 = vpop.f32.mrf.mxu0
      %v1782 = vpop.f32.mrf.mxu0
      %v1783 = vadd.f32 0.0, %v1782
      %v1784 = vpop.f32.mrf.mxu0
      %1785 = vmatprep.mubr.bf16.mxu0 %v1684
      %1786 = vmatmul.mubr.bf16.gmra.mxu0 %v1683
      %v1787 = vpop.f32.mrf.mxu0
      %v1788 = vadd.f32 0.0, %v1787
      %v1789 = vpop.f32.mrf.mxu0
      %v1790 = vpop.f32.mrf.mxu0
      %v1791 = vadd.f32 0.0, %v1790
      %v1792 = vpop.f32.mrf.mxu0
      %1793 = vmatprep.mubr.bf16.mxu0 %v1686
      %1794 = vmatmul.mubr.bf16.gmra.mxu0 %v1685
      %v1795 = vpop.f32.mrf.mxu0
      %v1796 = vadd.f32 0.0, %v1795
      %v1797 = vpop.f32.mrf.mxu0
      %v1798 = vpop.f32.mrf.mxu0
      %v1799 = vadd.f32 0.0, %v1798
      %v1800 = vpop.f32.mrf.mxu0
      %1801 = vmatprep.mubr.bf16.mxu0 %v1688
      %1802 = vmatmul.mubr.bf16.gmra.mxu0 %v1687
      %v1803 = vpop.f32.mrf.mxu0
      %v1804 = vadd.f32 0.0, %v1803
      %v1805 = vpop.f32.mrf.mxu0
      %v1806 = vpop.f32.mrf.mxu0
      %v1807 = vadd.f32 0.0, %v1806
      %v1808 = vpop.f32.mrf.mxu0
      %1809 = vmatprep.mubr.bf16.mxu0 %v1690
      %1810 = vmatmul.mubr.bf16.gmra.mxu0 %v1689
      %v1811 = vpop.f32.mrf.mxu0
      %v1812 = vadd.f32 0.0, %v1811
      %v1813 = vpop.f32.mrf.mxu0
      %v1814 = vpop.f32.mrf.mxu0
      %v1815 = vadd.f32 0.0, %v1814
      %v1816 = vpop.f32.mrf.mxu0
      %1817 = vmatprep.mubr.bf16.mxu0 %v1692
      %1818 = vmatmul.mubr.bf16.gmra.mxu0 %v1691
      %v1819 = vpop.f32.mrf.mxu0
      %v1820 = vadd.f32 0.0, %v1819
      %v1821 = vpop.f32.mrf.mxu0
      %v1822 = vpop.f32.mrf.mxu0
      %v1823 = vadd.f32 0.0, %v1822
      %v1824 = vpop.f32.mrf.mxu0
      %1825 = vmatprep.mubr.bf16.mxu0 %v1694
      %1826 = vmatmul.mubr.bf16.gmra.mxu0 %v1693
      %v1827 = vpop.f32.mrf.mxu0
      %v1828 = vadd.f32 0.0, %v1827
      %v1829 = vpop.f32.mrf.mxu0
      %v1830 = vpop.f32.mrf.mxu0
      %v1831 = vadd.f32 0.0, %v1830
      %v1832 = vpop.f32.mrf.mxu0
      %1833 = vmatprep.mubr.bf16.mxu0 %v1696
      %1834 = vmatmul.mubr.bf16.gmra.mxu0 %v1695
      %v1835 = vpop.f32.mrf.mxu0
      %v1836 = vadd.f32 0.0, %v1835
      %v1837 = vpop.f32.mrf.mxu0
      %v1838 = vpop.f32.mrf.mxu0
      %v1839 = vadd.f32 0.0, %v1838
      %v1840 = vpop.f32.mrf.mxu0
      %1841 = vmatprep.mubr.bf16.mxu0 %v1698
      %1842 = vmatmul.mubr.bf16.gmra.mxu0 %v1697
      %v1843 = vpop.f32.mrf.mxu0
      %v1844 = vadd.f32 0.0, %v1843
      %v1845 = vpop.f32.mrf.mxu0
      %v1846 = vpop.f32.mrf.mxu0
      %v1847 = vadd.f32 0.0, %v1846
      %v1848 = vpop.f32.mrf.mxu0
      %1849 = vmatprep.mubr.bf16.mxu0 %v1700
      %1850 = vmatmul.mubr.bf16.gmra.mxu0 %v1699
      %v1851 = vpop.f32.mrf.mxu0
      %v1852 = vadd.f32 0.0, %v1851
      %v1853 = vpop.f32.mrf.mxu0
      %v1854 = vpop.f32.mrf.mxu0
      %v1855 = vadd.f32 0.0, %v1854
      %v1856 = vpop.f32.mrf.mxu0
      %1857 = vmatprep.mubr.bf16.mxu0 %v1702
      %1858 = vmatmul.mubr.bf16.gmra.mxu0 %v1701
      %v1859 = vpop.f32.mrf.mxu0
      %v1860 = vadd.f32 0.0, %v1859
      %v1861 = vpop.f32.mrf.mxu0
      %v1862 = vpop.f32.mrf.mxu0
      %v1863 = vadd.f32 0.0, %v1862
      %v1864 = vpop.f32.mrf.mxu0
      %1865 = vmatprep.mubr.bf16.mxu0 %v1704
      %1866 = vmatmul.mubr.bf16.gmra.mxu0 %v1703
      %v1867 = vpop.f32.mrf.mxu0
      %v1868 = vadd.f32 0.0, %v1867
      %v1869 = vpop.f32.mrf.mxu0
      %v1870 = vpop.f32.mrf.mxu0
      %v1871 = vadd.f32 0.0, %v1870
      %v1872 = vpop.f32.mrf.mxu0
      %1873 = vmatprep.mubr.bf16.mxu0 %v1706
      %1874 = vmatmul.mubr.bf16.gmra.mxu0 %v1705
      %v1875 = vpop.f32.mrf.mxu0
      %v1876 = vadd.f32 0.0, %v1875
      %v1877 = vpop.f32.mrf.mxu0
      %v1878 = vpop.f32.mrf.mxu0
      %v1879 = vadd.f32 0.0, %v1878
      %v1880 = vpop.f32.mrf.mxu0
      %1881 = vmatprep.mubr.bf16.mxu0 %v1708
      %1882 = vmatmul.mubr.bf16.gmra.mxu0 %v1707
      %v1883 = vpop.f32.mrf.mxu0
      %v1884 = vadd.f32 0.0, %v1883
      %v1885 = vpop.f32.mrf.mxu0
      %v1886 = vpop.f32.mrf.mxu0
      %v1887 = vadd.f32 0.0, %v1886
      %v1888 = vpop.f32.mrf.mxu0
      %1889 = vmatprep.mubr.bf16.mxu0 %v1710
      %1890 = vmatmul.mubr.bf16.gmra.mxu0 %v1709
      %v1891 = vpop.f32.mrf.mxu0
      %v1892 = vadd.f32 0.0, %v1891
      %v1893 = vpop.f32.mrf.mxu0
      %v1894 = vpop.f32.mrf.mxu0
      %v1895 = vadd.f32 0.0, %v1894
      %v1896 = vpop.f32.mrf.mxu0
      %1897 = vmatprep.mubr.bf16.mxu0 %v1712
      %1898 = vmatmul.mubr.bf16.gmra.mxu0 %v1711
      %v1899 = vpop.f32.mrf.mxu0
      %v1900 = vadd.f32 0.0, %v1899
      %v1901 = vpop.f32.mrf.mxu0
      %v1902 = vpop.f32.mrf.mxu0
      %v1903 = vadd.f32 0.0, %v1902
      %v1904 = vpop.f32.mrf.mxu0
      %1905 = vdwg.mxu0
      %v1906 = vmax.f32 %v1427, %v1780
      %v1907 = vmax.f32 %v1430, %v1783
      %v1908 = vmax.f32 %v1435, %v1788
      %v1909 = vmax.f32 %v1438, %v1791
      %v1910 = vmax.f32 %v1443, %v1796
      %v1911 = vmax.f32 %v1446, %v1799
      %v1912 = vmax.f32 %v1451, %v1804
      %v1913 = vmax.f32 %v1454, %v1807
      %v1914 = vmax.f32 %v1459, %v1812
      %v1915 = vmax.f32 %v1462, %v1815
      %v1916 = vmax.f32 %v1467, %v1820
      %v1917 = vmax.f32 %v1470, %v1823
      %v1918 = vmax.f32 %v1475, %v1828
      %v1919 = vmax.f32 %v1478, %v1831
      %v1920 = vmax.f32 %v1483, %v1836
      %v1921 = vmax.f32 %v1486, %v1839
      %v1922 = vmax.f32 %v1491, %v1844
      %v1923 = vmax.f32 %v1494, %v1847
      %v1924 = vmax.f32 %v1499, %v1852
      %v1925 = vmax.f32 %v1502, %v1855
      %v1926 = vmax.f32 %v1507, %v1860
      %v1927 = vmax.f32 %v1510, %v1863
      %v1928 = vmax.f32 %v1515, %v1868
      %v1929 = vmax.f32 %v1518, %v1871
      %v1930 = vmax.f32 %v1523, %v1876
      %v1931 = vmax.f32 %v1526, %v1879
      %v1932 = vmax.f32 %v1531, %v1884
      %v1933 = vmax.f32 %v1534, %v1887
      %v1934 = vmax.f32 %v1539, %v1892
      %v1935 = vmax.f32 %v1542, %v1895
      %v1936 = vmax.f32 %v1547, %v1900
      %v1937 = vmax.f32 %v1550, %v1903
      %v1938 = vmax.f32 %v1168, %v1906
      %v1939 = vmax.f32 %v1169, %v1907
      %v1940 = vmax.f32 %v1170, %v1908
      %v1941 = vmax.f32 %v1171, %v1909
      %v1942 = vmax.f32 %v1172, %v1910
      %v1943 = vmax.f32 %v1173, %v1911
      %v1944 = vmax.f32 %v1174, %v1912
      %v1945 = vmax.f32 %v1175, %v1913
      %v1946 = vmax.f32 %v1176, %v1914
      %v1947 = vmax.f32 %v1177, %v1915
      %v1948 = vmax.f32 %v1178, %v1916
      %v1949 = vmax.f32 %v1179, %v1917
      %v1950 = vmax.f32 %v1180, %v1918
      %v1951 = vmax.f32 %v1181, %v1919
      %v1952 = vmax.f32 %v1182, %v1920
      %v1953 = vmax.f32 %v1183, %v1921
      %v1954 = vmax.f32 %v1184, %v1922
      %v1955 = vmax.f32 %v1185, %v1923
      %v1956 = vmax.f32 %v1186, %v1924
      %v1957 = vmax.f32 %v1187, %v1925
      %v1958 = vmax.f32 %v1188, %v1926
      %v1959 = vmax.f32 %v1189, %v1927
      %v1960 = vmax.f32 %v1190, %v1928
      %v1961 = vmax.f32 %v1191, %v1929
      %v1962 = vmax.f32 %v1192, %v1930
      %v1963 = vmax.f32 %v1193, %v1931
      %v1964 = vmax.f32 %v1194, %v1932
      %v1965 = vmax.f32 %v1195, %v1933
      %v1966 = vmax.f32 %v1196, %v1934
      %v1967 = vmax.f32 %v1197, %v1935
      %v1968 = vmax.f32 %v1198, %v1936
      %v1969 = vmax.f32 %v1199, %v1937
      %v1970 = vld [vmem:[%s5] sm:$0x1]
      %v1972 = vlaneseq
      %v1973 = vshrl.u32 %v1972, 7
      %v1974 = vsub.s32 0, %v1973
      %v1975 = vrot.slane %v1970, %v1974
      %v1977 = vadd.f32 %v1938, %v1975
      %v1978 = vadd.f32 %v1939, %v1975
      %v1979 = vadd.f32 %v1940, %v1975
      %v1980 = vadd.f32 %v1941, %v1975
      %v1981 = vadd.f32 %v1942, %v1975
      %v1982 = vadd.f32 %v1943, %v1975
      %v1983 = vadd.f32 %v1944, %v1975
      %v1984 = vadd.f32 %v1945, %v1975
      %v1985 = vadd.f32 %v1946, %v1975
      %v1986 = vadd.f32 %v1947, %v1975
      %v1987 = vadd.f32 %v1948, %v1975
      %v1988 = vadd.f32 %v1949, %v1975
      %v1989 = vadd.f32 %v1950, %v1975
      %v1990 = vadd.f32 %v1951, %v1975
      %v1991 = vadd.f32 %v1952, %v1975
      %v1992 = vadd.f32 %v1953, %v1975
      %v1993 = vadd.f32 %v1954, %v1975
      %v1994 = vadd.f32 %v1955, %v1975
      %v1995 = vadd.f32 %v1956, %v1975
      %v1996 = vadd.f32 %v1957, %v1975
      %v1997 = vadd.f32 %v1958, %v1975
      %v1998 = vadd.f32 %v1959, %v1975
      %v1999 = vadd.f32 %v1960, %v1975
      %v2000 = vadd.f32 %v1961, %v1975
      %v2001 = vadd.f32 %v1962, %v1975
      %v2002 = vadd.f32 %v1963, %v1975
      %v2003 = vadd.f32 %v1964, %v1975
      %v2004 = vadd.f32 %v1965, %v1975
      %v2005 = vadd.f32 %v1966, %v1975
      %v2006 = vadd.f32 %v1967, %v1975
      %v2007 = vadd.f32 %v1968, %v1975
      %v2008 = vadd.f32 %v1969, %v1975
      %v2009 = vmax.f32 %v1977, 0.0
      %v2010 = vmax.f32 %v1978, 0.0
      %v2011 = vmax.f32 %v1979, 0.0
      %v2012 = vmax.f32 %v1980, 0.0
      %v2013 = vmax.f32 %v1981, 0.0
      %v2014 = vmax.f32 %v1982, 0.0
      %v2015 = vmax.f32 %v1983, 0.0
      %v2016 = vmax.f32 %v1984, 0.0
      %v2017 = vmax.f32 %v1985, 0.0
      %v2018 = vmax.f32 %v1986, 0.0
      %v2019 = vmax.f32 %v1987, 0.0
      %v2020 = vmax.f32 %v1988, 0.0
      %v2021 = vmax.f32 %v1989, 0.0
      %v2022 = vmax.f32 %v1990, 0.0
      %v2023 = vmax.f32 %v1991, 0.0
      %v2024 = vmax.f32 %v1992, 0.0
      %v2025 = vmax.f32 %v1993, 0.0
      %v2026 = vmax.f32 %v1994, 0.0
      %v2027 = vmax.f32 %v1995, 0.0
      %v2028 = vmax.f32 %v1996, 0.0
      %v2029 = vmax.f32 %v1997, 0.0
      %v2030 = vmax.f32 %v1998, 0.0
      %v2031 = vmax.f32 %v1999, 0.0
      %v2032 = vmax.f32 %v2000, 0.0
      %v2033 = vmax.f32 %v2001, 0.0
      %v2034 = vmax.f32 %v2002, 0.0
      %v2035 = vmax.f32 %v2003, 0.0
      %v2036 = vmax.f32 %v2004, 0.0
      %v2037 = vmax.f32 %v2005, 0.0
      %v2038 = vmax.f32 %v2006, 0.0
      %v2039 = vmax.f32 %v2007, 0.0
      %v2040 = vmax.f32 %v2008, 0.0
      %vm2041 = vcmask 261120
      %2042 = vst.msk [vmem:[%s331] sm:$0xff] %vm2041, %v2009
      %2043 = vst.msk [vmem:[%s331 + $0x8] sm:$0xff] %vm2041, %v2010
      %2044 = vst.msk [vmem:[%s331 + $0x10] sm:$0xff] %vm2041, %v2011
      %2045 = vst.msk [vmem:[%s331 + $0x18] sm:$0xff] %vm2041, %v2012
      %2046 = vst.msk [vmem:[%s331 + $0x20] sm:$0xff] %vm2041, %v2013
      %2047 = vst.msk [vmem:[%s331 + $0x28] sm:$0xff] %vm2041, %v2014
      %2048 = vst.msk [vmem:[%s331 + $0x30] sm:$0xff] %vm2041, %v2015
      %2049 = vst.msk [vmem:[%s331 + $0x38] sm:$0xff] %vm2041, %v2016
      %2050 = vst.msk [vmem:[%s331 + $0x40] sm:$0xff] %vm2041, %v2017
      %2051 = vst.msk [vmem:[%s331 + $0x48] sm:$0xff] %vm2041, %v2018
      %2052 = vst.msk [vmem:[%s331 + $0x50] sm:$0xff] %vm2041, %v2019
      %2053 = vst.msk [vmem:[%s331 + $0x58] sm:$0xff] %vm2041, %v2020
      %2054 = vst.msk [vmem:[%s331 + $0x60] sm:$0xff] %vm2041, %v2021
      %2055 = vst.msk [vmem:[%s331 + $0x68] sm:$0xff] %vm2041, %v2022
      %2056 = vst.msk [vmem:[%s331 + $0x70] sm:$0xff] %vm2041, %v2023
      %2057 = vst.msk [vmem:[%s331 + $0x78] sm:$0xff] %vm2041, %v2024
      %2058 = vst.msk [vmem:[%s331 + $0x80] sm:$0xff] %vm2041, %v2025
      %2059 = vst.msk [vmem:[%s331 + $0x88] sm:$0xff] %vm2041, %v2026
      %2060 = vst.msk [vmem:[%s331 + $0x90] sm:$0xff] %vm2041, %v2027
      %2061 = vst.msk [vmem:[%s331 + $0x98] sm:$0xff] %vm2041, %v2028
      %2062 = vst.msk [vmem:[%s331 + $0xa0] sm:$0xff] %vm2041, %v2029
      %2063 = vst.msk [vmem:[%s331 + $0xa8] sm:$0xff] %vm2041, %v2030
      %2064 = vst.msk [vmem:[%s331 + $0xb0] sm:$0xff] %vm2041, %v2031
      %2065 = vst.msk [vmem:[%s331 + $0xb8] sm:$0xff] %vm2041, %v2032
      %2066 = vst.msk [vmem:[%s331 + $0xc0] sm:$0xff] %vm2041, %v2033
      %2067 = vst.msk [vmem:[%s331 + $0xc8] sm:$0xff] %vm2041, %v2034
      %2068 = vst.msk [vmem:[%s331 + $0xd0] sm:$0xff] %vm2041, %v2035
      %2069 = vst.msk [vmem:[%s331 + $0xd8] sm:$0xff] %vm2041, %v2036
      %2070 = vst.msk [vmem:[%s331 + $0xe0] sm:$0xff] %vm2041, %v2037
      %2071 = vst.msk [vmem:[%s331 + $0xe8] sm:$0xff] %vm2041, %v2038
      %2072 = vst.msk [vmem:[%s331 + $0xf0] sm:$0xff] %vm2041, %v2039
      %2073 = vst.msk [vmem:[%s331 + $0xf8] sm:$0xff] %vm2041, %v2040
      %s2074 = smul.u32 32, %s17
      %p2075 = scmp.lt.s32.totalorder %s2074, 127
      %s2076 = scalar_select %p2075, %s2074, 127
      %s2077 = smul.addr %s2076, 8
      %s2078 = scalar_lea.vmem %s6, %s2077
      // Predicated region
      $region45: #{cnn_forward.4} parent=43 // pred_check
        %p2079 = pneg %p181
      $region46: #{cnn_forward.4} parent=43 // pred_check_branch
        %2081 = sbr.rel (%p2079) target = $region48
      $region47: #{cnn_forward.4} parent=43 // pred_region
        %s2082 = smul.u32 32, %s17
      $region48: #{cnn_forward.4} parent=43 // pred_fallthru
        _
    $region44: #{cnn_forward.4} parent=5 // pred_fallthru
      _
    %p2083 = scmp.le.s32.totalorder 2, %s12
    // Predicated region
    $region49: #{cnn_forward.4} parent=5 // pred_check
      %p2084 = pneg %p2083
    $region50: #{cnn_forward.4} parent=5 // pred_check_branch
      %2086 = sbr.rel (%p2084) target = $region52
    $region51: #{cnn_forward.4} parent=5 // pred_region
      %s2087 = ssub.s32 %s12, 2
      // Predicated region
      $region53: #{cnn_forward.4} parent=51 // pred_check
        %p2088 = pneg %p187
      $region54: #{cnn_forward.4} parent=51 // pred_check_branch
        %2090 = sbr.rel (%p2088) target = $region56
      $region55: #{cnn_forward.4} parent=51 // pred_region
        %s2091 = smul.u32 32, %s18
        %p2092 = scmp.lt.s32.totalorder %s2091, 127
        %s2093 = scalar_select %p2092, %s2091, 127
        %s2094 = smul.addr %s2093, 8
        %s2095 = scalar_lea.vmem %s6, %s2094
      $region56: #{cnn_forward.4} parent=51 // pred_fallthru
        _
    $region52: #{cnn_forward.4} parent=5 // pred_fallthru
      _
  $region6: #{cnn_forward.4} parent=0 // loop_footer
    %s16 = sadd.s32 1, %s12
  $region7: #{cnn_forward.4} parent=0 // loop_footer_branch
    %11 = sbr.rel target = $region3
  $region8: #{cnn_forward.4} parent=0 // loop_exit
    _

// kernel: cnn_forward.6
$region0: #{cnn_forward.6}
  #allocation0 [shape = 'u32[]', space=smem, size = 0x4, offset = 0x4, fixed_abs, tag = 'smem constant byte address 0x4 - core index']
  #allocation1 [shape = 'u32[144,128]{1,0:T(1,128)}', space=vmem, size = 0x12000, scoped, tag = 'internal scratch']
  %s0 = inlined_call_operand.vmem [shape: f32[8,256], index: 0, kind: input, shape index: {}]
  %s1 = inlined_call_operand.vmem [shape: f32[8,256], index: 1, kind: input, shape index: {}]
  %s2 = inlined_call_operand.vmem [shape: f32[8,256], index: 2, kind: input, shape index: {}]
  %s3 = inlined_call_operand.vmem [shape: f32[8,256], index: 3, kind: input, shape index: {}]
  %s4 = inlined_call_operand.vmem [shape: f32[256,128], index: 4, kind: input, shape index: {}]
  %s5 = inlined_call_operand.vmem [shape: f32[1,128], index: 5, kind: input, shape index: {}]
  %s6 = inlined_call_operand.vmem [shape: f32[8,128], index: 6, kind: output, shape index: {}]
  %s7 = sld [smem:[#allocation0]]
  $region34: #{cnn_forward.6} parent=0
    _
  %s9 = ssub.s32 1, %s7
  %s10 = scalar_select 0, %s9, %s7
  // Predicated region
  $region2: #{cnn_forward.6} parent=0 // pred_check
    _
  $region3: #{cnn_forward.6} parent=0 // pred_check_branch
    %12 = sbr.rel (0) target = $region5
  $region4: #{cnn_forward.6} parent=0 // pred_region
    _
  $region5: #{cnn_forward.6} parent=0 // pred_fallthru
    _
  // Predicated region
  $region6: #{cnn_forward.6} parent=0 // pred_check
    _
  $region7: #{cnn_forward.6} parent=0 // pred_check_branch
    %14 = sbr.rel (0) target = $region9
  $region8: #{cnn_forward.6} parent=0 // pred_region
    _
  $region9: #{cnn_forward.6} parent=0 // pred_fallthru
    _
  // Predicated region
  $region10: #{cnn_forward.6} parent=0 // pred_check
    _
  $region11: #{cnn_forward.6} parent=0 // pred_check_branch
    %16 = sbr.rel (0) target = $region13
  $region12: #{cnn_forward.6} parent=0 // pred_region
    _
  $region13: #{cnn_forward.6} parent=0 // pred_fallthru
    _
  // Predicated region
  $region14: #{cnn_forward.6} parent=0 // pred_check
    _
  $region15: #{cnn_forward.6} parent=0 // pred_check_branch
    %18 = sbr.rel (0) target = $region17
  $region16: #{cnn_forward.6} parent=0 // pred_region
    _
  $region17: #{cnn_forward.6} parent=0 // pred_fallthru
    _
  // Predicated region
  $region18: #{cnn_forward.6} parent=0 // pred_check
    _
  $region19: #{cnn_forward.6} parent=0 // pred_check_branch
    %20 = sbr.rel (0) target = $region21
  $region20: #{cnn_forward.6} parent=0 // pred_region
    _
  $region21: #{cnn_forward.6} parent=0 // pred_fallthru
    _
  // Predicated region
  $region22: #{cnn_forward.6} parent=0 // pred_check
    _
  $region23: #{cnn_forward.6} parent=0 // pred_check_branch
    %22 = sbr.rel (0) target = $region25
  $region24: #{cnn_forward.6} parent=0 // pred_region
    _
  $region25: #{cnn_forward.6} parent=0 // pred_fallthru
    _
  %v23 = vld [vmem:[%s0] sm:$0xff]
  %v24 = vld [vmem:[%s0 + $0x8] sm:$0xff]
  %v25 = vld [vmem:[%s4] sm:$0xff]
  %v26 = vld [vmem:[%s4 + $0x8] sm:$0xff]
  %v27 = vld [vmem:[%s4 + $0x10] sm:$0xff]
  %v28 = vld [vmem:[%s4 + $0x18] sm:$0xff]
  %v29 = vld [vmem:[%s4 + $0x20] sm:$0xff]
  %v30 = vld [vmem:[%s4 + $0x28] sm:$0xff]
  %v31 = vld [vmem:[%s4 + $0x30] sm:$0xff]
  %v32 = vld [vmem:[%s4 + $0x38] sm:$0xff]
  %v33 = vld [vmem:[%s4 + $0x40] sm:$0xff]
  %v34 = vld [vmem:[%s4 + $0x48] sm:$0xff]
  %v35 = vld [vmem:[%s4 + $0x50] sm:$0xff]
  %v36 = vld [vmem:[%s4 + $0x58] sm:$0xff]
  %v37 = vld [vmem:[%s4 + $0x60] sm:$0xff]
  %v38 = vld [vmem:[%s4 + $0x68] sm:$0xff]
  %v39 = vld [vmem:[%s4 + $0x70] sm:$0xff]
  %v40 = vld [vmem:[%s4 + $0x78] sm:$0xff]
  %v41 = vld [vmem:[%s4 + $0x80] sm:$0xff]
  %v42 = vld [vmem:[%s4 + $0x88] sm:$0xff]
  %v43 = vld [vmem:[%s4 + $0x90] sm:$0xff]
  %v44 = vld [vmem:[%s4 + $0x98] sm:$0xff]
  %v45 = vld [vmem:[%s4 + $0xa0] sm:$0xff]
  %v46 = vld [vmem:[%s4 + $0xa8] sm:$0xff]
  %v47 = vld [vmem:[%s4 + $0xb0] sm:$0xff]
  %v48 = vld [vmem:[%s4 + $0xb8] sm:$0xff]
  %v49 = vld [vmem:[%s4 + $0xc0] sm:$0xff]
  %v50 = vld [vmem:[%s4 + $0xc8] sm:$0xff]
  %v51 = vld [vmem:[%s4 + $0xd0] sm:$0xff]
  %v52 = vld [vmem:[%s4 + $0xd8] sm:$0xff]
  %v53 = vld [vmem:[%s4 + $0xe0] sm:$0xff]
  %v54 = vld [vmem:[%s4 + $0xe8] sm:$0xff]
  %v55 = vld [vmem:[%s4 + $0xf0] sm:$0xff]
  %v56 = vld [vmem:[%s4 + $0xf8] sm:$0xff]
  %57 = vmatprep.subr.mxu0 0.0
  %58 = vmatpush1.msra.mxu0 %v40
  %59 = vmatprep.subr.mxu0 0.0
  %60 = vmatpush1.msra.mxu0 %v39
  %61 = vmatprep.subr.mxu0 0.0
  %62 = vmatpush1.msra.mxu0 %v38
  %63 = vmatprep.subr.mxu0 0.0
  %64 = vmatpush1.msra.mxu0 %v37
  %65 = vmatprep.subr.mxu0 0.0
  %66 = vmatpush1.msra.mxu0 %v36
  %67 = vmatprep.subr.mxu0 0.0
  %68 = vmatpush1.msra.mxu0 %v35
  %69 = vmatprep.subr.mxu0 0.0
  %70 = vmatpush1.msra.mxu0 %v34
  %71 = vmatprep.subr.mxu0 0.0
  %72 = vmatpush1.msra.mxu0 %v33
  %73 = vmatprep.subr.mxu0 0.0
  %74 = vmatpush1.msra.mxu0 %v32
  %75 = vmatprep.subr.mxu0 0.0
  %76 = vmatpush1.msra.mxu0 %v31
  %77 = vmatprep.subr.mxu0 0.0
  %78 = vmatpush1.msra.mxu0 %v30
  %79 = vmatprep.subr.mxu0 0.0
  %80 = vmatpush1.msra.mxu0 %v29
  %81 = vmatprep.subr.mxu0 0.0
  %82 = vmatpush1.msra.mxu0 %v28
  %83 = vmatprep.subr.mxu0 0.0
  %84 = vmatpush1.msra.mxu0 %v27
  %85 = vmatprep.subr.mxu0 0.0
  %86 = vmatpush1.msra.mxu0 %v26
  %87 = vmatprep.subr.mxu0 0.0
  %88 = vmatpush1.msra.mxu0 %v25
  %89 = vmatprep.subr.mxu0 0.0
  %90 = vmatpush2.msra.mxu0 %v56
  %91 = vmatprep.subr.mxu0 0.0
  %92 = vmatpush2.msra.mxu0 %v55
  %93 = vmatprep.subr.mxu0 0.0
  %94 = vmatpush2.msra.mxu0 %v54
  %95 = vmatprep.subr.mxu0 0.0
  %96 = vmatpush2.msra.mxu0 %v53
  %97 = vmatprep.subr.mxu0 0.0
  %98 = vmatpush2.msra.mxu0 %v52
  %99 = vmatprep.subr.mxu0 0.0
  %100 = vmatpush2.msra.mxu0 %v51
  %101 = vmatprep.subr.mxu0 0.0
  %102 = vmatpush2.msra.mxu0 %v50
  %103 = vmatprep.subr.mxu0 0.0
  %104 = vmatpush2.msra.mxu0 %v49
  %105 = vmatprep.subr.mxu0 0.0
  %106 = vmatpush2.msra.mxu0 %v48
  %107 = vmatprep.subr.mxu0 0.0
  %108 = vmatpush2.msra.mxu0 %v47
  %109 = vmatprep.subr.mxu0 0.0
  %110 = vmatpush2.msra.mxu0 %v46
  %111 = vmatprep.subr.mxu0 0.0
  %112 = vmatpush2.msra.mxu0 %v45
  %113 = vmatprep.subr.mxu0 0.0
  %114 = vmatpush2.msra.mxu0 %v44
  %115 = vmatprep.subr.mxu0 0.0
  %116 = vmatpush2.msra.mxu0 %v43
  %117 = vmatprep.subr.mxu0 0.0
  %118 = vmatpush2.msra.mxu0 %v42
  %119 = vmatprep.subr.mxu0 0.0
  %120 = vmatpush2.msra.mxu0 %v41
  %121 = vmatprep.mubr.f32.mxu0 %v24
  %122 = vmatmul.mubr.f32.gmra.mxu0 %v23
  %v123 = vpop.f32.mrf.mxu0
  %v124 = vadd.f32 0.0, %v123
  %v125 = vpop.f32.mrf.mxu0
  %126 = vdwg.mxu0
  %v127 = vld [vmem:[%s1] sm:$0xff]
  %v128 = vld [vmem:[%s1 + $0x8] sm:$0xff]
  %129 = vmatprep.subr.mxu0 0.0
  %130 = vmatpush1.msra.mxu0 %v40
  %131 = vmatprep.subr.mxu0 0.0
  %132 = vmatpush1.msra.mxu0 %v39
  %133 = vmatprep.subr.mxu0 0.0
  %134 = vmatpush1.msra.mxu0 %v38
  %135 = vmatprep.subr.mxu0 0.0
  %136 = vmatpush1.msra.mxu0 %v37
  %137 = vmatprep.subr.mxu0 0.0
  %138 = vmatpush1.msra.mxu0 %v36
  %139 = vmatprep.subr.mxu0 0.0
  %140 = vmatpush1.msra.mxu0 %v35
  %141 = vmatprep.subr.mxu0 0.0
  %142 = vmatpush1.msra.mxu0 %v34
  %143 = vmatprep.subr.mxu0 0.0
  %144 = vmatpush1.msra.mxu0 %v33
  %145 = vmatprep.subr.mxu0 0.0
  %146 = vmatpush1.msra.mxu0 %v32
  %147 = vmatprep.subr.mxu0 0.0
  %148 = vmatpush1.msra.mxu0 %v31
  %149 = vmatprep.subr.mxu0 0.0
  %150 = vmatpush1.msra.mxu0 %v30
  %151 = vmatprep.subr.mxu0 0.0
  %152 = vmatpush1.msra.mxu0 %v29
  %153 = vmatprep.subr.mxu0 0.0
  %154 = vmatpush1.msra.mxu0 %v28
  %155 = vmatprep.subr.mxu0 0.0
  %156 = vmatpush1.msra.mxu0 %v27
  %157 = vmatprep.subr.mxu0 0.0
  %158 = vmatpush1.msra.mxu0 %v26
  %159 = vmatprep.subr.mxu0 0.0
  %160 = vmatpush1.msra.mxu0 %v25
  %161 = vmatprep.subr.mxu0 0.0
  %162 = vmatpush2.msra.mxu0 %v56
  %163 = vmatprep.subr.mxu0 0.0
  %164 = vmatpush2.msra.mxu0 %v55
  %165 = vmatprep.subr.mxu0 0.0
  %166 = vmatpush2.msra.mxu0 %v54
  %167 = vmatprep.subr.mxu0 0.0
  %168 = vmatpush2.msra.mxu0 %v53
  %169 = vmatprep.subr.mxu0 0.0
  %170 = vmatpush2.msra.mxu0 %v52
  %171 = vmatprep.subr.mxu0 0.0
  %172 = vmatpush2.msra.mxu0 %v51
  %173 = vmatprep.subr.mxu0 0.0
  %174 = vmatpush2.msra.mxu0 %v50
  %175 = vmatprep.subr.mxu0 0.0
  %176 = vmatpush2.msra.mxu0 %v49
  %177 = vmatprep.subr.mxu0 0.0
  %178 = vmatpush2.msra.mxu0 %v48
  %179 = vmatprep.subr.mxu0 0.0
  %180 = vmatpush2.msra.mxu0 %v47
  %181 = vmatprep.subr.mxu0 0.0
  %182 = vmatpush2.msra.mxu0 %v46
  %183 = vmatprep.subr.mxu0 0.0
  %184 = vmatpush2.msra.mxu0 %v45
  %185 = vmatprep.subr.mxu0 0.0
  %186 = vmatpush2.msra.mxu0 %v44
  %187 = vmatprep.subr.mxu0 0.0
  %188 = vmatpush2.msra.mxu0 %v43
  %189 = vmatprep.subr.mxu0 0.0
  %190 = vmatpush2.msra.mxu0 %v42
  %191 = vmatprep.subr.mxu0 0.0
  %192 = vmatpush2.msra.mxu0 %v41
  %193 = vmatprep.mubr.f32.mxu0 %v128
  %194 = vmatmul.mubr.f32.gmra.mxu0 %v127
  %v195 = vpop.f32.mrf.mxu0
  %v196 = vadd.f32 0.0, %v195
  %v197 = vpop.f32.mrf.mxu0
  %198 = vdwg.mxu0
  %v199 = vmax.f32 %v124, %v196
  %v200 = vld [vmem:[%s2] sm:$0xff]
  %v201 = vld [vmem:[%s2 + $0x8] sm:$0xff]
  %202 = vmatprep.subr.mxu0 0.0
  %203 = vmatpush1.msra.mxu0 %v40
  %204 = vmatprep.subr.mxu0 0.0
  %205 = vmatpush1.msra.mxu0 %v39
  %206 = vmatprep.subr.mxu0 0.0
  %207 = vmatpush1.msra.mxu0 %v38
  %208 = vmatprep.subr.mxu0 0.0
  %209 = vmatpush1.msra.mxu0 %v37
  %210 = vmatprep.subr.mxu0 0.0
  %211 = vmatpush1.msra.mxu0 %v36
  %212 = vmatprep.subr.mxu0 0.0
  %213 = vmatpush1.msra.mxu0 %v35
  %214 = vmatprep.subr.mxu0 0.0
  %215 = vmatpush1.msra.mxu0 %v34
  %216 = vmatprep.subr.mxu0 0.0
  %217 = vmatpush1.msra.mxu0 %v33
  %218 = vmatprep.subr.mxu0 0.0
  %219 = vmatpush1.msra.mxu0 %v32
  %220 = vmatprep.subr.mxu0 0.0
  %221 = vmatpush1.msra.mxu0 %v31
  %222 = vmatprep.subr.mxu0 0.0
  %223 = vmatpush1.msra.mxu0 %v30
  %224 = vmatprep.subr.mxu0 0.0
  %225 = vmatpush1.msra.mxu0 %v29
  %226 = vmatprep.subr.mxu0 0.0
  %227 = vmatpush1.msra.mxu0 %v28
  %228 = vmatprep.subr.mxu0 0.0
  %229 = vmatpush1.msra.mxu0 %v27
  %230 = vmatprep.subr.mxu0 0.0
  %231 = vmatpush1.msra.mxu0 %v26
  %232 = vmatprep.subr.mxu0 0.0
  %233 = vmatpush1.msra.mxu0 %v25
  %234 = vmatprep.subr.mxu0 0.0
  %235 = vmatpush2.msra.mxu0 %v56
  %236 = vmatprep.subr.mxu0 0.0
  %237 = vmatpush2.msra.mxu0 %v55
  %238 = vmatprep.subr.mxu0 0.0
  %239 = vmatpush2.msra.mxu0 %v54
  %240 = vmatprep.subr.mxu0 0.0
  %241 = vmatpush2.msra.mxu0 %v53
  %242 = vmatprep.subr.mxu0 0.0
  %243 = vmatpush2.msra.mxu0 %v52
  %244 = vmatprep.subr.mxu0 0.0
  %245 = vmatpush2.msra.mxu0 %v51
  %246 = vmatprep.subr.mxu0 0.0
  %247 = vmatpush2.msra.mxu0 %v50
  %248 = vmatprep.subr.mxu0 0.0
  %249 = vmatpush2.msra.mxu0 %v49
  %250 = vmatprep.subr.mxu0 0.0
  %251 = vmatpush2.msra.mxu0 %v48
  %252 = vmatprep.subr.mxu0 0.0
  %253 = vmatpush2.msra.mxu0 %v47
  %254 = vmatprep.subr.mxu0 0.0
  %255 = vmatpush2.msra.mxu0 %v46
  %256 = vmatprep.subr.mxu0 0.0
  %257 = vmatpush2.msra.mxu0 %v45
  %258 = vmatprep.subr.mxu0 0.0
  %259 = vmatpush2.msra.mxu0 %v44
  %260 = vmatprep.subr.mxu0 0.0
  %261 = vmatpush2.msra.mxu0 %v43
  %262 = vmatprep.subr.mxu0 0.0
  %263 = vmatpush2.msra.mxu0 %v42
  %264 = vmatprep.subr.mxu0 0.0
  %265 = vmatpush2.msra.mxu0 %v41
  %266 = vmatprep.mubr.f32.mxu0 %v201
  %267 = vmatmul.mubr.f32.gmra.mxu0 %v200
  %v268 = vpop.f32.mrf.mxu0
  %v269 = vadd.f32 0.0, %v268
  %v270 = vpop.f32.mrf.mxu0
  %271 = vdwg.mxu0
  %v272 = vld [vmem:[%s3] sm:$0xff]
  %v273 = vld [vmem:[%s3 + $0x8] sm:$0xff]
  %274 = vmatprep.subr.mxu0 0.0
  %275 = vmatpush1.msra.mxu0 %v40
  %276 = vmatprep.subr.mxu0 0.0
  %277 = vmatpush1.msra.mxu0 %v39
  %278 = vmatprep.subr.mxu0 0.0
  %279 = vmatpush1.msra.mxu0 %v38
  %280 = vmatprep.subr.mxu0 0.0
  %281 = vmatpush1.msra.mxu0 %v37
  %282 = vmatprep.subr.mxu0 0.0
  %283 = vmatpush1.msra.mxu0 %v36
  %284 = vmatprep.subr.mxu0 0.0
  %285 = vmatpush1.msra.mxu0 %v35
  %286 = vmatprep.subr.mxu0 0.0
  %287 = vmatpush1.msra.mxu0 %v34
  %288 = vmatprep.subr.mxu0 0.0
  %289 = vmatpush1.msra.mxu0 %v33
  %290 = vmatprep.subr.mxu0 0.0
  %291 = vmatpush1.msra.mxu0 %v32
  %292 = vmatprep.subr.mxu0 0.0
  %293 = vmatpush1.msra.mxu0 %v31
  %294 = vmatprep.subr.mxu0 0.0
  %295 = vmatpush1.msra.mxu0 %v30
  %296 = vmatprep.subr.mxu0 0.0
  %297 = vmatpush1.msra.mxu0 %v29
  %298 = vmatprep.subr.mxu0 0.0
  %299 = vmatpush1.msra.mxu0 %v28
  %300 = vmatprep.subr.mxu0 0.0
  %301 = vmatpush1.msra.mxu0 %v27
  %302 = vmatprep.subr.mxu0 0.0
  %303 = vmatpush1.msra.mxu0 %v26
  %304 = vmatprep.subr.mxu0 0.0
  %305 = vmatpush1.msra.mxu0 %v25
  %306 = vmatprep.subr.mxu0 0.0
  %307 = vmatpush2.msra.mxu0 %v56
  %308 = vmatprep.subr.mxu0 0.0
  %309 = vmatpush2.msra.mxu0 %v55
  %310 = vmatprep.subr.mxu0 0.0
  %311 = vmatpush2.msra.mxu0 %v54
  %312 = vmatprep.subr.mxu0 0.0
  %313 = vmatpush2.msra.mxu0 %v53
  %314 = vmatprep.subr.mxu0 0.0
  %315 = vmatpush2.msra.mxu0 %v52
  %316 = vmatprep.subr.mxu0 0.0
  %317 = vmatpush2.msra.mxu0 %v51
  %318 = vmatprep.subr.mxu0 0.0
  %319 = vmatpush2.msra.mxu0 %v50
  %320 = vmatprep.subr.mxu0 0.0
  %321 = vmatpush2.msra.mxu0 %v49
  %322 = vmatprep.subr.mxu0 0.0
  %323 = vmatpush2.msra.mxu0 %v48
  %324 = vmatprep.subr.mxu0 0.0
  %325 = vmatpush2.msra.mxu0 %v47
  %326 = vmatprep.subr.mxu0 0.0
  %327 = vmatpush2.msra.mxu0 %v46
  %328 = vmatprep.subr.mxu0 0.0
  %329 = vmatpush2.msra.mxu0 %v45
  %330 = vmatprep.subr.mxu0 0.0
  %331 = vmatpush2.msra.mxu0 %v44
  %332 = vmatprep.subr.mxu0 0.0
  %333 = vmatpush2.msra.mxu0 %v43
  %334 = vmatprep.subr.mxu0 0.0
  %335 = vmatpush2.msra.mxu0 %v42
  %336 = vmatprep.subr.mxu0 0.0
  %337 = vmatpush2.msra.mxu0 %v41
  %338 = vmatprep.mubr.f32.mxu0 %v273
  %339 = vmatmul.mubr.f32.gmra.mxu0 %v272
  %v340 = vpop.f32.mrf.mxu0
  %v341 = vadd.f32 0.0, %v340
  %v342 = vpop.f32.mrf.mxu0
  %343 = vdwg.mxu0
  %v344 = vmax.f32 %v269, %v341
  %v345 = vmax.f32 %v199, %v344
  %v346 = vld [vmem:[%s5] sm:$0x1]
  %v348 = vlaneseq
  %v349 = vshrl.u32 %v348, 7
  %v350 = vsub.s32 0, %v349
  %v351 = vrot.slane %v346, %v350
  %v353 = vadd.f32 %v345, %v351
  %v354 = vmax.f32 %v353, 0.0
  %355 = vst [vmem:[%s6] sm:$0xff] %v354
  // Predicated region
  $region26: #{cnn_forward.6} parent=0 // pred_check
    _
  $region27: #{cnn_forward.6} parent=0 // pred_check_branch
    %357 = sbr.rel (0) target = $region29
  $region28: #{cnn_forward.6} parent=0 // pred_region
    _
  $region29: #{cnn_forward.6} parent=0 // pred_fallthru
    _
  // Predicated region
  $region30: #{cnn_forward.6} parent=0 // pred_check
    _
  $region31: #{cnn_forward.6} parent=0 // pred_check_branch
    %359 = sbr.rel (0) target = $region33
  $region32: #{cnn_forward.6} parent=0 // pred_region
    _
  $region33: #{cnn_forward.6} parent=0 // pred_fallthru
    _

// kernel: cnn_forward.5
$region0: #{cnn_forward.5}
  #allocation0 [shape = 'u32[]', space=smem, size = 0x4, offset = 0x4, fixed_abs, tag = 'smem constant byte address 0x4 - core index']
  #allocation1 [shape = 'u32[144,128]{1,0:T(1,128)}', space=vmem, size = 0x12000, scoped, tag = 'internal scratch']
  %s0 = inlined_call_operand.vmem [shape: f32[56,512], index: 0, kind: input, shape index: {}]
  %s1 = inlined_call_operand.vmem [shape: f32[56,512], index: 1, kind: input, shape index: {}]
  %s2 = inlined_call_operand.vmem [shape: f32[56,512], index: 2, kind: input, shape index: {}]
  %s3 = inlined_call_operand.vmem [shape: f32[56,512], index: 3, kind: input, shape index: {}]
  %s4 = inlined_call_operand.vmem [shape: f32[512,64], index: 4, kind: input, shape index: {}]
  %s5 = inlined_call_operand.vmem [shape: f32[1,64], index: 5, kind: input, shape index: {}]
  %s6 = inlined_call_operand.vmem [shape: f32[56,64], index: 6, kind: output, shape index: {}]
  %s7 = sld [smem:[#allocation0]]
  $region34: #{cnn_forward.5} parent=0
    _
  %s9 = ssub.s32 1, %s7
  %s10 = scalar_select 0, %s9, %s7
  // Predicated region
  $region2: #{cnn_forward.5} parent=0 // pred_check
    _
  $region3: #{cnn_forward.5} parent=0 // pred_check_branch
    %12 = sbr.rel (0) target = $region5
  $region4: #{cnn_forward.5} parent=0 // pred_region
    _
  $region5: #{cnn_forward.5} parent=0 // pred_fallthru
    _
  // Predicated region
  $region6: #{cnn_forward.5} parent=0 // pred_check
    _
  $region7: #{cnn_forward.5} parent=0 // pred_check_branch
    %14 = sbr.rel (0) target = $region9
  $region8: #{cnn_forward.5} parent=0 // pred_region
    _
  $region9: #{cnn_forward.5} parent=0 // pred_fallthru
    _
  // Predicated region
  $region10: #{cnn_forward.5} parent=0 // pred_check
    _
  $region11: #{cnn_forward.5} parent=0 // pred_check_branch
    %16 = sbr.rel (0) target = $region13
  $region12: #{cnn_forward.5} parent=0 // pred_region
    _
  $region13: #{cnn_forward.5} parent=0 // pred_fallthru
    _
  // Predicated region
  $region14: #{cnn_forward.5} parent=0 // pred_check
    _
  $region15: #{cnn_forward.5} parent=0 // pred_check_branch
    %18 = sbr.rel (0) target = $region17
  $region16: #{cnn_forward.5} parent=0 // pred_region
    _
  $region17: #{cnn_forward.5} parent=0 // pred_fallthru
    _
  // Predicated region
  $region18: #{cnn_forward.5} parent=0 // pred_check
    _
  $region19: #{cnn_forward.5} parent=0 // pred_check_branch
    %20 = sbr.rel (0) target = $region21
  $region20: #{cnn_forward.5} parent=0 // pred_region
    _
  $region21: #{cnn_forward.5} parent=0 // pred_fallthru
    _
  // Predicated region
  $region22: #{cnn_forward.5} parent=0 // pred_check
    _
  $region23: #{cnn_forward.5} parent=0 // pred_check_branch
    %22 = sbr.rel (0) target = $region25
  $region24: #{cnn_forward.5} parent=0 // pred_region
    _
  $region25: #{cnn_forward.5} parent=0 // pred_fallthru
    _
  %v23 = vld [vmem:[%s0] sm:$0xff]
  %v24 = vld [vmem:[%s0 + $0x8] sm:$0xff]
  %v25 = vld [vmem:[%s0 + $0x10] sm:$0xff]
  %v26 = vld [vmem:[%s0 + $0x18] sm:$0xff]
  %v27 = vld [vmem:[%s0 + $0x20] sm:$0xff]
  %v28 = vld [vmem:[%s0 + $0x28] sm:$0xff]
  %v29 = vld [vmem:[%s0 + $0x30] sm:$0xff]
  %v30 = vld [vmem:[%s0 + $0x38] sm:$0xff]
  %v31 = vld [vmem:[%s0 + $0x40] sm:$0xff]
  %v32 = vld [vmem:[%s0 + $0x48] sm:$0xff]
  %v33 = vld [vmem:[%s0 + $0x50] sm:$0xff]
  %v34 = vld [vmem:[%s0 + $0x58] sm:$0xff]
  %v35 = vld [vmem:[%s0 + $0x60] sm:$0xff]
  %v36 = vld [vmem:[%s0 + $0x68] sm:$0xff]
  %v37 = vld [vmem:[%s0 + $0x70] sm:$0xff]
  %v38 = vld [vmem:[%s0 + $0x78] sm:$0xff]
  %v39 = vld [vmem:[%s0 + $0x80] sm:$0xff]
  %v40 = vld [vmem:[%s0 + $0x88] sm:$0xff]
  %v41 = vld [vmem:[%s0 + $0x90] sm:$0xff]
  %v42 = vld [vmem:[%s0 + $0x98] sm:$0xff]
  %v43 = vld [vmem:[%s0 + $0xa0] sm:$0xff]
  %v44 = vld [vmem:[%s0 + $0xa8] sm:$0xff]
  %v45 = vld [vmem:[%s0 + $0xb0] sm:$0xff]
  %v46 = vld [vmem:[%s0 + $0xb8] sm:$0xff]
  %v47 = vld [vmem:[%s0 + $0xc0] sm:$0xff]
  %v48 = vld [vmem:[%s0 + $0xc8] sm:$0xff]
  %v49 = vld [vmem:[%s0 + $0xd0] sm:$0xff]
  %v50 = vld [vmem:[%s0 + $0xd8] sm:$0xff]
  %v51 = vld [vmem:[%s4] sm:$0xff]
  %v52 = vld [vmem:[%s4 + $0x8] sm:$0xff]
  %v53 = vld [vmem:[%s4 + $0x10] sm:$0xff]
  %v54 = vld [vmem:[%s4 + $0x18] sm:$0xff]
  %v55 = vld [vmem:[%s4 + $0x20] sm:$0xff]
  %v56 = vld [vmem:[%s4 + $0x28] sm:$0xff]
  %v57 = vld [vmem:[%s4 + $0x30] sm:$0xff]
  %v58 = vld [vmem:[%s4 + $0x38] sm:$0xff]
  %v59 = vld [vmem:[%s4 + $0x40] sm:$0xff]
  %v60 = vld [vmem:[%s4 + $0x48] sm:$0xff]
  %v61 = vld [vmem:[%s4 + $0x50] sm:$0xff]
  %v62 = vld [vmem:[%s4 + $0x58] sm:$0xff]
  %v63 = vld [vmem:[%s4 + $0x60] sm:$0xff]
  %v64 = vld [vmem:[%s4 + $0x68] sm:$0xff]
  %v65 = vld [vmem:[%s4 + $0x70] sm:$0xff]
  %v66 = vld [vmem:[%s4 + $0x78] sm:$0xff]
  %v67 = vld [vmem:[%s4 + $0x80] sm:$0xff]
  %v68 = vld [vmem:[%s4 + $0x88] sm:$0xff]
  %v69 = vld [vmem:[%s4 + $0x90] sm:$0xff]
  %v70 = vld [vmem:[%s4 + $0x98] sm:$0xff]
  %v71 = vld [vmem:[%s4 + $0xa0] sm:$0xff]
  %v72 = vld [vmem:[%s4 + $0xa8] sm:$0xff]
  %v73 = vld [vmem:[%s4 + $0xb0] sm:$0xff]
  %v74 = vld [vmem:[%s4 + $0xb8] sm:$0xff]
  %v75 = vld [vmem:[%s4 + $0xc0] sm:$0xff]
  %v76 = vld [vmem:[%s4 + $0xc8] sm:$0xff]
  %v77 = vld [vmem:[%s4 + $0xd0] sm:$0xff]
  %v78 = vld [vmem:[%s4 + $0xd8] sm:$0xff]
  %v79 = vld [vmem:[%s4 + $0xe0] sm:$0xff]
  %v80 = vld [vmem:[%s4 + $0xe8] sm:$0xff]
  %v81 = vld [vmem:[%s4 + $0xf0] sm:$0xff]
  %v82 = vld [vmem:[%s4 + $0xf8] sm:$0xff]
  %v83 = vld [vmem:[%s4 + $0x100] sm:$0xff]
  %v84 = vld [vmem:[%s4 + $0x108] sm:$0xff]
  %v85 = vld [vmem:[%s4 + $0x110] sm:$0xff]
  %v86 = vld [vmem:[%s4 + $0x118] sm:$0xff]
  %v87 = vld [vmem:[%s4 + $0x120] sm:$0xff]
  %v88 = vld [vmem:[%s4 + $0x128] sm:$0xff]
  %v89 = vld [vmem:[%s4 + $0x130] sm:$0xff]
  %v90 = vld [vmem:[%s4 + $0x138] sm:$0xff]
  %v91 = vld [vmem:[%s4 + $0x140] sm:$0xff]
  %v92 = vld [vmem:[%s4 + $0x148] sm:$0xff]
  %v93 = vld [vmem:[%s4 + $0x150] sm:$0xff]
  %v94 = vld [vmem:[%s4 + $0x158] sm:$0xff]
  %v95 = vld [vmem:[%s4 + $0x160] sm:$0xff]
  %v96 = vld [vmem:[%s4 + $0x168] sm:$0xff]
  %v97 = vld [vmem:[%s4 + $0x170] sm:$0xff]
  %v98 = vld [vmem:[%s4 + $0x178] sm:$0xff]
  %v99 = vld [vmem:[%s4 + $0x180] sm:$0xff]
  %v100 = vld [vmem:[%s4 + $0x188] sm:$0xff]
  %v101 = vld [vmem:[%s4 + $0x190] sm:$0xff]
  %v102 = vld [vmem:[%s4 + $0x198] sm:$0xff]
  %v103 = vld [vmem:[%s4 + $0x1a0] sm:$0xff]
  %v104 = vld [vmem:[%s4 + $0x1a8] sm:$0xff]
  %v105 = vld [vmem:[%s4 + $0x1b0] sm:$0xff]
  %v106 = vld [vmem:[%s4 + $0x1b8] sm:$0xff]
  %v107 = vld [vmem:[%s4 + $0x1c0] sm:$0xff]
  %v108 = vld [vmem:[%s4 + $0x1c8] sm:$0xff]
  %v109 = vld [vmem:[%s4 + $0x1d0] sm:$0xff]
  %v110 = vld [vmem:[%s4 + $0x1d8] sm:$0xff]
  %v111 = vld [vmem:[%s4 + $0x1e0] sm:$0xff]
  %v112 = vld [vmem:[%s4 + $0x1e8] sm:$0xff]
  %v113 = vld [vmem:[%s4 + $0x1f0] sm:$0xff]
  %v114 = vld [vmem:[%s4 + $0x1f8] sm:$0xff]
  %115 = vmatprep.subr.mxu0 0.0
  %116 = vmatpush1.msra.mxu0 %v66
  %117 = vmatprep.subr.mxu0 0.0
  %118 = vmatpush1.msra.mxu0 %v65
  %119 = vmatprep.subr.mxu0 0.0
  %120 = vmatpush1.msra.mxu0 %v64
  %121 = vmatprep.subr.mxu0 0.0
  %122 = vmatpush1.msra.mxu0 %v63
  %123 = vmatprep.subr.mxu0 0.0
  %124 = vmatpush1.msra.mxu0 %v62
  %125 = vmatprep.subr.mxu0 0.0
  %126 = vmatpush1.msra.mxu0 %v61
  %127 = vmatprep.subr.mxu0 0.0
  %128 = vmatpush1.msra.mxu0 %v60
  %129 = vmatprep.subr.mxu0 0.0
  %130 = vmatpush1.msra.mxu0 %v59
  %131 = vmatprep.subr.mxu0 0.0
  %132 = vmatpush1.msra.mxu0 %v58
  %133 = vmatprep.subr.mxu0 0.0
  %134 = vmatpush1.msra.mxu0 %v57
  %135 = vmatprep.subr.mxu0 0.0
  %136 = vmatpush1.msra.mxu0 %v56
  %137 = vmatprep.subr.mxu0 0.0
  %138 = vmatpush1.msra.mxu0 %v55
  %139 = vmatprep.subr.mxu0 0.0
  %140 = vmatpush1.msra.mxu0 %v54
  %141 = vmatprep.subr.mxu0 0.0
  %142 = vmatpush1.msra.mxu0 %v53
  %143 = vmatprep.subr.mxu0 0.0
  %144 = vmatpush1.msra.mxu0 %v52
  %145 = vmatprep.subr.mxu0 0.0
  %146 = vmatpush1.msra.mxu0 %v51
  %147 = vmatprep.subr.mxu0 0.0
  %148 = vmatpush2.msra.mxu0 %v82
  %149 = vmatprep.subr.mxu0 0.0
  %150 = vmatpush2.msra.mxu0 %v81
  %151 = vmatprep.subr.mxu0 0.0
  %152 = vmatpush2.msra.mxu0 %v80
  %153 = vmatprep.subr.mxu0 0.0
  %154 = vmatpush2.msra.mxu0 %v79
  %155 = vmatprep.subr.mxu0 0.0
  %156 = vmatpush2.msra.mxu0 %v78
  %157 = vmatprep.subr.mxu0 0.0
  %158 = vmatpush2.msra.mxu0 %v77
  %159 = vmatprep.subr.mxu0 0.0
  %160 = vmatpush2.msra.mxu0 %v76
  %161 = vmatprep.subr.mxu0 0.0
  %162 = vmatpush2.msra.mxu0 %v75
  %163 = vmatprep.subr.mxu0 0.0
  %164 = vmatpush2.msra.mxu0 %v74
  %165 = vmatprep.subr.mxu0 0.0
  %166 = vmatpush2.msra.mxu0 %v73
  %167 = vmatprep.subr.mxu0 0.0
  %168 = vmatpush2.msra.mxu0 %v72
  %169 = vmatprep.subr.mxu0 0.0
  %170 = vmatpush2.msra.mxu0 %v71
  %171 = vmatprep.subr.mxu0 0.0
  %172 = vmatpush2.msra.mxu0 %v70
  %173 = vmatprep.subr.mxu0 0.0
  %174 = vmatpush2.msra.mxu0 %v69
  %175 = vmatprep.subr.mxu0 0.0
  %176 = vmatpush2.msra.mxu0 %v68
  %177 = vmatprep.subr.mxu0 0.0
  %178 = vmatpush2.msra.mxu0 %v67
  %179 = vmatprep.mubr.f32.mxu0 %v24
  %180 = vmatmul.mubr.f32.gmra.mxu0 %v23
  %v181 = vpop.f32.mrf.mxu0
  %v182 = vadd.f32 0.0, %v181
  %v183 = vpop.f32.mrf.mxu0
  %184 = vmatprep.mubr.f32.mxu0 %v28
  %185 = vmatmul.mubr.f32.gmra.mxu0 %v27
  %v186 = vpop.f32.mrf.mxu0
  %v187 = vadd.f32 0.0, %v186
  %v188 = vpop.f32.mrf.mxu0
  %189 = vmatprep.mubr.f32.mxu0 %v32
  %190 = vmatmul.mubr.f32.gmra.mxu0 %v31
  %v191 = vpop.f32.mrf.mxu0
  %v192 = vadd.f32 0.0, %v191
  %v193 = vpop.f32.mrf.mxu0
  %194 = vmatprep.mubr.f32.mxu0 %v36
  %195 = vmatmul.mubr.f32.gmra.mxu0 %v35
  %v196 = vpop.f32.mrf.mxu0
  %v197 = vadd.f32 0.0, %v196
  %v198 = vpop.f32.mrf.mxu0
  %199 = vmatprep.mubr.f32.mxu0 %v40
  %200 = vmatmul.mubr.f32.gmra.mxu0 %v39
  %v201 = vpop.f32.mrf.mxu0
  %v202 = vadd.f32 0.0, %v201
  %v203 = vpop.f32.mrf.mxu0
  %204 = vmatprep.mubr.f32.mxu0 %v44
  %205 = vmatmul.mubr.f32.gmra.mxu0 %v43
  %v206 = vpop.f32.mrf.mxu0
  %v207 = vadd.f32 0.0, %v206
  %v208 = vpop.f32.mrf.mxu0
  %209 = vmatprep.mubr.f32.mxu0 %v48
  %210 = vmatmul.mubr.f32.gmra.mxu0 %v47
  %v211 = vpop.f32.mrf.mxu0
  %v212 = vadd.f32 0.0, %v211
  %v213 = vpop.f32.mrf.mxu0
  %214 = vdwg.mxu0
  %215 = vmatprep.subr.mxu0 0.0
  %216 = vmatpush1.msra.mxu0 %v98
  %217 = vmatprep.subr.mxu0 0.0
  %218 = vmatpush1.msra.mxu0 %v97
  %219 = vmatprep.subr.mxu0 0.0
  %220 = vmatpush1.msra.mxu0 %v96
  %221 = vmatprep.subr.mxu0 0.0
  %222 = vmatpush1.msra.mxu0 %v95
  %223 = vmatprep.subr.mxu0 0.0
  %224 = vmatpush1.msra.mxu0 %v94
  %225 = vmatprep.subr.mxu0 0.0
  %226 = vmatpush1.msra.mxu0 %v93
  %227 = vmatprep.subr.mxu0 0.0
  %228 = vmatpush1.msra.mxu0 %v92
  %229 = vmatprep.subr.mxu0 0.0
  %230 = vmatpush1.msra.mxu0 %v91
  %231 = vmatprep.subr.mxu0 0.0
  %232 = vmatpush1.msra.mxu0 %v90
  %233 = vmatprep.subr.mxu0 0.0
  %234 = vmatpush1.msra.mxu0 %v89
  %235 = vmatprep.subr.mxu0 0.0
  %236 = vmatpush1.msra.mxu0 %v88
  %237 = vmatprep.subr.mxu0 0.0
  %238 = vmatpush1.msra.mxu0 %v87
  %239 = vmatprep.subr.mxu0 0.0
  %240 = vmatpush1.msra.mxu0 %v86
  %241 = vmatprep.subr.mxu0 0.0
  %242 = vmatpush1.msra.mxu0 %v85
  %243 = vmatprep.subr.mxu0 0.0
  %244 = vmatpush1.msra.mxu0 %v84
  %245 = vmatprep.subr.mxu0 0.0
  %246 = vmatpush1.msra.mxu0 %v83
  %247 = vmatprep.subr.mxu0 0.0
  %248 = vmatpush2.msra.mxu0 %v114
  %249 = vmatprep.subr.mxu0 0.0
  %250 = vmatpush2.msra.mxu0 %v113
  %251 = vmatprep.subr.mxu0 0.0
  %252 = vmatpush2.msra.mxu0 %v112
  %253 = vmatprep.subr.mxu0 0.0
  %254 = vmatpush2.msra.mxu0 %v111
  %255 = vmatprep.subr.mxu0 0.0
  %256 = vmatpush2.msra.mxu0 %v110
  %257 = vmatprep.subr.mxu0 0.0
  %258 = vmatpush2.msra.mxu0 %v109
  %259 = vmatprep.subr.mxu0 0.0
  %260 = vmatpush2.msra.mxu0 %v108
  %261 = vmatprep.subr.mxu0 0.0
  %262 = vmatpush2.msra.mxu0 %v107
  %263 = vmatprep.subr.mxu0 0.0
  %264 = vmatpush2.msra.mxu0 %v106
  %265 = vmatprep.subr.mxu0 0.0
  %266 = vmatpush2.msra.mxu0 %v105
  %267 = vmatprep.subr.mxu0 0.0
  %268 = vmatpush2.msra.mxu0 %v104
  %269 = vmatprep.subr.mxu0 0.0
  %270 = vmatpush2.msra.mxu0 %v103
  %271 = vmatprep.subr.mxu0 0.0
  %272 = vmatpush2.msra.mxu0 %v102
  %273 = vmatprep.subr.mxu0 0.0
  %274 = vmatpush2.msra.mxu0 %v101
  %275 = vmatprep.subr.mxu0 0.0
  %276 = vmatpush2.msra.mxu0 %v100
  %277 = vmatprep.subr.mxu0 0.0
  %278 = vmatpush2.msra.mxu0 %v99
  %279 = vmatprep.mubr.f32.mxu0 %v26
  %280 = vmatmul.mubr.f32.gmra.mxu0 %v25
  %v281 = vpop.f32.mrf.mxu0
  %v282 = vadd.f32 %v182, %v281
  %v283 = vpop.f32.mrf.mxu0
  %284 = vmatprep.mubr.f32.mxu0 %v30
  %285 = vmatmul.mubr.f32.gmra.mxu0 %v29
  %v286 = vpop.f32.mrf.mxu0
  %v287 = vadd.f32 %v187, %v286
  %v288 = vpop.f32.mrf.mxu0
  %289 = vmatprep.mubr.f32.mxu0 %v34
  %290 = vmatmul.mubr.f32.gmra.mxu0 %v33
  %v291 = vpop.f32.mrf.mxu0
  %v292 = vadd.f32 %v192, %v291
  %v293 = vpop.f32.mrf.mxu0
  %294 = vmatprep.mubr.f32.mxu0 %v38
  %295 = vmatmul.mubr.f32.gmra.mxu0 %v37
  %v296 = vpop.f32.mrf.mxu0
  %v297 = vadd.f32 %v197, %v296
  %v298 = vpop.f32.mrf.mxu0
  %299 = vmatprep.mubr.f32.mxu0 %v42
  %300 = vmatmul.mubr.f32.gmra.mxu0 %v41
  %v301 = vpop.f32.mrf.mxu0
  %v302 = vadd.f32 %v202, %v301
  %v303 = vpop.f32.mrf.mxu0
  %304 = vmatprep.mubr.f32.mxu0 %v46
  %305 = vmatmul.mubr.f32.gmra.mxu0 %v45
  %v306 = vpop.f32.mrf.mxu0
  %v307 = vadd.f32 %v207, %v306
  %v308 = vpop.f32.mrf.mxu0
  %309 = vmatprep.mubr.f32.mxu0 %v50
  %310 = vmatmul.mubr.f32.gmra.mxu0 %v49
  %v311 = vpop.f32.mrf.mxu0
  %v312 = vadd.f32 %v212, %v311
  %v313 = vpop.f32.mrf.mxu0
  %314 = vdwg.mxu0
  %v315 = vld [vmem:[%s1] sm:$0xff]
  %v316 = vld [vmem:[%s1 + $0x8] sm:$0xff]
  %v317 = vld [vmem:[%s1 + $0x10] sm:$0xff]
  %v318 = vld [vmem:[%s1 + $0x18] sm:$0xff]
  %v319 = vld [vmem:[%s1 + $0x20] sm:$0xff]
  %v320 = vld [vmem:[%s1 + $0x28] sm:$0xff]
  %v321 = vld [vmem:[%s1 + $0x30] sm:$0xff]
  %v322 = vld [vmem:[%s1 + $0x38] sm:$0xff]
  %v323 = vld [vmem:[%s1 + $0x40] sm:$0xff]
  %v324 = vld [vmem:[%s1 + $0x48] sm:$0xff]
  %v325 = vld [vmem:[%s1 + $0x50] sm:$0xff]
  %v326 = vld [vmem:[%s1 + $0x58] sm:$0xff]
  %v327 = vld [vmem:[%s1 + $0x60] sm:$0xff]
  %v328 = vld [vmem:[%s1 + $0x68] sm:$0xff]
  %v329 = vld [vmem:[%s1 + $0x70] sm:$0xff]
  %v330 = vld [vmem:[%s1 + $0x78] sm:$0xff]
  %v331 = vld [vmem:[%s1 + $0x80] sm:$0xff]
  %v332 = vld [vmem:[%s1 + $0x88] sm:$0xff]
  %v333 = vld [vmem:[%s1 + $0x90] sm:$0xff]
  %v334 = vld [vmem:[%s1 + $0x98] sm:$0xff]
  %v335 = vld [vmem:[%s1 + $0xa0] sm:$0xff]
  %v336 = vld [vmem:[%s1 + $0xa8] sm:$0xff]
  %v337 = vld [vmem:[%s1 + $0xb0] sm:$0xff]
  %v338 = vld [vmem:[%s1 + $0xb8] sm:$0xff]
  %v339 = vld [vmem:[%s1 + $0xc0] sm:$0xff]
  %v340 = vld [vmem:[%s1 + $0xc8] sm:$0xff]
  %v341 = vld [vmem:[%s1 + $0xd0] sm:$0xff]
  %v342 = vld [vmem:[%s1 + $0xd8] sm:$0xff]
  %343 = vmatprep.subr.mxu0 0.0
  %344 = vmatpush1.msra.mxu0 %v66
  %345 = vmatprep.subr.mxu0 0.0
  %346 = vmatpush1.msra.mxu0 %v65
  %347 = vmatprep.subr.mxu0 0.0
  %348 = vmatpush1.msra.mxu0 %v64
  %349 = vmatprep.subr.mxu0 0.0
  %350 = vmatpush1.msra.mxu0 %v63
  %351 = vmatprep.subr.mxu0 0.0
  %352 = vmatpush1.msra.mxu0 %v62
  %353 = vmatprep.subr.mxu0 0.0
  %354 = vmatpush1.msra.mxu0 %v61
  %355 = vmatprep.subr.mxu0 0.0
  %356 = vmatpush1.msra.mxu0 %v60
  %357 = vmatprep.subr.mxu0 0.0
  %358 = vmatpush1.msra.mxu0 %v59
  %359 = vmatprep.subr.mxu0 0.0
  %360 = vmatpush1.msra.mxu0 %v58
  %361 = vmatprep.subr.mxu0 0.0
  %362 = vmatpush1.msra.mxu0 %v57
  %363 = vmatprep.subr.mxu0 0.0
  %364 = vmatpush1.msra.mxu0 %v56
  %365 = vmatprep.subr.mxu0 0.0
  %366 = vmatpush1.msra.mxu0 %v55
  %367 = vmatprep.subr.mxu0 0.0
  %368 = vmatpush1.msra.mxu0 %v54
  %369 = vmatprep.subr.mxu0 0.0
  %370 = vmatpush1.msra.mxu0 %v53
  %371 = vmatprep.subr.mxu0 0.0
  %372 = vmatpush1.msra.mxu0 %v52
  %373 = vmatprep.subr.mxu0 0.0
  %374 = vmatpush1.msra.mxu0 %v51
  %375 = vmatprep.subr.mxu0 0.0
  %376 = vmatpush2.msra.mxu0 %v82
  %377 = vmatprep.subr.mxu0 0.0
  %378 = vmatpush2.msra.mxu0 %v81
  %379 = vmatprep.subr.mxu0 0.0
  %380 = vmatpush2.msra.mxu0 %v80
  %381 = vmatprep.subr.mxu0 0.0
  %382 = vmatpush2.msra.mxu0 %v79
  %383 = vmatprep.subr.mxu0 0.0
  %384 = vmatpush2.msra.mxu0 %v78
  %385 = vmatprep.subr.mxu0 0.0
  %386 = vmatpush2.msra.mxu0 %v77
  %387 = vmatprep.subr.mxu0 0.0
  %388 = vmatpush2.msra.mxu0 %v76
  %389 = vmatprep.subr.mxu0 0.0
  %390 = vmatpush2.msra.mxu0 %v75
  %391 = vmatprep.subr.mxu0 0.0
  %392 = vmatpush2.msra.mxu0 %v74
  %393 = vmatprep.subr.mxu0 0.0
  %394 = vmatpush2.msra.mxu0 %v73
  %395 = vmatprep.subr.mxu0 0.0
  %396 = vmatpush2.msra.mxu0 %v72
  %397 = vmatprep.subr.mxu0 0.0
  %398 = vmatpush2.msra.mxu0 %v71
  %399 = vmatprep.subr.mxu0 0.0
  %400 = vmatpush2.msra.mxu0 %v70
  %401 = vmatprep.subr.mxu0 0.0
  %402 = vmatpush2.msra.mxu0 %v69
  %403 = vmatprep.subr.mxu0 0.0
  %404 = vmatpush2.msra.mxu0 %v68
  %405 = vmatprep.subr.mxu0 0.0
  %406 = vmatpush2.msra.mxu0 %v67
  %407 = vmatprep.mubr.f32.mxu0 %v316
  %408 = vmatmul.mubr.f32.gmra.mxu0 %v315
  %v409 = vpop.f32.mrf.mxu0
  %v410 = vadd.f32 0.0, %v409
  %v411 = vpop.f32.mrf.mxu0
  %412 = vmatprep.mubr.f32.mxu0 %v320
  %413 = vmatmul.mubr.f32.gmra.mxu0 %v319
  %v414 = vpop.f32.mrf.mxu0
  %v415 = vadd.f32 0.0, %v414
  %v416 = vpop.f32.mrf.mxu0
  %417 = vmatprep.mubr.f32.mxu0 %v324
  %418 = vmatmul.mubr.f32.gmra.mxu0 %v323
  %v419 = vpop.f32.mrf.mxu0
  %v420 = vadd.f32 0.0, %v419
  %v421 = vpop.f32.mrf.mxu0
  %422 = vmatprep.mubr.f32.mxu0 %v328
  %423 = vmatmul.mubr.f32.gmra.mxu0 %v327
  %v424 = vpop.f32.mrf.mxu0
  %v425 = vadd.f32 0.0, %v424
  %v426 = vpop.f32.mrf.mxu0
  %427 = vmatprep.mubr.f32.mxu0 %v332
  %428 = vmatmul.mubr.f32.gmra.mxu0 %v331
  %v429 = vpop.f32.mrf.mxu0
  %v430 = vadd.f32 0.0, %v429
  %v431 = vpop.f32.mrf.mxu0
  %432 = vmatprep.mubr.f32.mxu0 %v336
  %433 = vmatmul.mubr.f32.gmra.mxu0 %v335
  %v434 = vpop.f32.mrf.mxu0
  %v435 = vadd.f32 0.0, %v434
  %v436 = vpop.f32.mrf.mxu0
  %437 = vmatprep.mubr.f32.mxu0 %v340
  %438 = vmatmul.mubr.f32.gmra.mxu0 %v339
  %v439 = vpop.f32.mrf.mxu0
  %v440 = vadd.f32 0.0, %v439
  %v441 = vpop.f32.mrf.mxu0
  %442 = vdwg.mxu0
  %443 = vmatprep.subr.mxu0 0.0
  %444 = vmatpush1.msra.mxu0 %v98
  %445 = vmatprep.subr.mxu0 0.0
  %446 = vmatpush1.msra.mxu0 %v97
  %447 = vmatprep.subr.mxu0 0.0
  %448 = vmatpush1.msra.mxu0 %v96
  %449 = vmatprep.subr.mxu0 0.0
  %450 = vmatpush1.msra.mxu0 %v95
  %451 = vmatprep.subr.mxu0 0.0
  %452 = vmatpush1.msra.mxu0 %v94
  %453 = vmatprep.subr.mxu0 0.0
  %454 = vmatpush1.msra.mxu0 %v93
  %455 = vmatprep.subr.mxu0 0.0
  %456 = vmatpush1.msra.mxu0 %v92
  %457 = vmatprep.subr.mxu0 0.0
  %458 = vmatpush1.msra.mxu0 %v91
  %459 = vmatprep.subr.mxu0 0.0
  %460 = vmatpush1.msra.mxu0 %v90
  %461 = vmatprep.subr.mxu0 0.0
  %462 = vmatpush1.msra.mxu0 %v89
  %463 = vmatprep.subr.mxu0 0.0
  %464 = vmatpush1.msra.mxu0 %v88
  %465 = vmatprep.subr.mxu0 0.0
  %466 = vmatpush1.msra.mxu0 %v87
  %467 = vmatprep.subr.mxu0 0.0
  %468 = vmatpush1.msra.mxu0 %v86
  %469 = vmatprep.subr.mxu0 0.0
  %470 = vmatpush1.msra.mxu0 %v85
  %471 = vmatprep.subr.mxu0 0.0
  %472 = vmatpush1.msra.mxu0 %v84
  %473 = vmatprep.subr.mxu0 0.0
  %474 = vmatpush1.msra.mxu0 %v83
  %475 = vmatprep.subr.mxu0 0.0
  %476 = vmatpush2.msra.mxu0 %v114
  %477 = vmatprep.subr.mxu0 0.0
  %478 = vmatpush2.msra.mxu0 %v113
  %479 = vmatprep.subr.mxu0 0.0
  %480 = vmatpush2.msra.mxu0 %v112
  %481 = vmatprep.subr.mxu0 0.0
  %482 = vmatpush2.msra.mxu0 %v111
  %483 = vmatprep.subr.mxu0 0.0
  %484 = vmatpush2.msra.mxu0 %v110
  %485 = vmatprep.subr.mxu0 0.0
  %486 = vmatpush2.msra.mxu0 %v109
  %487 = vmatprep.subr.mxu0 0.0
  %488 = vmatpush2.msra.mxu0 %v108
  %489 = vmatprep.subr.mxu0 0.0
  %490 = vmatpush2.msra.mxu0 %v107
  %491 = vmatprep.subr.mxu0 0.0
  %492 = vmatpush2.msra.mxu0 %v106
  %493 = vmatprep.subr.mxu0 0.0
  %494 = vmatpush2.msra.mxu0 %v105
  %495 = vmatprep.subr.mxu0 0.0
  %496 = vmatpush2.msra.mxu0 %v104
  %497 = vmatprep.subr.mxu0 0.0
  %498 = vmatpush2.msra.mxu0 %v103
  %499 = vmatprep.subr.mxu0 0.0
  %500 = vmatpush2.msra.mxu0 %v102
  %501 = vmatprep.subr.mxu0 0.0
  %502 = vmatpush2.msra.mxu0 %v101
  %503 = vmatprep.subr.mxu0 0.0
  %504 = vmatpush2.msra.mxu0 %v100
  %505 = vmatprep.subr.mxu0 0.0
  %506 = vmatpush2.msra.mxu0 %v99
  %507 = vmatprep.mubr.f32.mxu0 %v318
  %508 = vmatmul.mubr.f32.gmra.mxu0 %v317
  %v509 = vpop.f32.mrf.mxu0
  %v510 = vadd.f32 %v410, %v509
  %v511 = vpop.f32.mrf.mxu0
  %512 = vmatprep.mubr.f32.mxu0 %v322
  %513 = vmatmul.mubr.f32.gmra.mxu0 %v321
  %v514 = vpop.f32.mrf.mxu0
  %v515 = vadd.f32 %v415, %v514
  %v516 = vpop.f32.mrf.mxu0
  %517 = vmatprep.mubr.f32.mxu0 %v326
  %518 = vmatmul.mubr.f32.gmra.mxu0 %v325
  %v519 = vpop.f32.mrf.mxu0
  %v520 = vadd.f32 %v420, %v519
  %v521 = vpop.f32.mrf.mxu0
  %522 = vmatprep.mubr.f32.mxu0 %v330
  %523 = vmatmul.mubr.f32.gmra.mxu0 %v329
  %v524 = vpop.f32.mrf.mxu0
  %v525 = vadd.f32 %v425, %v524
  %v526 = vpop.f32.mrf.mxu0
  %527 = vmatprep.mubr.f32.mxu0 %v334
  %528 = vmatmul.mubr.f32.gmra.mxu0 %v333
  %v529 = vpop.f32.mrf.mxu0
  %v530 = vadd.f32 %v430, %v529
  %v531 = vpop.f32.mrf.mxu0
  %532 = vmatprep.mubr.f32.mxu0 %v338
  %533 = vmatmul.mubr.f32.gmra.mxu0 %v337
  %v534 = vpop.f32.mrf.mxu0
  %v535 = vadd.f32 %v435, %v534
  %v536 = vpop.f32.mrf.mxu0
  %537 = vmatprep.mubr.f32.mxu0 %v342
  %538 = vmatmul.mubr.f32.gmra.mxu0 %v341
  %v539 = vpop.f32.mrf.mxu0
  %v540 = vadd.f32 %v440, %v539
  %v541 = vpop.f32.mrf.mxu0
  %542 = vdwg.mxu0
  %v543 = vmax.f32 %v282, %v510
  %v544 = vmax.f32 %v287, %v515
  %v545 = vmax.f32 %v292, %v520
  %v546 = vmax.f32 %v297, %v525
  %v547 = vmax.f32 %v302, %v530
  %v548 = vmax.f32 %v307, %v535
  %v549 = vmax.f32 %v312, %v540
  %v550 = vld [vmem:[%s2] sm:$0xff]
  %v551 = vld [vmem:[%s2 + $0x8] sm:$0xff]
  %v552 = vld [vmem:[%s2 + $0x10] sm:$0xff]
  %v553 = vld [vmem:[%s2 + $0x18] sm:$0xff]
  %v554 = vld [vmem:[%s2 + $0x20] sm:$0xff]
  %v555 = vld [vmem:[%s2 + $0x28] sm:$0xff]
  %v556 = vld [vmem:[%s2 + $0x30] sm:$0xff]
  %v557 = vld [vmem:[%s2 + $0x38] sm:$0xff]
  %v558 = vld [vmem:[%s2 + $0x40] sm:$0xff]
  %v559 = vld [vmem:[%s2 + $0x48] sm:$0xff]
  %v560 = vld [vmem:[%s2 + $0x50] sm:$0xff]
  %v561 = vld [vmem:[%s2 + $0x58] sm:$0xff]
  %v562 = vld [vmem:[%s2 + $0x60] sm:$0xff]
  %v563 = vld [vmem:[%s2 + $0x68] sm:$0xff]
  %v564 = vld [vmem:[%s2 + $0x70] sm:$0xff]
  %v565 = vld [vmem:[%s2 + $0x78] sm:$0xff]
  %v566 = vld [vmem:[%s2 + $0x80] sm:$0xff]
  %v567 = vld [vmem:[%s2 + $0x88] sm:$0xff]
  %v568 = vld [vmem:[%s2 + $0x90] sm:$0xff]
  %v569 = vld [vmem:[%s2 + $0x98] sm:$0xff]
  %v570 = vld [vmem:[%s2 + $0xa0] sm:$0xff]
  %v571 = vld [vmem:[%s2 + $0xa8] sm:$0xff]
  %v572 = vld [vmem:[%s2 + $0xb0] sm:$0xff]
  %v573 = vld [vmem:[%s2 + $0xb8] sm:$0xff]
  %v574 = vld [vmem:[%s2 + $0xc0] sm:$0xff]
  %v575 = vld [vmem:[%s2 + $0xc8] sm:$0xff]
  %v576 = vld [vmem:[%s2 + $0xd0] sm:$0xff]
  %v577 = vld [vmem:[%s2 + $0xd8] sm:$0xff]
  %578 = vmatprep.subr.mxu0 0.0
  %579 = vmatpush1.msra.mxu0 %v66
  %580 = vmatprep.subr.mxu0 0.0
  %581 = vmatpush1.msra.mxu0 %v65
  %582 = vmatprep.subr.mxu0 0.0
  %583 = vmatpush1.msra.mxu0 %v64
  %584 = vmatprep.subr.mxu0 0.0
  %585 = vmatpush1.msra.mxu0 %v63
  %586 = vmatprep.subr.mxu0 0.0
  %587 = vmatpush1.msra.mxu0 %v62
  %588 = vmatprep.subr.mxu0 0.0
  %589 = vmatpush1.msra.mxu0 %v61
  %590 = vmatprep.subr.mxu0 0.0
  %591 = vmatpush1.msra.mxu0 %v60
  %592 = vmatprep.subr.mxu0 0.0
  %593 = vmatpush1.msra.mxu0 %v59
  %594 = vmatprep.subr.mxu0 0.0
  %595 = vmatpush1.msra.mxu0 %v58
  %596 = vmatprep.subr.mxu0 0.0
  %597 = vmatpush1.msra.mxu0 %v57
  %598 = vmatprep.subr.mxu0 0.0
  %599 = vmatpush1.msra.mxu0 %v56
  %600 = vmatprep.subr.mxu0 0.0
  %601 = vmatpush1.msra.mxu0 %v55
  %602 = vmatprep.subr.mxu0 0.0
  %603 = vmatpush1.msra.mxu0 %v54
  %604 = vmatprep.subr.mxu0 0.0
  %605 = vmatpush1.msra.mxu0 %v53
  %606 = vmatprep.subr.mxu0 0.0
  %607 = vmatpush1.msra.mxu0 %v52
  %608 = vmatprep.subr.mxu0 0.0
  %609 = vmatpush1.msra.mxu0 %v51
  %610 = vmatprep.subr.mxu0 0.0
  %611 = vmatpush2.msra.mxu0 %v82
  %612 = vmatprep.subr.mxu0 0.0
  %613 = vmatpush2.msra.mxu0 %v81
  %614 = vmatprep.subr.mxu0 0.0
  %615 = vmatpush2.msra.mxu0 %v80
  %616 = vmatprep.subr.mxu0 0.0
  %617 = vmatpush2.msra.mxu0 %v79
  %618 = vmatprep.subr.mxu0 0.0
  %619 = vmatpush2.msra.mxu0 %v78
  %620 = vmatprep.subr.mxu0 0.0
  %621 = vmatpush2.msra.mxu0 %v77
  %622 = vmatprep.subr.mxu0 0.0
  %623 = vmatpush2.msra.mxu0 %v76
  %624 = vmatprep.subr.mxu0 0.0
  %625 = vmatpush2.msra.mxu0 %v75
  %626 = vmatprep.subr.mxu0 0.0
  %627 = vmatpush2.msra.mxu0 %v74
  %628 = vmatprep.subr.mxu0 0.0
  %629 = vmatpush2.msra.mxu0 %v73
  %630 = vmatprep.subr.mxu0 0.0
  %631 = vmatpush2.msra.mxu0 %v72
  %632 = vmatprep.subr.mxu0 0.0
  %633 = vmatpush2.msra.mxu0 %v71
  %634 = vmatprep.subr.mxu0 0.0
  %635 = vmatpush2.msra.mxu0 %v70
  %636 = vmatprep.subr.mxu0 0.0
  %637 = vmatpush2.msra.mxu0 %v69
  %638 = vmatprep.subr.mxu0 0.0
  %639 = vmatpush2.msra.mxu0 %v68
  %640 = vmatprep.subr.mxu0 0.0
  %641 = vmatpush2.msra.mxu0 %v67
  %642 = vmatprep.mubr.f32.mxu0 %v551
  %643 = vmatmul.mubr.f32.gmra.mxu0 %v550
  %v644 = vpop.f32.mrf.mxu0
  %v645 = vadd.f32 0.0, %v644
  %v646 = vpop.f32.mrf.mxu0
  %647 = vmatprep.mubr.f32.mxu0 %v555
  %648 = vmatmul.mubr.f32.gmra.mxu0 %v554
  %v649 = vpop.f32.mrf.mxu0
  %v650 = vadd.f32 0.0, %v649
  %v651 = vpop.f32.mrf.mxu0
  %652 = vmatprep.mubr.f32.mxu0 %v559
  %653 = vmatmul.mubr.f32.gmra.mxu0 %v558
  %v654 = vpop.f32.mrf.mxu0
  %v655 = vadd.f32 0.0, %v654
  %v656 = vpop.f32.mrf.mxu0
  %657 = vmatprep.mubr.f32.mxu0 %v563
  %658 = vmatmul.mubr.f32.gmra.mxu0 %v562
  %v659 = vpop.f32.mrf.mxu0
  %v660 = vadd.f32 0.0, %v659
  %v661 = vpop.f32.mrf.mxu0
  %662 = vmatprep.mubr.f32.mxu0 %v567
  %663 = vmatmul.mubr.f32.gmra.mxu0 %v566
  %v664 = vpop.f32.mrf.mxu0
  %v665 = vadd.f32 0.0, %v664
  %v666 = vpop.f32.mrf.mxu0
  %667 = vmatprep.mubr.f32.mxu0 %v571
  %668 = vmatmul.mubr.f32.gmra.mxu0 %v570
  %v669 = vpop.f32.mrf.mxu0
  %v670 = vadd.f32 0.0, %v669
  %v671 = vpop.f32.mrf.mxu0
  %672 = vmatprep.mubr.f32.mxu0 %v575
  %673 = vmatmul.mubr.f32.gmra.mxu0 %v574
  %v674 = vpop.f32.mrf.mxu0
  %v675 = vadd.f32 0.0, %v674
  %v676 = vpop.f32.mrf.mxu0
  %677 = vdwg.mxu0
  %678 = vmatprep.subr.mxu0 0.0
  %679 = vmatpush1.msra.mxu0 %v98
  %680 = vmatprep.subr.mxu0 0.0
  %681 = vmatpush1.msra.mxu0 %v97
  %682 = vmatprep.subr.mxu0 0.0
  %683 = vmatpush1.msra.mxu0 %v96
  %684 = vmatprep.subr.mxu0 0.0
  %685 = vmatpush1.msra.mxu0 %v95
  %686 = vmatprep.subr.mxu0 0.0
  %687 = vmatpush1.msra.mxu0 %v94
  %688 = vmatprep.subr.mxu0 0.0
  %689 = vmatpush1.msra.mxu0 %v93
  %690 = vmatprep.subr.mxu0 0.0
  %691 = vmatpush1.msra.mxu0 %v92
  %692 = vmatprep.subr.mxu0 0.0
  %693 = vmatpush1.msra.mxu0 %v91
  %694 = vmatprep.subr.mxu0 0.0
  %695 = vmatpush1.msra.mxu0 %v90
  %696 = vmatprep.subr.mxu0 0.0
  %697 = vmatpush1.msra.mxu0 %v89
  %698 = vmatprep.subr.mxu0 0.0
  %699 = vmatpush1.msra.mxu0 %v88
  %700 = vmatprep.subr.mxu0 0.0
  %701 = vmatpush1.msra.mxu0 %v87
  %702 = vmatprep.subr.mxu0 0.0
  %703 = vmatpush1.msra.mxu0 %v86
  %704 = vmatprep.subr.mxu0 0.0
  %705 = vmatpush1.msra.mxu0 %v85
  %706 = vmatprep.subr.mxu0 0.0
  %707 = vmatpush1.msra.mxu0 %v84
  %708 = vmatprep.subr.mxu0 0.0
  %709 = vmatpush1.msra.mxu0 %v83
  %710 = vmatprep.subr.mxu0 0.0
  %711 = vmatpush2.msra.mxu0 %v114
  %712 = vmatprep.subr.mxu0 0.0
  %713 = vmatpush2.msra.mxu0 %v113
  %714 = vmatprep.subr.mxu0 0.0
  %715 = vmatpush2.msra.mxu0 %v112
  %716 = vmatprep.subr.mxu0 0.0
  %717 = vmatpush2.msra.mxu0 %v111
  %718 = vmatprep.subr.mxu0 0.0
  %719 = vmatpush2.msra.mxu0 %v110
  %720 = vmatprep.subr.mxu0 0.0
  %721 = vmatpush2.msra.mxu0 %v109
  %722 = vmatprep.subr.mxu0 0.0
  %723 = vmatpush2.msra.mxu0 %v108
  %724 = vmatprep.subr.mxu0 0.0
  %725 = vmatpush2.msra.mxu0 %v107
  %726 = vmatprep.subr.mxu0 0.0
  %727 = vmatpush2.msra.mxu0 %v106
  %728 = vmatprep.subr.mxu0 0.0
  %729 = vmatpush2.msra.mxu0 %v105
  %730 = vmatprep.subr.mxu0 0.0
  %731 = vmatpush2.msra.mxu0 %v104
  %732 = vmatprep.subr.mxu0 0.0
  %733 = vmatpush2.msra.mxu0 %v103
  %734 = vmatprep.subr.mxu0 0.0
  %735 = vmatpush2.msra.mxu0 %v102
  %736 = vmatprep.subr.mxu0 0.0
  %737 = vmatpush2.msra.mxu0 %v101
  %738 = vmatprep.subr.mxu0 0.0
  %739 = vmatpush2.msra.mxu0 %v100
  %740 = vmatprep.subr.mxu0 0.0
  %741 = vmatpush2.msra.mxu0 %v99
  %742 = vmatprep.mubr.f32.mxu0 %v553
  %743 = vmatmul.mubr.f32.gmra.mxu0 %v552
  %v744 = vpop.f32.mrf.mxu0
  %v745 = vadd.f32 %v645, %v744
  %v746 = vpop.f32.mrf.mxu0
  %747 = vmatprep.mubr.f32.mxu0 %v557
  %748 = vmatmul.mubr.f32.gmra.mxu0 %v556
  %v749 = vpop.f32.mrf.mxu0
  %v750 = vadd.f32 %v650, %v749
  %v751 = vpop.f32.mrf.mxu0
  %752 = vmatprep.mubr.f32.mxu0 %v561
  %753 = vmatmul.mubr.f32.gmra.mxu0 %v560
  %v754 = vpop.f32.mrf.mxu0
  %v755 = vadd.f32 %v655, %v754
  %v756 = vpop.f32.mrf.mxu0
  %757 = vmatprep.mubr.f32.mxu0 %v565
  %758 = vmatmul.mubr.f32.gmra.mxu0 %v564
  %v759 = vpop.f32.mrf.mxu0
  %v760 = vadd.f32 %v660, %v759
  %v761 = vpop.f32.mrf.mxu0
  %762 = vmatprep.mubr.f32.mxu0 %v569
  %763 = vmatmul.mubr.f32.gmra.mxu0 %v568
  %v764 = vpop.f32.mrf.mxu0
  %v765 = vadd.f32 %v665, %v764
  %v766 = vpop.f32.mrf.mxu0
  %767 = vmatprep.mubr.f32.mxu0 %v573
  %768 = vmatmul.mubr.f32.gmra.mxu0 %v572
  %v769 = vpop.f32.mrf.mxu0
  %v770 = vadd.f32 %v670, %v769
  %v771 = vpop.f32.mrf.mxu0
  %772 = vmatprep.mubr.f32.mxu0 %v577
  %773 = vmatmul.mubr.f32.gmra.mxu0 %v576
  %v774 = vpop.f32.mrf.mxu0
  %v775 = vadd.f32 %v675, %v774
  %v776 = vpop.f32.mrf.mxu0
  %777 = vdwg.mxu0
  %v778 = vld [vmem:[%s3] sm:$0xff]
  %v779 = vld [vmem:[%s3 + $0x8] sm:$0xff]
  %v780 = vld [vmem:[%s3 + $0x10] sm:$0xff]
  %v781 = vld [vmem:[%s3 + $0x18] sm:$0xff]
  %v782 = vld [vmem:[%s3 + $0x20] sm:$0xff]
  %v783 = vld [vmem:[%s3 + $0x28] sm:$0xff]
  %v784 = vld [vmem:[%s3 + $0x30] sm:$0xff]
  %v785 = vld [vmem:[%s3 + $0x38] sm:$0xff]
  %v786 = vld [vmem:[%s3 + $0x40] sm:$0xff]
  %v787 = vld [vmem:[%s3 + $0x48] sm:$0xff]
  %v788 = vld [vmem:[%s3 + $0x50] sm:$0xff]
  %v789 = vld [vmem:[%s3 + $0x58] sm:$0xff]
  %v790 = vld [vmem:[%s3 + $0x60] sm:$0xff]
  %v791 = vld [vmem:[%s3 + $0x68] sm:$0xff]
  %v792 = vld [vmem:[%s3 + $0x70] sm:$0xff]
  %v793 = vld [vmem:[%s3 + $0x78] sm:$0xff]
  %v794 = vld [vmem:[%s3 + $0x80] sm:$0xff]
  %v795 = vld [vmem:[%s3 + $0x88] sm:$0xff]
  %v796 = vld [vmem:[%s3 + $0x90] sm:$0xff]
  %v797 = vld [vmem:[%s3 + $0x98] sm:$0xff]
  %v798 = vld [vmem:[%s3 + $0xa0] sm:$0xff]
  %v799 = vld [vmem:[%s3 + $0xa8] sm:$0xff]
  %v800 = vld [vmem:[%s3 + $0xb0] sm:$0xff]
  %v801 = vld [vmem:[%s3 + $0xb8] sm:$0xff]
  %v802 = vld [vmem:[%s3 + $0xc0] sm:$0xff]
  %v803 = vld [vmem:[%s3 + $0xc8] sm:$0xff]
  %v804 = vld [vmem:[%s3 + $0xd0] sm:$0xff]
  %v805 = vld [vmem:[%s3 + $0xd8] sm:$0xff]
  %806 = vmatprep.subr.mxu0 0.0
  %807 = vmatpush1.msra.mxu0 %v66
  %808 = vmatprep.subr.mxu0 0.0
  %809 = vmatpush1.msra.mxu0 %v65
  %810 = vmatprep.subr.mxu0 0.0
  %811 = vmatpush1.msra.mxu0 %v64
  %812 = vmatprep.subr.mxu0 0.0
  %813 = vmatpush1.msra.mxu0 %v63
  %814 = vmatprep.subr.mxu0 0.0
  %815 = vmatpush1.msra.mxu0 %v62
  %816 = vmatprep.subr.mxu0 0.0
  %817 = vmatpush1.msra.mxu0 %v61
  %818 = vmatprep.subr.mxu0 0.0
  %819 = vmatpush1.msra.mxu0 %v60
  %820 = vmatprep.subr.mxu0 0.0
  %821 = vmatpush1.msra.mxu0 %v59
  %822 = vmatprep.subr.mxu0 0.0
  %823 = vmatpush1.msra.mxu0 %v58
  %824 = vmatprep.subr.mxu0 0.0
  %825 = vmatpush1.msra.mxu0 %v57
  %826 = vmatprep.subr.mxu0 0.0
  %827 = vmatpush1.msra.mxu0 %v56
  %828 = vmatprep.subr.mxu0 0.0
  %829 = vmatpush1.msra.mxu0 %v55
  %830 = vmatprep.subr.mxu0 0.0
  %831 = vmatpush1.msra.mxu0 %v54
  %832 = vmatprep.subr.mxu0 0.0
  %833 = vmatpush1.msra.mxu0 %v53
  %834 = vmatprep.subr.mxu0 0.0
  %835 = vmatpush1.msra.mxu0 %v52
  %836 = vmatprep.subr.mxu0 0.0
  %837 = vmatpush1.msra.mxu0 %v51
  %838 = vmatprep.subr.mxu0 0.0
  %839 = vmatpush2.msra.mxu0 %v82
  %840 = vmatprep.subr.mxu0 0.0
  %841 = vmatpush2.msra.mxu0 %v81
  %842 = vmatprep.subr.mxu0 0.0
  %843 = vmatpush2.msra.mxu0 %v80
  %844 = vmatprep.subr.mxu0 0.0
  %845 = vmatpush2.msra.mxu0 %v79
  %846 = vmatprep.subr.mxu0 0.0
  %847 = vmatpush2.msra.mxu0 %v78
  %848 = vmatprep.subr.mxu0 0.0
  %849 = vmatpush2.msra.mxu0 %v77
  %850 = vmatprep.subr.mxu0 0.0
  %851 = vmatpush2.msra.mxu0 %v76
  %852 = vmatprep.subr.mxu0 0.0
  %853 = vmatpush2.msra.mxu0 %v75
  %854 = vmatprep.subr.mxu0 0.0
  %855 = vmatpush2.msra.mxu0 %v74
  %856 = vmatprep.subr.mxu0 0.0
  %857 = vmatpush2.msra.mxu0 %v73
  %858 = vmatprep.subr.mxu0 0.0
  %859 = vmatpush2.msra.mxu0 %v72
  %860 = vmatprep.subr.mxu0 0.0
  %861 = vmatpush2.msra.mxu0 %v71
  %862 = vmatprep.subr.mxu0 0.0
  %863 = vmatpush2.msra.mxu0 %v70
  %864 = vmatprep.subr.mxu0 0.0
  %865 = vmatpush2.msra.mxu0 %v69
  %866 = vmatprep.subr.mxu0 0.0
  %867 = vmatpush2.msra.mxu0 %v68
  %868 = vmatprep.subr.mxu0 0.0
  %869 = vmatpush2.msra.mxu0 %v67
  %870 = vmatprep.mubr.f32.mxu0 %v779
  %871 = vmatmul.mubr.f32.gmra.mxu0 %v778
  %v872 = vpop.f32.mrf.mxu0
  %v873 = vadd.f32 0.0, %v872
  %v874 = vpop.f32.mrf.mxu0
  %875 = vmatprep.mubr.f32.mxu0 %v783
  %876 = vmatmul.mubr.f32.gmra.mxu0 %v782
  %v877 = vpop.f32.mrf.mxu0
  %v878 = vadd.f32 0.0, %v877
  %v879 = vpop.f32.mrf.mxu0
  %880 = vmatprep.mubr.f32.mxu0 %v787
  %881 = vmatmul.mubr.f32.gmra.mxu0 %v786
  %v882 = vpop.f32.mrf.mxu0
  %v883 = vadd.f32 0.0, %v882
  %v884 = vpop.f32.mrf.mxu0
  %885 = vmatprep.mubr.f32.mxu0 %v791
  %886 = vmatmul.mubr.f32.gmra.mxu0 %v790
  %v887 = vpop.f32.mrf.mxu0
  %v888 = vadd.f32 0.0, %v887
  %v889 = vpop.f32.mrf.mxu0
  %890 = vmatprep.mubr.f32.mxu0 %v795
  %891 = vmatmul.mubr.f32.gmra.mxu0 %v794
  %v892 = vpop.f32.mrf.mxu0
  %v893 = vadd.f32 0.0, %v892
  %v894 = vpop.f32.mrf.mxu0
  %895 = vmatprep.mubr.f32.mxu0 %v799
  %896 = vmatmul.mubr.f32.gmra.mxu0 %v798
  %v897 = vpop.f32.mrf.mxu0
  %v898 = vadd.f32 0.0, %v897
  %v899 = vpop.f32.mrf.mxu0
  %900 = vmatprep.mubr.f32.mxu0 %v803
  %901 = vmatmul.mubr.f32.gmra.mxu0 %v802
  %v902 = vpop.f32.mrf.mxu0
  %v903 = vadd.f32 0.0, %v902
  %v904 = vpop.f32.mrf.mxu0
  %905 = vdwg.mxu0
  %906 = vmatprep.subr.mxu0 0.0
  %907 = vmatpush1.msra.mxu0 %v98
  %908 = vmatprep.subr.mxu0 0.0
  %909 = vmatpush1.msra.mxu0 %v97
  %910 = vmatprep.subr.mxu0 0.0
  %911 = vmatpush1.msra.mxu0 %v96
  %912 = vmatprep.subr.mxu0 0.0
  %913 = vmatpush1.msra.mxu0 %v95
  %914 = vmatprep.subr.mxu0 0.0
  %915 = vmatpush1.msra.mxu0 %v94
  %916 = vmatprep.subr.mxu0 0.0
  %917 = vmatpush1.msra.mxu0 %v93
  %918 = vmatprep.subr.mxu0 0.0
  %919 = vmatpush1.msra.mxu0 %v92
  %920 = vmatprep.subr.mxu0 0.0
  %921 = vmatpush1.msra.mxu0 %v91
  %922 = vmatprep.subr.mxu0 0.0
  %923 = vmatpush1.msra.mxu0 %v90
  %924 = vmatprep.subr.mxu0 0.0
  %925 = vmatpush1.msra.mxu0 %v89
  %926 = vmatprep.subr.mxu0 0.0
  %927 = vmatpush1.msra.mxu0 %v88
  %928 = vmatprep.subr.mxu0 0.0
  %929 = vmatpush1.msra.mxu0 %v87
  %930 = vmatprep.subr.mxu0 0.0
  %931 = vmatpush1.msra.mxu0 %v86
  %932 = vmatprep.subr.mxu0 0.0
  %933 = vmatpush1.msra.mxu0 %v85
  %934 = vmatprep.subr.mxu0 0.0
  %935 = vmatpush1.msra.mxu0 %v84
  %936 = vmatprep.subr.mxu0 0.0
  %937 = vmatpush1.msra.mxu0 %v83
  %938 = vmatprep.subr.mxu0 0.0
  %939 = vmatpush2.msra.mxu0 %v114
  %940 = vmatprep.subr.mxu0 0.0
  %941 = vmatpush2.msra.mxu0 %v113
  %942 = vmatprep.subr.mxu0 0.0
  %943 = vmatpush2.msra.mxu0 %v112
  %944 = vmatprep.subr.mxu0 0.0
  %945 = vmatpush2.msra.mxu0 %v111
  %946 = vmatprep.subr.mxu0 0.0
  %947 = vmatpush2.msra.mxu0 %v110
  %948 = vmatprep.subr.mxu0 0.0
  %949 = vmatpush2.msra.mxu0 %v109
  %950 = vmatprep.subr.mxu0 0.0
  %951 = vmatpush2.msra.mxu0 %v108
  %952 = vmatprep.subr.mxu0 0.0
  %953 = vmatpush2.msra.mxu0 %v107
  %954 = vmatprep.subr.mxu0 0.0
  %955 = vmatpush2.msra.mxu0 %v106
  %956 = vmatprep.subr.mxu0 0.0
  %957 = vmatpush2.msra.mxu0 %v105
  %958 = vmatprep.subr.mxu0 0.0
  %959 = vmatpush2.msra.mxu0 %v104
  %960 = vmatprep.subr.mxu0 0.0
  %961 = vmatpush2.msra.mxu0 %v103
  %962 = vmatprep.subr.mxu0 0.0
  %963 = vmatpush2.msra.mxu0 %v102
  %964 = vmatprep.subr.mxu0 0.0
  %965 = vmatpush2.msra.mxu0 %v101
  %966 = vmatprep.subr.mxu0 0.0
  %967 = vmatpush2.msra.mxu0 %v100
  %968 = vmatprep.subr.mxu0 0.0
  %969 = vmatpush2.msra.mxu0 %v99
  %970 = vmatprep.mubr.f32.mxu0 %v781
  %971 = vmatmul.mubr.f32.gmra.mxu0 %v780
  %v972 = vpop.f32.mrf.mxu0
  %v973 = vadd.f32 %v873, %v972
  %v974 = vpop.f32.mrf.mxu0
  %975 = vmatprep.mubr.f32.mxu0 %v785
  %976 = vmatmul.mubr.f32.gmra.mxu0 %v784
  %v977 = vpop.f32.mrf.mxu0
  %v978 = vadd.f32 %v878, %v977
  %v979 = vpop.f32.mrf.mxu0
  %980 = vmatprep.mubr.f32.mxu0 %v789
  %981 = vmatmul.mubr.f32.gmra.mxu0 %v788
  %v982 = vpop.f32.mrf.mxu0
  %v983 = vadd.f32 %v883, %v982
  %v984 = vpop.f32.mrf.mxu0
  %985 = vmatprep.mubr.f32.mxu0 %v793
  %986 = vmatmul.mubr.f32.gmra.mxu0 %v792
  %v987 = vpop.f32.mrf.mxu0
  %v988 = vadd.f32 %v888, %v987
  %v989 = vpop.f32.mrf.mxu0
  %990 = vmatprep.mubr.f32.mxu0 %v797
  %991 = vmatmul.mubr.f32.gmra.mxu0 %v796
  %v992 = vpop.f32.mrf.mxu0
  %v993 = vadd.f32 %v893, %v992
  %v994 = vpop.f32.mrf.mxu0
  %995 = vmatprep.mubr.f32.mxu0 %v801
  %996 = vmatmul.mubr.f32.gmra.mxu0 %v800
  %v997 = vpop.f32.mrf.mxu0
  %v998 = vadd.f32 %v898, %v997
  %v999 = vpop.f32.mrf.mxu0
  %1000 = vmatprep.mubr.f32.mxu0 %v805
  %1001 = vmatmul.mubr.f32.gmra.mxu0 %v804
  %v1002 = vpop.f32.mrf.mxu0
  %v1003 = vadd.f32 %v903, %v1002
  %v1004 = vpop.f32.mrf.mxu0
  %1005 = vdwg.mxu0
  %v1006 = vmax.f32 %v745, %v973
  %v1007 = vmax.f32 %v750, %v978
  %v1008 = vmax.f32 %v755, %v983
  %v1009 = vmax.f32 %v760, %v988
  %v1010 = vmax.f32 %v765, %v993
  %v1011 = vmax.f32 %v770, %v998
  %v1012 = vmax.f32 %v775, %v1003
  %v1013 = vmax.f32 %v543, %v1006
  %v1014 = vmax.f32 %v544, %v1007
  %v1015 = vmax.f32 %v545, %v1008
  %v1016 = vmax.f32 %v546, %v1009
  %v1017 = vmax.f32 %v547, %v1010
  %v1018 = vmax.f32 %v548, %v1011
  %v1019 = vmax.f32 %v549, %v1012
  %v1020 = vld [vmem:[%s5] sm:$0x1]
  %v1022 = vlaneseq
  %v1023 = vshrl.u32 %v1022, 7
  %v1024 = vsub.s32 0, %v1023
  %v1025 = vrot.slane %v1020, %v1024
  %v1027 = vadd.f32 %v1013, %v1025
  %v1028 = vadd.f32 %v1014, %v1025
  %v1029 = vadd.f32 %v1015, %v1025
  %v1030 = vadd.f32 %v1016, %v1025
  %v1031 = vadd.f32 %v1017, %v1025
  %v1032 = vadd.f32 %v1018, %v1025
  %v1033 = vadd.f32 %v1019, %v1025
  %v1034 = vmax.f32 %v1027, 0.0
  %v1035 = vmax.f32 %v1028, 0.0
  %v1036 = vmax.f32 %v1029, 0.0
  %v1037 = vmax.f32 %v1030, 0.0
  %v1038 = vmax.f32 %v1031, 0.0
  %v1039 = vmax.f32 %v1032, 0.0
  %v1040 = vmax.f32 %v1033, 0.0
  %vm1041 = vcmask 523264
  %1042 = vst.msk [vmem:[%s6] sm:$0xff] %vm1041, %v1034
  %1043 = vst.msk [vmem:[%s6 + $0x8] sm:$0xff] %vm1041, %v1035
  %1044 = vst.msk [vmem:[%s6 + $0x10] sm:$0xff] %vm1041, %v1036
  %1045 = vst.msk [vmem:[%s6 + $0x18] sm:$0xff] %vm1041, %v1037
  %1046 = vst.msk [vmem:[%s6 + $0x20] sm:$0xff] %vm1041, %v1038
  %1047 = vst.msk [vmem:[%s6 + $0x28] sm:$0xff] %vm1041, %v1039
  %1048 = vst.msk [vmem:[%s6 + $0x30] sm:$0xff] %vm1041, %v1040
  // Predicated region
  $region26: #{cnn_forward.5} parent=0 // pred_check
    _
  $region27: #{cnn_forward.5} parent=0 // pred_check_branch
    %1050 = sbr.rel (0) target = $region29
  $region28: #{cnn_forward.5} parent=0 // pred_region
    _
  $region29: #{cnn_forward.5} parent=0 // pred_fallthru
    _
  // Predicated region
  $region30: #{cnn_forward.5} parent=0 // pred_check
    _
  $region31: #{cnn_forward.5} parent=0 // pred_check_branch
    %1052 = sbr.rel (0) target = $region33
  $region32: #{cnn_forward.5} parent=0 // pred_region
    _
  $region33: #{cnn_forward.5} parent=0 // pred_fallthru
    _

// kernel: cnn_forward.7
$region0: #{cnn_forward.7}
  #allocation0 [shape = 'u32[]', space=smem, size = 0x4, offset = 0x4, fixed_abs, tag = 'smem constant byte address 0x4 - core index']
  #allocation1 [shape = 'u32[144,128]{1,0:T(1,128)}', space=vmem, size = 0x12000, scoped, tag = 'internal scratch']
  %s0 = inlined_call_operand.vmem [shape: f32[8,512], index: 0, kind: input, shape index: {}]
  %s1 = inlined_call_operand.vmem [shape: f32[512,256], index: 1, kind: input, shape index: {}]
  %s2 = inlined_call_operand.vmem [shape: f32[1,256], index: 2, kind: input, shape index: {}]
  %s3 = inlined_call_operand.vmem [shape: f32[256,6], index: 3, kind: input, shape index: {}]
  %s4 = inlined_call_operand.vmem [shape: f32[1,6], index: 4, kind: input, shape index: {}]
  %s5 = inlined_call_operand.vmem [shape: f32[8,6], index: 5, kind: output, shape index: {}]
  %s6 = sld [smem:[#allocation0]]
  $region30: #{cnn_forward.7} parent=0
    _
  %s8 = ssub.s32 1, %s6
  %s9 = scalar_select 0, %s8, %s6
  // Predicated region
  $region2: #{cnn_forward.7} parent=0 // pred_check
    _
  $region3: #{cnn_forward.7} parent=0 // pred_check_branch
    %11 = sbr.rel (0) target = $region5
  $region4: #{cnn_forward.7} parent=0 // pred_region
    _
  $region5: #{cnn_forward.7} parent=0 // pred_fallthru
    _
  // Predicated region
  $region6: #{cnn_forward.7} parent=0 // pred_check
    _
  $region7: #{cnn_forward.7} parent=0 // pred_check_branch
    %13 = sbr.rel (0) target = $region9
  $region8: #{cnn_forward.7} parent=0 // pred_region
    _
  $region9: #{cnn_forward.7} parent=0 // pred_fallthru
    _
  // Predicated region
  $region10: #{cnn_forward.7} parent=0 // pred_check
    _
  $region11: #{cnn_forward.7} parent=0 // pred_check_branch
    %15 = sbr.rel (0) target = $region13
  $region12: #{cnn_forward.7} parent=0 // pred_region
    _
  $region13: #{cnn_forward.7} parent=0 // pred_fallthru
    _
  // Predicated region
  $region14: #{cnn_forward.7} parent=0 // pred_check
    _
  $region15: #{cnn_forward.7} parent=0 // pred_check_branch
    %17 = sbr.rel (0) target = $region17
  $region16: #{cnn_forward.7} parent=0 // pred_region
    _
  $region17: #{cnn_forward.7} parent=0 // pred_fallthru
    _
  // Predicated region
  $region18: #{cnn_forward.7} parent=0 // pred_check
    _
  $region19: #{cnn_forward.7} parent=0 // pred_check_branch
    %19 = sbr.rel (0) target = $region21
  $region20: #{cnn_forward.7} parent=0 // pred_region
    _
  $region21: #{cnn_forward.7} parent=0 // pred_fallthru
    _
  %v20 = vld [vmem:[%s0] sm:$0xff]
  %v21 = vld [vmem:[%s0 + $0x8] sm:$0xff]
  %v22 = vld [vmem:[%s0 + $0x10] sm:$0xff]
  %v23 = vld [vmem:[%s0 + $0x18] sm:$0xff]
  %v24 = vld [vmem:[%s1] sm:$0xff]
  %v25 = vld [vmem:[%s1 + $0x8] sm:$0xff]
  %v26 = vld [vmem:[%s1 + $0x10] sm:$0xff]
  %v27 = vld [vmem:[%s1 + $0x18] sm:$0xff]
  %v28 = vld [vmem:[%s1 + $0x20] sm:$0xff]
  %v29 = vld [vmem:[%s1 + $0x28] sm:$0xff]
  %v30 = vld [vmem:[%s1 + $0x30] sm:$0xff]
  %v31 = vld [vmem:[%s1 + $0x38] sm:$0xff]
  %v32 = vld [vmem:[%s1 + $0x40] sm:$0xff]
  %v33 = vld [vmem:[%s1 + $0x48] sm:$0xff]
  %v34 = vld [vmem:[%s1 + $0x50] sm:$0xff]
  %v35 = vld [vmem:[%s1 + $0x58] sm:$0xff]
  %v36 = vld [vmem:[%s1 + $0x60] sm:$0xff]
  %v37 = vld [vmem:[%s1 + $0x68] sm:$0xff]
  %v38 = vld [vmem:[%s1 + $0x70] sm:$0xff]
  %v39 = vld [vmem:[%s1 + $0x78] sm:$0xff]
  %v40 = vld [vmem:[%s1 + $0x80] sm:$0xff]
  %v41 = vld [vmem:[%s1 + $0x88] sm:$0xff]
  %v42 = vld [vmem:[%s1 + $0x90] sm:$0xff]
  %v43 = vld [vmem:[%s1 + $0x98] sm:$0xff]
  %v44 = vld [vmem:[%s1 + $0xa0] sm:$0xff]
  %v45 = vld [vmem:[%s1 + $0xa8] sm:$0xff]
  %v46 = vld [vmem:[%s1 + $0xb0] sm:$0xff]
  %v47 = vld [vmem:[%s1 + $0xb8] sm:$0xff]
  %v48 = vld [vmem:[%s1 + $0xc0] sm:$0xff]
  %v49 = vld [vmem:[%s1 + $0xc8] sm:$0xff]
  %v50 = vld [vmem:[%s1 + $0xd0] sm:$0xff]
  %v51 = vld [vmem:[%s1 + $0xd8] sm:$0xff]
  %v52 = vld [vmem:[%s1 + $0xe0] sm:$0xff]
  %v53 = vld [vmem:[%s1 + $0xe8] sm:$0xff]
  %v54 = vld [vmem:[%s1 + $0xf0] sm:$0xff]
  %v55 = vld [vmem:[%s1 + $0xf8] sm:$0xff]
  %v56 = vld [vmem:[%s1 + $0x100] sm:$0xff]
  %v57 = vld [vmem:[%s1 + $0x108] sm:$0xff]
  %v58 = vld [vmem:[%s1 + $0x110] sm:$0xff]
  %v59 = vld [vmem:[%s1 + $0x118] sm:$0xff]
  %v60 = vld [vmem:[%s1 + $0x120] sm:$0xff]
  %v61 = vld [vmem:[%s1 + $0x128] sm:$0xff]
  %v62 = vld [vmem:[%s1 + $0x130] sm:$0xff]
  %v63 = vld [vmem:[%s1 + $0x138] sm:$0xff]
  %v64 = vld [vmem:[%s1 + $0x140] sm:$0xff]
  %v65 = vld [vmem:[%s1 + $0x148] sm:$0xff]
  %v66 = vld [vmem:[%s1 + $0x150] sm:$0xff]
  %v67 = vld [vmem:[%s1 + $0x158] sm:$0xff]
  %v68 = vld [vmem:[%s1 + $0x160] sm:$0xff]
  %v69 = vld [vmem:[%s1 + $0x168] sm:$0xff]
  %v70 = vld [vmem:[%s1 + $0x170] sm:$0xff]
  %v71 = vld [vmem:[%s1 + $0x178] sm:$0xff]
  %v72 = vld [vmem:[%s1 + $0x180] sm:$0xff]
  %v73 = vld [vmem:[%s1 + $0x188] sm:$0xff]
  %v74 = vld [vmem:[%s1 + $0x190] sm:$0xff]
  %v75 = vld [vmem:[%s1 + $0x198] sm:$0xff]
  %v76 = vld [vmem:[%s1 + $0x1a0] sm:$0xff]
  %v77 = vld [vmem:[%s1 + $0x1a8] sm:$0xff]
  %v78 = vld [vmem:[%s1 + $0x1b0] sm:$0xff]
  %v79 = vld [vmem:[%s1 + $0x1b8] sm:$0xff]
  %v80 = vld [vmem:[%s1 + $0x1c0] sm:$0xff]
  %v81 = vld [vmem:[%s1 + $0x1c8] sm:$0xff]
  %v82 = vld [vmem:[%s1 + $0x1d0] sm:$0xff]
  %v83 = vld [vmem:[%s1 + $0x1d8] sm:$0xff]
  %v84 = vld [vmem:[%s1 + $0x1e0] sm:$0xff]
  %v85 = vld [vmem:[%s1 + $0x1e8] sm:$0xff]
  %v86 = vld [vmem:[%s1 + $0x1f0] sm:$0xff]
  %v87 = vld [vmem:[%s1 + $0x1f8] sm:$0xff]
  %v88 = vld [vmem:[%s1 + $0x200] sm:$0xff]
  %v89 = vld [vmem:[%s1 + $0x208] sm:$0xff]
  %v90 = vld [vmem:[%s1 + $0x210] sm:$0xff]
  %v91 = vld [vmem:[%s1 + $0x218] sm:$0xff]
  %v92 = vld [vmem:[%s1 + $0x220] sm:$0xff]
  %v93 = vld [vmem:[%s1 + $0x228] sm:$0xff]
  %v94 = vld [vmem:[%s1 + $0x230] sm:$0xff]
  %v95 = vld [vmem:[%s1 + $0x238] sm:$0xff]
  %v96 = vld [vmem:[%s1 + $0x240] sm:$0xff]
  %v97 = vld [vmem:[%s1 + $0x248] sm:$0xff]
  %v98 = vld [vmem:[%s1 + $0x250] sm:$0xff]
  %v99 = vld [vmem:[%s1 + $0x258] sm:$0xff]
  %v100 = vld [vmem:[%s1 + $0x260] sm:$0xff]
  %v101 = vld [vmem:[%s1 + $0x268] sm:$0xff]
  %v102 = vld [vmem:[%s1 + $0x270] sm:$0xff]
  %v103 = vld [vmem:[%s1 + $0x278] sm:$0xff]
  %v104 = vld [vmem:[%s1 + $0x280] sm:$0xff]
  %v105 = vld [vmem:[%s1 + $0x288] sm:$0xff]
  %v106 = vld [vmem:[%s1 + $0x290] sm:$0xff]
  %v107 = vld [vmem:[%s1 + $0x298] sm:$0xff]
  %v108 = vld [vmem:[%s1 + $0x2a0] sm:$0xff]
  %v109 = vld [vmem:[%s1 + $0x2a8] sm:$0xff]
  %v110 = vld [vmem:[%s1 + $0x2b0] sm:$0xff]
  %v111 = vld [vmem:[%s1 + $0x2b8] sm:$0xff]
  %v112 = vld [vmem:[%s1 + $0x2c0] sm:$0xff]
  %v113 = vld [vmem:[%s1 + $0x2c8] sm:$0xff]
  %v114 = vld [vmem:[%s1 + $0x2d0] sm:$0xff]
  %v115 = vld [vmem:[%s1 + $0x2d8] sm:$0xff]
  %v116 = vld [vmem:[%s1 + $0x2e0] sm:$0xff]
  %v117 = vld [vmem:[%s1 + $0x2e8] sm:$0xff]
  %v118 = vld [vmem:[%s1 + $0x2f0] sm:$0xff]
  %v119 = vld [vmem:[%s1 + $0x2f8] sm:$0xff]
  %v120 = vld [vmem:[%s1 + $0x300] sm:$0xff]
  %v121 = vld [vmem:[%s1 + $0x308] sm:$0xff]
  %v122 = vld [vmem:[%s1 + $0x310] sm:$0xff]
  %v123 = vld [vmem:[%s1 + $0x318] sm:$0xff]
  %v124 = vld [vmem:[%s1 + $0x320] sm:$0xff]
  %v125 = vld [vmem:[%s1 + $0x328] sm:$0xff]
  %v126 = vld [vmem:[%s1 + $0x330] sm:$0xff]
  %v127 = vld [vmem:[%s1 + $0x338] sm:$0xff]
  %v128 = vld [vmem:[%s1 + $0x340] sm:$0xff]
  %v129 = vld [vmem:[%s1 + $0x348] sm:$0xff]
  %v130 = vld [vmem:[%s1 + $0x350] sm:$0xff]
  %v131 = vld [vmem:[%s1 + $0x358] sm:$0xff]
  %v132 = vld [vmem:[%s1 + $0x360] sm:$0xff]
  %v133 = vld [vmem:[%s1 + $0x368] sm:$0xff]
  %v134 = vld [vmem:[%s1 + $0x370] sm:$0xff]
  %v135 = vld [vmem:[%s1 + $0x378] sm:$0xff]
  %v136 = vld [vmem:[%s1 + $0x380] sm:$0xff]
  %v137 = vld [vmem:[%s1 + $0x388] sm:$0xff]
  %v138 = vld [vmem:[%s1 + $0x390] sm:$0xff]
  %v139 = vld [vmem:[%s1 + $0x398] sm:$0xff]
  %v140 = vld [vmem:[%s1 + $0x3a0] sm:$0xff]
  %v141 = vld [vmem:[%s1 + $0x3a8] sm:$0xff]
  %v142 = vld [vmem:[%s1 + $0x3b0] sm:$0xff]
  %v143 = vld [vmem:[%s1 + $0x3b8] sm:$0xff]
  %v144 = vld [vmem:[%s1 + $0x3c0] sm:$0xff]
  %v145 = vld [vmem:[%s1 + $0x3c8] sm:$0xff]
  %v146 = vld [vmem:[%s1 + $0x3d0] sm:$0xff]
  %v147 = vld [vmem:[%s1 + $0x3d8] sm:$0xff]
  %v148 = vld [vmem:[%s1 + $0x3e0] sm:$0xff]
  %v149 = vld [vmem:[%s1 + $0x3e8] sm:$0xff]
  %v150 = vld [vmem:[%s1 + $0x3f0] sm:$0xff]
  %v151 = vld [vmem:[%s1 + $0x3f8] sm:$0xff]
  %v152 = vld [vmem:[%s2] sm:$0x3]
  %v154 = vlaneseq
  %v155 = vshrl.u32 %v154, 7
  %v156 = vsub.s32 0, %v155
  %v157 = vrot.slane %v152, %v156
  %v158 = vlaneseq
  %v159 = vshrl.u32 %v158, 7
  %v160 = vsub.s32 1, %v159
  %v161 = vrot.slane %v152, %v160
  %164 = vmatprep.subr.mxu0 %v55
  %165 = vmatpush1.msra.mxu0 %v54
  %166 = vmatprep.subr.mxu0 %v53
  %167 = vmatpush1.msra.mxu0 %v52
  %168 = vmatprep.subr.mxu0 %v51
  %169 = vmatpush1.msra.mxu0 %v50
  %170 = vmatprep.subr.mxu0 %v49
  %171 = vmatpush1.msra.mxu0 %v48
  %172 = vmatprep.subr.mxu0 %v47
  %173 = vmatpush1.msra.mxu0 %v46
  %174 = vmatprep.subr.mxu0 %v45
  %175 = vmatpush1.msra.mxu0 %v44
  %176 = vmatprep.subr.mxu0 %v43
  %177 = vmatpush1.msra.mxu0 %v42
  %178 = vmatprep.subr.mxu0 %v41
  %179 = vmatpush1.msra.mxu0 %v40
  %180 = vmatprep.subr.mxu0 %v39
  %181 = vmatpush1.msra.mxu0 %v38
  %182 = vmatprep.subr.mxu0 %v37
  %183 = vmatpush1.msra.mxu0 %v36
  %184 = vmatprep.subr.mxu0 %v35
  %185 = vmatpush1.msra.mxu0 %v34
  %186 = vmatprep.subr.mxu0 %v33
  %187 = vmatpush1.msra.mxu0 %v32
  %188 = vmatprep.subr.mxu0 %v31
  %189 = vmatpush1.msra.mxu0 %v30
  %190 = vmatprep.subr.mxu0 %v29
  %191 = vmatpush1.msra.mxu0 %v28
  %192 = vmatprep.subr.mxu0 %v27
  %193 = vmatpush1.msra.mxu0 %v26
  %194 = vmatprep.subr.mxu0 %v25
  %195 = vmatpush1.msra.mxu0 %v24
  %196 = vmatprep.subr.mxu0 %v87
  %197 = vmatpush2.msra.mxu0 %v86
  %198 = vmatprep.subr.mxu0 %v85
  %199 = vmatpush2.msra.mxu0 %v84
  %200 = vmatprep.subr.mxu0 %v83
  %201 = vmatpush2.msra.mxu0 %v82
  %202 = vmatprep.subr.mxu0 %v81
  %203 = vmatpush2.msra.mxu0 %v80
  %204 = vmatprep.subr.mxu0 %v79
  %205 = vmatpush2.msra.mxu0 %v78
  %206 = vmatprep.subr.mxu0 %v77
  %207 = vmatpush2.msra.mxu0 %v76
  %208 = vmatprep.subr.mxu0 %v75
  %209 = vmatpush2.msra.mxu0 %v74
  %210 = vmatprep.subr.mxu0 %v73
  %211 = vmatpush2.msra.mxu0 %v72
  %212 = vmatprep.subr.mxu0 %v71
  %213 = vmatpush2.msra.mxu0 %v70
  %214 = vmatprep.subr.mxu0 %v69
  %215 = vmatpush2.msra.mxu0 %v68
  %216 = vmatprep.subr.mxu0 %v67
  %217 = vmatpush2.msra.mxu0 %v66
  %218 = vmatprep.subr.mxu0 %v65
  %219 = vmatpush2.msra.mxu0 %v64
  %220 = vmatprep.subr.mxu0 %v63
  %221 = vmatpush2.msra.mxu0 %v62
  %222 = vmatprep.subr.mxu0 %v61
  %223 = vmatpush2.msra.mxu0 %v60
  %224 = vmatprep.subr.mxu0 %v59
  %225 = vmatpush2.msra.mxu0 %v58
  %226 = vmatprep.subr.mxu0 %v57
  %227 = vmatpush2.msra.mxu0 %v56
  %228 = vmatprep.mubr.f32.mxu0 %v21
  %229 = vmatmul.mubr.f32.gmra.mxu0 %v20
  %v230 = vpop.f32.mrf.mxu0
  %v231 = vadd.f32 %v157, %v230
  %v232 = vpop.f32.mrf.mxu0
  %v233 = vadd.f32 %v161, %v232
  %234 = vdwg.mxu0
  %235 = vmatprep.subr.mxu0 %v119
  %236 = vmatpush1.msra.mxu0 %v118
  %237 = vmatprep.subr.mxu0 %v117
  %238 = vmatpush1.msra.mxu0 %v116
  %239 = vmatprep.subr.mxu0 %v115
  %240 = vmatpush1.msra.mxu0 %v114
  %241 = vmatprep.subr.mxu0 %v113
  %242 = vmatpush1.msra.mxu0 %v112
  %243 = vmatprep.subr.mxu0 %v111
  %244 = vmatpush1.msra.mxu0 %v110
  %245 = vmatprep.subr.mxu0 %v109
  %246 = vmatpush1.msra.mxu0 %v108
  %247 = vmatprep.subr.mxu0 %v107
  %248 = vmatpush1.msra.mxu0 %v106
  %249 = vmatprep.subr.mxu0 %v105
  %250 = vmatpush1.msra.mxu0 %v104
  %251 = vmatprep.subr.mxu0 %v103
  %252 = vmatpush1.msra.mxu0 %v102
  %253 = vmatprep.subr.mxu0 %v101
  %254 = vmatpush1.msra.mxu0 %v100
  %255 = vmatprep.subr.mxu0 %v99
  %256 = vmatpush1.msra.mxu0 %v98
  %257 = vmatprep.subr.mxu0 %v97
  %258 = vmatpush1.msra.mxu0 %v96
  %259 = vmatprep.subr.mxu0 %v95
  %260 = vmatpush1.msra.mxu0 %v94
  %261 = vmatprep.subr.mxu0 %v93
  %262 = vmatpush1.msra.mxu0 %v92
  %263 = vmatprep.subr.mxu0 %v91
  %264 = vmatpush1.msra.mxu0 %v90
  %265 = vmatprep.subr.mxu0 %v89
  %266 = vmatpush1.msra.mxu0 %v88
  %267 = vmatprep.subr.mxu0 %v151
  %268 = vmatpush2.msra.mxu0 %v150
  %269 = vmatprep.subr.mxu0 %v149
  %270 = vmatpush2.msra.mxu0 %v148
  %271 = vmatprep.subr.mxu0 %v147
  %272 = vmatpush2.msra.mxu0 %v146
  %273 = vmatprep.subr.mxu0 %v145
  %274 = vmatpush2.msra.mxu0 %v144
  %275 = vmatprep.subr.mxu0 %v143
  %276 = vmatpush2.msra.mxu0 %v142
  %277 = vmatprep.subr.mxu0 %v141
  %278 = vmatpush2.msra.mxu0 %v140
  %279 = vmatprep.subr.mxu0 %v139
  %280 = vmatpush2.msra.mxu0 %v138
  %281 = vmatprep.subr.mxu0 %v137
  %282 = vmatpush2.msra.mxu0 %v136
  %283 = vmatprep.subr.mxu0 %v135
  %284 = vmatpush2.msra.mxu0 %v134
  %285 = vmatprep.subr.mxu0 %v133
  %286 = vmatpush2.msra.mxu0 %v132
  %287 = vmatprep.subr.mxu0 %v131
  %288 = vmatpush2.msra.mxu0 %v130
  %289 = vmatprep.subr.mxu0 %v129
  %290 = vmatpush2.msra.mxu0 %v128
  %291 = vmatprep.subr.mxu0 %v127
  %292 = vmatpush2.msra.mxu0 %v126
  %293 = vmatprep.subr.mxu0 %v125
  %294 = vmatpush2.msra.mxu0 %v124
  %295 = vmatprep.subr.mxu0 %v123
  %296 = vmatpush2.msra.mxu0 %v122
  %297 = vmatprep.subr.mxu0 %v121
  %298 = vmatpush2.msra.mxu0 %v120
  %299 = vmatprep.mubr.f32.mxu0 %v23
  %300 = vmatmul.mubr.f32.gmra.mxu0 %v22
  %v301 = vpop.f32.mrf.mxu0
  %v302 = vadd.f32 %v231, %v301
  %v303 = vpop.f32.mrf.mxu0
  %v304 = vadd.f32 %v233, %v303
  %305 = vdwg.mxu0
  %v306 = vld [vmem:[%s3] sm:$0xff]
  %v307 = vld [vmem:[%s3 + $0x8] sm:$0xff]
  %v308 = vld [vmem:[%s3 + $0x10] sm:$0xff]
  %v309 = vld [vmem:[%s3 + $0x18] sm:$0xff]
  %v310 = vld [vmem:[%s3 + $0x20] sm:$0xff]
  %v311 = vld [vmem:[%s3 + $0x28] sm:$0xff]
  %v312 = vld [vmem:[%s3 + $0x30] sm:$0xff]
  %v313 = vld [vmem:[%s3 + $0x38] sm:$0xff]
  %v314 = vld [vmem:[%s3 + $0x40] sm:$0xff]
  %v315 = vld [vmem:[%s3 + $0x48] sm:$0xff]
  %v316 = vld [vmem:[%s3 + $0x50] sm:$0xff]
  %v317 = vld [vmem:[%s3 + $0x58] sm:$0xff]
  %v318 = vld [vmem:[%s3 + $0x60] sm:$0xff]
  %v319 = vld [vmem:[%s3 + $0x68] sm:$0xff]
  %v320 = vld [vmem:[%s3 + $0x70] sm:$0xff]
  %v321 = vld [vmem:[%s3 + $0x78] sm:$0xff]
  %v322 = vld [vmem:[%s3 + $0x80] sm:$0xff]
  %v323 = vld [vmem:[%s3 + $0x88] sm:$0xff]
  %v324 = vld [vmem:[%s3 + $0x90] sm:$0xff]
  %v325 = vld [vmem:[%s3 + $0x98] sm:$0xff]
  %v326 = vld [vmem:[%s3 + $0xa0] sm:$0xff]
  %v327 = vld [vmem:[%s3 + $0xa8] sm:$0xff]
  %v328 = vld [vmem:[%s3 + $0xb0] sm:$0xff]
  %v329 = vld [vmem:[%s3 + $0xb8] sm:$0xff]
  %v330 = vld [vmem:[%s3 + $0xc0] sm:$0xff]
  %v331 = vld [vmem:[%s3 + $0xc8] sm:$0xff]
  %v332 = vld [vmem:[%s3 + $0xd0] sm:$0xff]
  %v333 = vld [vmem:[%s3 + $0xd8] sm:$0xff]
  %v334 = vld [vmem:[%s3 + $0xe0] sm:$0xff]
  %v335 = vld [vmem:[%s3 + $0xe8] sm:$0xff]
  %v336 = vld [vmem:[%s3 + $0xf0] sm:$0xff]
  %v337 = vld [vmem:[%s3 + $0xf8] sm:$0xff]
  %v338 = vld [vmem:[%s4] sm:$0x1]
  %v340 = vlaneseq
  %v341 = vshrl.u32 %v340, 7
  %v342 = vsub.s32 0, %v341
  %v343 = vrot.slane %v338, %v342
  %345 = vmatprep.subr.mxu0 0.0
  %346 = vmatpush1.msra.mxu0 %v321
  %347 = vmatprep.subr.mxu0 0.0
  %348 = vmatpush1.msra.mxu0 %v320
  %349 = vmatprep.subr.mxu0 0.0
  %350 = vmatpush1.msra.mxu0 %v319
  %351 = vmatprep.subr.mxu0 0.0
  %352 = vmatpush1.msra.mxu0 %v318
  %353 = vmatprep.subr.mxu0 0.0
  %354 = vmatpush1.msra.mxu0 %v317
  %355 = vmatprep.subr.mxu0 0.0
  %356 = vmatpush1.msra.mxu0 %v316
  %357 = vmatprep.subr.mxu0 0.0
  %358 = vmatpush1.msra.mxu0 %v315
  %359 = vmatprep.subr.mxu0 0.0
  %360 = vmatpush1.msra.mxu0 %v314
  %361 = vmatprep.subr.mxu0 0.0
  %362 = vmatpush1.msra.mxu0 %v313
  %363 = vmatprep.subr.mxu0 0.0
  %364 = vmatpush1.msra.mxu0 %v312
  %365 = vmatprep.subr.mxu0 0.0
  %366 = vmatpush1.msra.mxu0 %v311
  %367 = vmatprep.subr.mxu0 0.0
  %368 = vmatpush1.msra.mxu0 %v310
  %369 = vmatprep.subr.mxu0 0.0
  %370 = vmatpush1.msra.mxu0 %v309
  %371 = vmatprep.subr.mxu0 0.0
  %372 = vmatpush1.msra.mxu0 %v308
  %373 = vmatprep.subr.mxu0 0.0
  %374 = vmatpush1.msra.mxu0 %v307
  %375 = vmatprep.subr.mxu0 0.0
  %376 = vmatpush1.msra.mxu0 %v306
  %377 = vmatprep.subr.mxu0 0.0
  %378 = vmatpush2.msra.mxu0 %v337
  %379 = vmatprep.subr.mxu0 0.0
  %380 = vmatpush2.msra.mxu0 %v336
  %381 = vmatprep.subr.mxu0 0.0
  %382 = vmatpush2.msra.mxu0 %v335
  %383 = vmatprep.subr.mxu0 0.0
  %384 = vmatpush2.msra.mxu0 %v334
  %385 = vmatprep.subr.mxu0 0.0
  %386 = vmatpush2.msra.mxu0 %v333
  %387 = vmatprep.subr.mxu0 0.0
  %388 = vmatpush2.msra.mxu0 %v332
  %389 = vmatprep.subr.mxu0 0.0
  %390 = vmatpush2.msra.mxu0 %v331
  %391 = vmatprep.subr.mxu0 0.0
  %392 = vmatpush2.msra.mxu0 %v330
  %393 = vmatprep.subr.mxu0 0.0
  %394 = vmatpush2.msra.mxu0 %v329
  %395 = vmatprep.subr.mxu0 0.0
  %396 = vmatpush2.msra.mxu0 %v328
  %397 = vmatprep.subr.mxu0 0.0
  %398 = vmatpush2.msra.mxu0 %v327
  %399 = vmatprep.subr.mxu0 0.0
  %400 = vmatpush2.msra.mxu0 %v326
  %401 = vmatprep.subr.mxu0 0.0
  %402 = vmatpush2.msra.mxu0 %v325
  %403 = vmatprep.subr.mxu0 0.0
  %404 = vmatpush2.msra.mxu0 %v324
  %405 = vmatprep.subr.mxu0 0.0
  %406 = vmatpush2.msra.mxu0 %v323
  %407 = vmatprep.subr.mxu0 0.0
  %408 = vmatpush2.msra.mxu0 %v322
  %409 = vmatprep.mubr.f32.mxu0 %v304
  %410 = vmatmul.mubr.f32.gmra.mxu0 %v302
  %v411 = vpop.f32.mrf.mxu0
  %v412 = vadd.f32 %v343, %v411
  %v413 = vpop.f32.mrf.mxu0
  %414 = vdwg.mxu0
  %vm415 = vcmask 48128
  %416 = vst.msk [vmem:[%s5] sm:$0xff] %vm415, %v412
  // Predicated region
  $region22: #{cnn_forward.7} parent=0 // pred_check
    _
  $region23: #{cnn_forward.7} parent=0 // pred_check_branch
    %418 = sbr.rel (0) target = $region25
  $region24: #{cnn_forward.7} parent=0 // pred_region
    _
  $region25: #{cnn_forward.7} parent=0 // pred_fallthru
    _
  // Predicated region
  $region26: #{cnn_forward.7} parent=0 // pred_check
    _
  $region27: #{cnn_forward.7} parent=0 // pred_check_branch
    %420 = sbr.rel (0) target = $region29
  $region28: #{cnn_forward.7} parent=0 // pred_region
    _
  $region29: #{cnn_forward.7} parent=0 // pred_fallthru
    _

</llo_original>
